<compile_context>
chip_gen: v6e
topology: v6e:2x2x1
jax: 0.10.0
libtpu: 0.0.40
codegen_flags: <defaults>
</compile_context>

<pallas_src>
import numpy as np
import jax
import jax.numpy as jnp
from jax import lax
from jax.experimental import pallas as pl
from jax.experimental.pallas import tpu as pltpu

LANE = 128                 # lane stride for in-kernel activation rows
C1, C2, C3 = 10, 20, 30    # conv output channels
TB_MAX = 512               # max batch-tile rows per grid step
NEG_BIG = -1e30            # mask for padded logit lanes (log_softmax-safe)


# ------------------------------ Pallas kernel -------------------------------

def fused_forward_kernel(x_ref, w1_ref, b1_ref, w2_ref, b2_ref, w3_ref, b3_ref,
                         f1w_ref, f1b_ref, f2w_ref, f2b_ref,
                         o_ref, raw_ref, a1_ref, a2_ref):
    """Whole P2Q11ExtraConvNet forward (eval mode) for one batch tile (TB).

    Input layout: image pixel (r, w) lives at lane (r % 4) * 32 + w of group
    r // 4 (7 groups of 128 lanes).  conv1 chunk t (t = 0..5) multiplies input
    groups [t, t+2) (K=256) by a (256, 1024) block-Toeplitz RHS whose column
    blocks are [pool row 2t | pool row 2t+1] x [conv row 0 | 1] x [even | odd
    output cols], so each 2x2 max-pool is a max over four aligned 128-lane
    quarters.  a1/a2 activation rows use lane = w*C + c, zero-padded to 128.
    """
    # hoisted operand loads (not re-issued per loop iteration)
    w1 = w1_ref[...]                      # (256, 1024) bf16
    w2 = w2_ref[...]                      # (640,  256) bf16
    w3 = w3_ref[...]                      # (384,  128) bf16
    b1 = b1_ref[...]                      # (1, 128) f32
    b2 = b2_ref[...]
    b3 = b3_ref[...]

    # conv1 (1->10, k=5) + maxpool2x2 + relu : 28x28 -> 24x24 -> 12x12
    # 6 dots total, issued 3 at a time back-to-back (stationary RHS), results
    # pooled / biased / relu'd into a1 (bf16) in a second pass.
    for half in range(2):
        for tt in range(3):
            t = half * 3 + tt
            raw_ref[:, tt * 1024:(tt + 1) * 1024] = jnp.dot(
                x_ref[:, t * LANE:(t + 2) * LANE], w1,
                preferred_element_type=jnp.float32)
        for tt in range(3):
            t = half * 3 + tt
            for parity in range(2):                  # pool rows 2t, 2t+1
                base = tt * 1024 + parity * 512
                m = jnp.maximum(
                    jnp.maximum(raw_ref[:, base + 0 * LANE:base + 1 * LANE],
                                raw_ref[:, base + 1 * LANE:base + 2 * LANE]),
                    jnp.maximum(raw_ref[:, base + 2 * LANE:base + 3 * LANE],
                                raw_ref[:, base + 3 * LANE:base + 4 * LANE]))
                ph = 2 * t + parity
                a1_ref[:, ph * LANE:(ph + 1) * LANE] = jnp.maximum(
                    m + b1, 0.0).astype(jnp.bfloat16)

    # conv2 (10->20, k=5) + maxpool2x2 + relu : 12x12 -> 8x8 -> 4x4
    # 8 dots back-to-back against the same RHS (raw scratch reused), then pool.
    for c in range(8):                               # conv output row c
        raw_ref[:, c * 256:(c + 1) * 256] = jnp.dot(
            a1_ref[:, c * LANE:(c + 5) * LANE], w2,
            preferred_element_type=jnp.float32)
    for ph in range(4):
        b0 = (2 * ph) * 256
        b1o = (2 * ph + 1) * 256
        m = jnp.maximum(
            jnp.maximum(raw_ref[:, b0:b0 + LANE], raw_ref[:, b0 + LANE:b0 + 2 * LANE]),
            jnp.maximum(raw_ref[:, b1o:b1o + LANE], raw_ref[:, b1o + LANE:b1o + 2 * LANE]))
        a2_ref[:, ph * LANE:(ph + 1) * LANE] = jnp.maximum(
            m + b2, 0.0).astype(jnp.bfloat16)

    # conv3 (20->30, k=3) + relu : 4x4 -> 2x2  (kept as values, no scratch)
    y_r0 = jnp.dot(a2_ref[:, 0 * LANE:3 * LANE], w3,
                   preferred_element_type=jnp.float32)
    y_r1 = jnp.dot(a2_ref[:, 1 * LANE:4 * LANE], w3,
                   preferred_element_type=jnp.float32)
    a3 = jnp.concatenate([jnp.maximum(y_r0 + b3, 0.0),
                          jnp.maximum(y_r1 + b3, 0.0)],
                         axis=1).astype(jnp.bfloat16)          # (TB, 256)

    # fc1 -> relu -> (dropout: identity in eval) -> fc2 -> log_softmax
    # TODO(synk): training-mode dropout (random masking) not implemented.
    h = jnp.dot(a3, f1w_ref[...], preferred_element_type=jnp.float32) + f1b_ref[...]
    h = jnp.maximum(h, 0.0).astype(jnp.bfloat16)               # (TB, 128)
    logits = jnp.dot(h, f2w_ref[...],
                     preferred_element_type=jnp.float32) + f2b_ref[...]
    # padded lanes carry a -1e30 bias: never win the max, exp() to exactly 0
    mx = jnp.max(logits, axis=1, keepdims=True)
    s = logits - mx
    lse = jnp.log(jnp.sum(jnp.exp(s), axis=1, keepdims=True))
    o_ref[...] = s - lse


# --------------------------- parameter preparation --------------------------

def _build_conv1_packed(w):
    """conv1 weight (10,1,5,5) -> (256, 1024) chunk-invariant block-Toeplitz.

    LHS rows: 2 groups x (4 packed image rows x 32 lanes); row index
    (rr//4)*128 + (rr%4)*32 + wi multiplies image pixel (4t + rr, wi) of
    chunk t.  Columns: [pool row 2t | 2t+1] x [conv row j=0 | 1] x
    [even | odd ow], lane within a 128-block = (ow//2)*10 + co.
    """
    m = np.zeros((2 * LANE, 8 * LANE), np.float32)
    for jj in range(4):                      # conv output row within the chunk
        parity, j = jj // 2, jj % 2
        for kh in range(5):
            rr = jj + kh
            row_base = (rr // 4) * LANE + (rr % 4) * 32
            for kw in range(5):
                for ow in range(24):
                    row = row_base + ow + kw
                    for co in range(C1):
                        col = (parity * 512 + (j * 2 + (ow % 2)) * LANE
                               + (ow // 2) * C1 + co)
                        m[row, col] = w[co, 0, kh, kw]
    return m


def _conv_row_toeplitz(w, w_in):
    """Conv weight (Cout,Cin,KH,KW) -> (KH*LANE, OW*Cout) row-Toeplitz matrix.

    Row (kh*LANE + wi*Cin + ci) multiplies activation lane (wi*Cin + ci) of
    input row (oh + kh); column (ow*Cout + co) is conv output (ow, co) of
    output row oh.  Rows for padded lanes stay zero.
    """
    cout, cin, kh_n, kw_n = w.shape
    ow_n = w_in - kw_n + 1
    m = np.zeros((kh_n * LANE, ow_n * cout), np.float32)
    for kh in range(kh_n):
        for kw in range(kw_n):
            blk = w[:, :, kh, kw].T                       # (Cin, Cout)
            for ow in range(ow_n):
                wi = ow + kw
                m[kh * LANE + wi * cin: kh * LANE + (wi + 1) * cin,
                  ow * cout:(ow + 1) * cout] = blk
    return m


def _split_pool_cols(m, ow, cout):
    """(K, OW*Cout) -> (K, 2*LANE): [even-ow cols | odd-ow cols], each padded
    to 128 lanes, so a 2x2 pool is a max over the halves (and 2 conv rows)."""
    k = m.shape[0]
    m3 = m.reshape(k, ow, cout)
    halves = []
    for parity in (0, 1):
        half = m3[:, parity::2, :].reshape(k, (ow // 2) * cout)
        halves.append(np.pad(half, ((0, 0), (0, LANE - (ow // 2) * cout))))
    return np.concatenate(halves, axis=1)


def _pad_cols(m, width=LANE):
    return np.pad(m, ((0, 0), (0, width - m.shape[1])))


def _tiled_bias(b, reps, width=LANE):
    t = np.tile(np.asarray(b, np.float32), reps)
    return jnp.asarray(np.pad(t, (0, width - t.size)).reshape(1, width))


def init_params(key):
    """PyTorch-style uniform(-1/sqrt(fan_in), 1/sqrt(fan_in)) init, torch layouts."""
    def unif(k, shape, fan_in):
        bound = 1.0 / jnp.sqrt(float(fan_in))
        return jax.random.uniform(k, shape, jnp.float32, -bound, bound)

    ks = jax.random.split(key, 10)
    return {
        "conv1_w": unif(ks[0], (10, 1, 5, 5), 1 * 5 * 5),
        "conv1_b": unif(ks[1], (10,), 1 * 5 * 5),
        "conv2_w": unif(ks[2], (20, 10, 5, 5), 10 * 5 * 5),
        "conv2_b": unif(ks[3], (20,), 10 * 5 * 5),
        "conv3_w": unif(ks[4], (30, 20, 3, 3), 20 * 3 * 3),
        "conv3_b": unif(ks[5], (30,), 20 * 3 * 3),
        "fc1_w": unif(ks[6], (50, 120), 120),
        "fc1_b": unif(ks[7], (50,), 120),
        "fc2_w": unif(ks[8], (10, 50), 50),
        "fc2_b": unif(ks[9], (10,), 50),
    }


def prepare_params(params):
    """One-time host-side packing of MXU operands (bf16) and f32 biases."""
    conv1_w = np.asarray(params["conv1_w"], np.float32)
    conv2_w = np.asarray(params["conv2_w"], np.float32)
    conv3_w = np.asarray(params["conv3_w"], np.float32)
    fc1_w = np.asarray(params["fc1_w"], np.float32)       # (50, 120)
    fc2_w = np.asarray(params["fc2_w"], np.float32)       # (10, 50)

    w1m = _build_conv1_packed(conv1_w)                               # (256, 1024)
    w2m = _split_pool_cols(_conv_row_toeplitz(conv2_w, 12), 8, C2)   # (640, 256)
    w3m = _pad_cols(_conv_row_toeplitz(conv3_w, 4))                  # (384, 128)

    # fc1 rows follow the kernel's conv3 feature layout (lane = h*128 + w*30 + c),
    # mapped to torch's .view(-1, 120) order (c*4 + h*2 + w); out dim padded to 128.
    fc1m = np.zeros((2 * LANE, LANE), np.float32)
    for hh in range(2):
        for ww in range(2):
            for cc in range(C3):
                fc1m[hh * LANE + ww * C3 + cc, :50] = fc1_w[:, cc * 4 + hh * 2 + ww]
    # fc2 padded to a lane-dense (128, 128); padded logit lanes masked via bias.
    fc2m = np.zeros((LANE, LANE), np.float32)
    fc2m[:50, :10] = fc2_w.T
    f2b = np.full((1, LANE), NEG_BIG, np.float32)
    f2b[0, :10] = np.asarray(params["fc2_b"], np.float32)

    bf16 = jnp.bfloat16
    return (
        jnp.asarray(w1m, bf16), _tiled_bias(params["conv1_b"], 12),
        jnp.asarray(w2m, bf16), _tiled_bias(params["conv2_b"], 4),
        jnp.asarray(w3m, bf16), _tiled_bias(params["conv3_b"], 2),
        jnp.asarray(fc1m, bf16), _tiled_bias(params["fc1_b"], 1),
        jnp.asarray(fc2m, bf16), jnp.asarray(f2b),
    )


# -------------------------------- JAX wrapper --------------------------------

def _round_up(v, m):
    return (v + m - 1) // m * m


@jax.jit
def forward(x_nchw, ops):
    """x_nchw: (N, 1, 28, 28) f32 -> (N, 10) f32 log-probabilities."""
    n = x_nchw.shape[0]
    # Batch tiling: tile <= TB_MAX rows (multiple of 16); grid length even and
    # >= 2 so v7x's two TensorCores both get work (no effect on v5e/v6e).
    npad16 = _round_up(n, 16)
    steps = _round_up(max(-(-npad16 // TB_MAX), 2), 2)
    tb = _round_up(-(-npad16 // steps), 16)
    npad = steps * tb

    # Pack 4 image rows per 128-lane group: lane = (row % 4) * 32 + col.
    x = x_nchw.reshape(n, 7, 4, 28)
    x = jnp.pad(x, ((0, npad - n), (0, 0), (0, 0), (0, 4)))
    x = x.astype(jnp.bfloat16).reshape(npad, 7 * LANE)

    in_specs = [pl.BlockSpec((tb, 7 * LANE), lambda i: (i, 0))]
    in_specs += [pl.BlockSpec(op.shape, lambda i: (0, 0)) for op in ops]

    out = pl.pallas_call(
        fused_forward_kernel,
        out_shape=jax.ShapeDtypeStruct((npad, LANE), jnp.float32),
        grid=(steps,),
        in_specs=in_specs,
        out_specs=pl.BlockSpec((tb, LANE), lambda i: (i, 0)),
        scratch_shapes=[
            pltpu.VMEM((tb, 3 * 1024), jnp.float32),     # raw conv results (reused)
            pltpu.VMEM((tb, 12 * LANE), jnp.bfloat16),   # conv1 pooled activations
            pltpu.VMEM((tb, 4 * LANE), jnp.bfloat16),    # conv2 pooled activations
        ],
        compiler_params=pltpu.CompilerParams(
            dimension_semantics=("parallel",),           # shard batch tiles over TCs
            vmem_limit_bytes=32 * 1024 * 1024,           # fits v7x's smaller VMEM
        ),
    )(x, *ops)
    return out[:n, :10]


def reference_forward(x, p):
    """Pure-JAX f32 reference (mirrors the PyTorch module, eval mode)."""
    dn = ("NCHW", "OIHW", "NCHW")

    def conv(v, w, b):
        y = lax.conv_general_dilated(v, w, (1, 1), "VALID", dimension_numbers=dn)
        return y + b[None, :, None, None]

    def pool(v):
        return lax.reduce_window(v, -jnp.inf, lax.max,
                                 (1, 1, 2, 2), (1, 1, 2, 2), "VALID")

    y = jnp.maximum(pool(conv(x, p["conv1_w"], p["conv1_b"])), 0.0)
    y = jnp.maximum(pool(conv(y, p["conv2_w"], p["conv2_b"])), 0.0)
    y = jnp.maximum(conv(y, p["conv3_w"], p["conv3_b"]), 0.0)
    y = y.reshape(x.shape[0], 120)                       # torch .view(-1, 120)
    y = jnp.maximum(y @ p["fc1_w"].T + p["fc1_b"], 0.0)
    # dropout: identity in eval mode
    logits = y @ p["fc2_w"].T + p["fc2_b"]
    return jax.nn.log_softmax(logits, axis=1)


if __name__ == "__main__":
    key = jax.random.PRNGKey(0)
    k_x, k_p = jax.random.split(key)
    # FashionMNIST-shaped input: the .view(-1, 120) forces 1x28x28 spatial size.
    x = jax.random.normal(k_x, (2, 1, 28, 28), dtype=jnp.float32)
    params = init_params(k_p)
    ops = prepare_params(params)

    out = jax.block_until_ready(forward(x, ops))
    ref = jax.block_until_ready(reference_forward(x, params))

    assert out.shape == (2, 10)
    assert bool(jnp.all(jnp.isfinite(out)))
    # log_softmax rows must (approximately) exponentiate-and-sum to 1
    assert bool(jnp.allclose(jnp.sum(jnp.exp(out), axis=1), 1.0, atol=1e-3))
    # matches the f32 reference up to bf16 MXU-operand quantization
    assert bool(jnp.allclose(out, ref, atol=1e-1))
    print("KERNEL_OK")
</pallas_src>

<mosaic_0001>
module attributes {stable_mosaic.version = 11 : i64} {
  func.func @fused_forward_kernel(%arg0: i32, %arg1: memref<16x896xbf16, #tpu.memory_space<vmem>>, %arg2: memref<256x1024xbf16, #tpu.memory_space<vmem>>, %arg3: memref<1x128xf32, #tpu.memory_space<vmem>>, %arg4: memref<640x256xbf16, #tpu.memory_space<vmem>>, %arg5: memref<1x128xf32, #tpu.memory_space<vmem>>, %arg6: memref<384x128xbf16, #tpu.memory_space<vmem>>, %arg7: memref<1x128xf32, #tpu.memory_space<vmem>>, %arg8: memref<256x128xbf16, #tpu.memory_space<vmem>>, %arg9: memref<1x128xf32, #tpu.memory_space<vmem>>, %arg10: memref<128x128xbf16, #tpu.memory_space<vmem>>, %arg11: memref<1x128xf32, #tpu.memory_space<vmem>>, %arg12: memref<16x128xf32, #tpu.memory_space<vmem>>, %arg13: memref<16x3072xf32, #tpu.memory_space<vmem>>, %arg14: memref<16x1536xbf16, #tpu.memory_space<vmem>>, %arg15: memref<16x512xbf16, #tpu.memory_space<vmem>>) attributes {dimension_semantics = [#tpu.dimension_semantics<parallel>], iteration_bounds = array<i64: 2>, scalar_prefetch = 0 : i64, scratch_operands = 3 : i64, tpu.core_type = #tpu.core_type<tc>, window_params = [{transform_indices = @transform_0, window_bounds = array<i64: 16, 896>}, {pipeline_mode = #tpu.pipeline_mode<synchronous>, transform_indices = @transform_1, window_bounds = array<i64: 256, 1024>}, {pipeline_mode = #tpu.pipeline_mode<synchronous>, transform_indices = @transform_2, window_bounds = array<i64: 1, 128>}, {pipeline_mode = #tpu.pipeline_mode<synchronous>, transform_indices = @transform_3, window_bounds = array<i64: 640, 256>}, {pipeline_mode = #tpu.pipeline_mode<synchronous>, transform_indices = @transform_4, window_bounds = array<i64: 1, 128>}, {pipeline_mode = #tpu.pipeline_mode<synchronous>, transform_indices = @transform_5, window_bounds = array<i64: 384, 128>}, {pipeline_mode = #tpu.pipeline_mode<synchronous>, transform_indices = @transform_6, window_bounds = array<i64: 1, 128>}, {pipeline_mode = #tpu.pipeline_mode<synchronous>, transform_indices = @transform_7, window_bounds = array<i64: 256, 128>}, {pipeline_mode = #tpu.pipeline_mode<synchronous>, transform_indices = @transform_8, window_bounds = array<i64: 1, 128>}, {pipeline_mode = #tpu.pipeline_mode<synchronous>, transform_indices = @transform_9, window_bounds = array<i64: 128, 128>}, {pipeline_mode = #tpu.pipeline_mode<synchronous>, transform_indices = @transform_10, window_bounds = array<i64: 1, 128>}, {transform_indices = @transform_11, window_bounds = array<i64: 16, 128>}]} {
    %c0 = arith.constant 0 : index
    %c0_0 = arith.constant 0 : index
    %0 = vector.load %arg2[%c0, %c0_0] : memref<256x1024xbf16, #tpu.memory_space<vmem>>, vector<256x1024xbf16>
    %c0_1 = arith.constant 0 : index
    %c0_2 = arith.constant 0 : index
    %1 = vector.load %arg4[%c0_1, %c0_2] : memref<640x256xbf16, #tpu.memory_space<vmem>>, vector<640x256xbf16>
    %c0_3 = arith.constant 0 : index
    %c0_4 = arith.constant 0 : index
    %2 = vector.load %arg6[%c0_3, %c0_4] : memref<384x128xbf16, #tpu.memory_space<vmem>>, vector<384x128xbf16>
    %c0_5 = arith.constant 0 : index
    %c0_6 = arith.constant 0 : index
    %3 = vector.load %arg3[%c0_5, %c0_6] : memref<1x128xf32, #tpu.memory_space<vmem>>, vector<1x128xf32>
    %c0_7 = arith.constant 0 : index
    %c0_8 = arith.constant 0 : index
    %4 = vector.load %arg5[%c0_7, %c0_8] : memref<1x128xf32, #tpu.memory_space<vmem>>, vector<1x128xf32>
    %c0_9 = arith.constant 0 : index
    %c0_10 = arith.constant 0 : index
    %5 = vector.load %arg7[%c0_9, %c0_10] : memref<1x128xf32, #tpu.memory_space<vmem>>, vector<1x128xf32>
    %c0_11 = arith.constant 0 : index
    %c0_12 = arith.constant 0 : index
    %6 = vector.load %arg1[%c0_11, %c0_12] : memref<16x896xbf16, #tpu.memory_space<vmem>>, vector<16x256xbf16>
    %cst = arith.constant dense<0.000000e+00> : vector<16x1024xf32>
    %7 = tpu.matmul %6, %0, %cst {dimension_numbers = #tpu.dot_dimension_numbers<[1], [0], [0], [1], [0, 0, 1, 1], [], []>} : vector<16x256xbf16>, vector<256x1024xbf16>, vector<16x1024xf32> -> vector<16x1024xf32>
    %c0_13 = arith.constant 0 : index
    %c0_14 = arith.constant 0 : index
    %8 = vector.load %arg13[%c0_13, %c0_14] : memref<16x3072xf32, #tpu.memory_space<vmem>>, vector<16x1024xf32>
    tpu.vector_store %arg13[%c0_13, %c0_14], %7 {strides = array<i32>} : memref<16x3072xf32, #tpu.memory_space<vmem>>, vector<16x1024xf32>,
    %c0_15 = arith.constant 0 : index
    %c128 = arith.constant 128 : index
    %9 = vector.load %arg1[%c0_15, %c128] : memref<16x896xbf16, #tpu.memory_space<vmem>>, vector<16x256xbf16>
    %cst_16 = arith.constant dense<0.000000e+00> : vector<16x1024xf32>
    %10 = tpu.matmul %9, %0, %cst_16 {dimension_numbers = #tpu.dot_dimension_numbers<[1], [0], [0], [1], [0, 0, 1, 1], [], []>} : vector<16x256xbf16>, vector<256x1024xbf16>, vector<16x1024xf32> -> vector<16x1024xf32>
    %c0_17 = arith.constant 0 : index
    %c1024 = arith.constant 1024 : index
    %11 = vector.load %arg13[%c0_17, %c1024] : memref<16x3072xf32, #tpu.memory_space<vmem>>, vector<16x1024xf32>
    tpu.vector_store %arg13[%c0_17, %c1024], %10 {strides = array<i32>} : memref<16x3072xf32, #tpu.memory_space<vmem>>, vector<16x1024xf32>,
    %c0_18 = arith.constant 0 : index
    %c256 = arith.constant 256 : index
    %12 = vector.load %arg1[%c0_18, %c256] : memref<16x896xbf16, #tpu.memory_space<vmem>>, vector<16x256xbf16>
    %cst_19 = arith.constant dense<0.000000e+00> : vector<16x1024xf32>
    %13 = tpu.matmul %12, %0, %cst_19 {dimension_numbers = #tpu.dot_dimension_numbers<[1], [0], [0], [1], [0, 0, 1, 1], [], []>} : vector<16x256xbf16>, vector<256x1024xbf16>, vector<16x1024xf32> -> vector<16x1024xf32>
    %c0_20 = arith.constant 0 : index
    %c2048 = arith.constant 2048 : index
    %14 = vector.load %arg13[%c0_20, %c2048] : memref<16x3072xf32, #tpu.memory_space<vmem>>, vector<16x1024xf32>
    tpu.vector_store %arg13[%c0_20, %c2048], %13 {strides = array<i32>} : memref<16x3072xf32, #tpu.memory_space<vmem>>, vector<16x1024xf32>,
    %c0_21 = arith.constant 0 : index
    %c0_22 = arith.constant 0 : index
    %15 = vector.load %arg13[%c0_21, %c0_22] : memref<16x3072xf32, #tpu.memory_space<vmem>>, vector<16x128xf32>
    %c0_23 = arith.constant 0 : index
    %c128_24 = arith.constant 128 : index
    %16 = vector.load %arg13[%c0_23, %c128_24] : memref<16x3072xf32, #tpu.memory_space<vmem>>, vector<16x128xf32>
    %17 = arith.maximumf %15, %16 : vector<16x128xf32>
    %c0_25 = arith.constant 0 : index
    %c256_26 = arith.constant 256 : index
    %18 = vector.load %arg13[%c0_25, %c256_26] : memref<16x3072xf32, #tpu.memory_space<vmem>>, vector<16x128xf32>
    %c0_27 = arith.constant 0 : index
    %c384 = arith.constant 384 : index
    %19 = vector.load %arg13[%c0_27, %c384] : memref<16x3072xf32, #tpu.memory_space<vmem>>, vector<16x128xf32>
    %20 = arith.maximumf %18, %19 : vector<16x128xf32>
    %21 = arith.maximumf %17, %20 : vector<16x128xf32>
    %22 = vector.broadcast %3 : vector<1x128xf32> to vector<16x128xf32>
    %23 = arith.addf %21, %22 : vector<16x128xf32>
    %cst_28 = arith.constant 0.000000e+00 : f32
    %24 = vector.broadcast %cst_28 : f32 to vector<16x128xf32>
    %25 = arith.maximumf %23, %24 : vector<16x128xf32>
    %26 = arith.truncf %25 : vector<16x128xf32> to vector<16x128xbf16>
    %c0_29 = arith.constant 0 : index
    %c0_30 = arith.constant 0 : index
    %27 = vector.load %arg14[%c0_29, %c0_30] : memref<16x1536xbf16, #tpu.memory_space<vmem>>, vector<16x128xbf16>
    tpu.vector_store %arg14[%c0_29, %c0_30], %26 {strides = array<i32>} : memref<16x1536xbf16, #tpu.memory_space<vmem>>, vector<16x128xbf16>,
    %c0_31 = arith.constant 0 : index
    %c512 = arith.constant 512 : index
    %28 = vector.load %arg13[%c0_31, %c512] : memref<16x3072xf32, #tpu.memory_space<vmem>>, vector<16x128xf32>
    %c0_32 = arith.constant 0 : index
    %c640 = arith.constant 640 : index
    %29 = vector.load %arg13[%c0_32, %c640] : memref<16x3072xf32, #tpu.memory_space<vmem>>, vector<16x128xf32>
    %30 = arith.maximumf %28, %29 : vector<16x128xf32>
    %c0_33 = arith.constant 0 : index
    %c768 = arith.constant 768 : index
    %31 = vector.load %arg13[%c0_33, %c768] : memref<16x3072xf32, #tpu.memory_space<vmem>>, vector<16x128xf32>
    %c0_34 = arith.constant 0 : index
    %c896 = arith.constant 896 : index
    %32 = vector.load %arg13[%c0_34, %c896] : memref<16x3072xf32, #tpu.memory_space<vmem>>, vector<16x128xf32>
    %33 = arith.maximumf %31, %32 : vector<16x128xf32>
    %34 = arith.maximumf %30, %33 : vector<16x128xf32>
    %35 = vector.broadcast %3 : vector<1x128xf32> to vector<16x128xf32>
    %36 = arith.addf %34, %35 : vector<16x128xf32>
    %cst_35 = arith.constant 0.000000e+00 : f32
    %37 = vector.broadcast %cst_35 : f32 to vector<16x128xf32>
    %38 = arith.maximumf %36, %37 : vector<16x128xf32>
    %39 = arith.truncf %38 : vector<16x128xf32> to vector<16x128xbf16>
    %c0_36 = arith.constant 0 : index
    %c128_37 = arith.constant 128 : index
    %40 = vector.load %arg14[%c0_36, %c128_37] : memref<16x1536xbf16, #tpu.memory_space<vmem>>, vector<16x128xbf16>
    tpu.vector_store %arg14[%c0_36, %c128_37], %39 {strides = array<i32>} : memref<16x1536xbf16, #tpu.memory_space<vmem>>, vector<16x128xbf16>,
    %c0_38 = arith.constant 0 : index
    %c1024_39 = arith.constant 1024 : index
    %41 = vector.load %arg13[%c0_38, %c1024_39] : memref<16x3072xf32, #tpu.memory_space<vmem>>, vector<16x128xf32>
    %c0_40 = arith.constant 0 : index
    %c1152 = arith.constant 1152 : index
    %42 = vector.load %arg13[%c0_40, %c1152] : memref<16x3072xf32, #tpu.memory_space<vmem>>, vector<16x128xf32>
    %43 = arith.maximumf %41, %42 : vector<16x128xf32>
    %c0_41 = arith.constant 0 : index
    %c1280 = arith.constant 1280 : index
    %44 = vector.load %arg13[%c0_41, %c1280] : memref<16x3072xf32, #tpu.memory_space<vmem>>, vector<16x128xf32>
    %c0_42 = arith.constant 0 : index
    %c1408 = arith.constant 1408 : index
    %45 = vector.load %arg13[%c0_42, %c1408] : memref<16x3072xf32, #tpu.memory_space<vmem>>, vector<16x128xf32>
    %46 = arith.maximumf %44, %45 : vector<16x128xf32>
    %47 = arith.maximumf %43, %46 : vector<16x128xf32>
    %48 = vector.broadcast %3 : vector<1x128xf32> to vector<16x128xf32>
    %49 = arith.addf %47, %48 : vector<16x128xf32>
    %cst_43 = arith.constant 0.000000e+00 : f32
    %50 = vector.broadcast %cst_43 : f32 to vector<16x128xf32>
    %51 = arith.maximumf %49, %50 : vector<16x128xf32>
    %52 = arith.truncf %51 : vector<16x128xf32> to vector<16x128xbf16>
    %c0_44 = arith.constant 0 : index
    %c256_45 = arith.constant 256 : index
    %53 = vector.load %arg14[%c0_44, %c256_45] : memref<16x1536xbf16, #tpu.memory_space<vmem>>, vector<16x128xbf16>
    tpu.vector_store %arg14[%c0_44, %c256_45], %52 {strides = array<i32>} : memref<16x1536xbf16, #tpu.memory_space<vmem>>, vector<16x128xbf16>,
    %c0_46 = arith.constant 0 : index
    %c1536 = arith.constant 1536 : index
    %54 = vector.load %arg13[%c0_46, %c1536] : memref<16x3072xf32, #tpu.memory_space<vmem>>, vector<16x128xf32>
    %c0_47 = arith.constant 0 : index
    %c1664 = arith.constant 1664 : index
    %55 = vector.load %arg13[%c0_47, %c1664] : memref<16x3072xf32, #tpu.memory_space<vmem>>, vector<16x128xf32>
    %56 = arith.maximumf %54, %55 : vector<16x128xf32>
    %c0_48 = arith.constant 0 : index
    %c1792 = arith.constant 1792 : index
    %57 = vector.load %arg13[%c0_48, %c1792] : memref<16x3072xf32, #tpu.memory_space<vmem>>, vector<16x128xf32>
    %c0_49 = arith.constant 0 : index
    %c1920 = arith.constant 1920 : index
    %58 = vector.load %arg13[%c0_49, %c1920] : memref<16x3072xf32, #tpu.memory_space<vmem>>, vector<16x128xf32>
    %59 = arith.maximumf %57, %58 : vector<16x128xf32>
    %60 = arith.maximumf %56, %59 : vector<16x128xf32>
    %61 = vector.broadcast %3 : vector<1x128xf32> to vector<16x128xf32>
    %62 = arith.addf %60, %61 : vector<16x128xf32>
    %cst_50 = arith.constant 0.000000e+00 : f32
    %63 = vector.broadcast %cst_50 : f32 to vector<16x128xf32>
    %64 = arith.maximumf %62, %63 : vector<16x128xf32>
    %65 = arith.truncf %64 : vector<16x128xf32> to vector<16x128xbf16>
    %c0_51 = arith.constant 0 : index
    %c384_52 = arith.constant 384 : index
    %66 = vector.load %arg14[%c0_51, %c384_52] : memref<16x1536xbf16, #tpu.memory_space<vmem>>, vector<16x128xbf16>
    tpu.vector_store %arg14[%c0_51, %c384_52], %65 {strides = array<i32>} : memref<16x1536xbf16, #tpu.memory_space<vmem>>, vector<16x128xbf16>,
    %c0_53 = arith.constant 0 : index
    %c2048_54 = arith.constant 2048 : index
    %67 = vector.load %arg13[%c0_53, %c2048_54] : memref<16x3072xf32, #tpu.memory_space<vmem>>, vector<16x128xf32>
    %c0_55 = arith.constant 0 : index
    %c2176 = arith.constant 2176 : index
    %68 = vector.load %arg13[%c0_55, %c2176] : memref<16x3072xf32, #tpu.memory_space<vmem>>, vector<16x128xf32>
    %69 = arith.maximumf %67, %68 : vector<16x128xf32>
    %c0_56 = arith.constant 0 : index
    %c2304 = arith.constant 2304 : index
    %70 = vector.load %arg13[%c0_56, %c2304] : memref<16x3072xf32, #tpu.memory_space<vmem>>, vector<16x128xf32>
    %c0_57 = arith.constant 0 : index
    %c2432 = arith.constant 2432 : index
    %71 = vector.load %arg13[%c0_57, %c2432] : memref<16x3072xf32, #tpu.memory_space<vmem>>, vector<16x128xf32>
    %72 = arith.maximumf %70, %71 : vector<16x128xf32>
    %73 = arith.maximumf %69, %72 : vector<16x128xf32>
    %74 = vector.broadcast %3 : vector<1x128xf32> to vector<16x128xf32>
    %75 = arith.addf %73, %74 : vector<16x128xf32>
    %cst_58 = arith.constant 0.000000e+00 : f32
    %76 = vector.broadcast %cst_58 : f32 to vector<16x128xf32>
    %77 = arith.maximumf %75, %76 : vector<16x128xf32>
    %78 = arith.truncf %77 : vector<16x128xf32> to vector<16x128xbf16>
    %c0_59 = arith.constant 0 : index
    %c512_60 = arith.constant 512 : index
    %79 = vector.load %arg14[%c0_59, %c512_60] : memref<16x1536xbf16, #tpu.memory_space<vmem>>, vector<16x128xbf16>
    tpu.vector_store %arg14[%c0_59, %c512_60], %78 {strides = array<i32>} : memref<16x1536xbf16, #tpu.memory_space<vmem>>, vector<16x128xbf16>,
    %c0_61 = arith.constant 0 : index
    %c2560 = arith.constant 2560 : index
    %80 = vector.load %arg13[%c0_61, %c2560] : memref<16x3072xf32, #tpu.memory_space<vmem>>, vector<16x128xf32>
    %c0_62 = arith.constant 0 : index
    %c2688 = arith.constant 2688 : index
    %81 = vector.load %arg13[%c0_62, %c2688] : memref<16x3072xf32, #tpu.memory_space<vmem>>, vector<16x128xf32>
    %82 = arith.maximumf %80, %81 : vector<16x128xf32>
    %c0_63 = arith.constant 0 : index
    %c2816 = arith.constant 2816 : index
    %83 = vector.load %arg13[%c0_63, %c2816] : memref<16x3072xf32, #tpu.memory_space<vmem>>, vector<16x128xf32>
    %c0_64 = arith.constant 0 : index
    %c2944 = arith.constant 2944 : index
    %84 = vector.load %arg13[%c0_64, %c2944] : memref<16x3072xf32, #tpu.memory_space<vmem>>, vector<16x128xf32>
    %85 = arith.maximumf %83, %84 : vector<16x128xf32>
    %86 = arith.maximumf %82, %85 : vector<16x128xf32>
    %87 = vector.broadcast %3 : vector<1x128xf32> to vector<16x128xf32>
    %88 = arith.addf %86, %87 : vector<16x128xf32>
    %cst_65 = arith.constant 0.000000e+00 : f32
    %89 = vector.broadcast %cst_65 : f32 to vector<16x128xf32>
    %90 = arith.maximumf %88, %89 : vector<16x128xf32>
    %91 = arith.truncf %90 : vector<16x128xf32> to vector<16x128xbf16>
    %c0_66 = arith.constant 0 : index
    %c640_67 = arith.constant 640 : index
    %92 = vector.load %arg14[%c0_66, %c640_67] : memref<16x1536xbf16, #tpu.memory_space<vmem>>, vector<16x128xbf16>
    tpu.vector_store %arg14[%c0_66, %c640_67], %91 {strides = array<i32>} : memref<16x1536xbf16, #tpu.memory_space<vmem>>, vector<16x128xbf16>,
    %c0_68 = arith.constant 0 : index
    %c384_69 = arith.constant 384 : index
    %93 = vector.load %arg1[%c0_68, %c384_69] : memref<16x896xbf16, #tpu.memory_space<vmem>>, vector<16x256xbf16>
    %cst_70 = arith.constant dense<0.000000e+00> : vector<16x1024xf32>
    %94 = tpu.matmul %93, %0, %cst_70 {dimension_numbers = #tpu.dot_dimension_numbers<[1], [0], [0], [1], [0, 0, 1, 1], [], []>} : vector<16x256xbf16>, vector<256x1024xbf16>, vector<16x1024xf32> -> vector<16x1024xf32>
    %c0_71 = arith.constant 0 : index
    %c0_72 = arith.constant 0 : index
    %95 = vector.load %arg13[%c0_71, %c0_72] : memref<16x3072xf32, #tpu.memory_space<vmem>>, vector<16x1024xf32>
    tpu.vector_store %arg13[%c0_71, %c0_72], %94 {strides = array<i32>} : memref<16x3072xf32, #tpu.memory_space<vmem>>, vector<16x1024xf32>,
    %c0_73 = arith.constant 0 : index
    %c512_74 = arith.constant 512 : index
    %96 = vector.load %arg1[%c0_73, %c512_74] : memref<16x896xbf16, #tpu.memory_space<vmem>>, vector<16x256xbf16>
    %cst_75 = arith.constant dense<0.000000e+00> : vector<16x1024xf32>
    %97 = tpu.matmul %96, %0, %cst_75 {dimension_numbers = #tpu.dot_dimension_numbers<[1], [0], [0], [1], [0, 0, 1, 1], [], []>} : vector<16x256xbf16>, vector<256x1024xbf16>, vector<16x1024xf32> -> vector<16x1024xf32>
    %c0_76 = arith.constant 0 : index
    %c1024_77 = arith.constant 1024 : index
    %98 = vector.load %arg13[%c0_76, %c1024_77] : memref<16x3072xf32, #tpu.memory_space<vmem>>, vector<16x1024xf32>
    tpu.vector_store %arg13[%c0_76, %c1024_77], %97 {strides = array<i32>} : memref<16x3072xf32, #tpu.memory_space<vmem>>, vector<16x1024xf32>,
    %c0_78 = arith.constant 0 : index
    %c640_79 = arith.constant 640 : index
    %99 = vector.load %arg1[%c0_78, %c640_79] : memref<16x896xbf16, #tpu.memory_space<vmem>>, vector<16x256xbf16>
    %cst_80 = arith.constant dense<0.000000e+00> : vector<16x1024xf32>
    %100 = tpu.matmul %99, %0, %cst_80 {dimension_numbers = #tpu.dot_dimension_numbers<[1], [0], [0], [1], [0, 0, 1, 1], [], []>} : vector<16x256xbf16>, vector<256x1024xbf16>, vector<16x1024xf32> -> vector<16x1024xf32>
    %c0_81 = arith.constant 0 : index
    %c2048_82 = arith.constant 2048 : index
    %101 = vector.load %arg13[%c0_81, %c2048_82] : memref<16x3072xf32, #tpu.memory_space<vmem>>, vector<16x1024xf32>
    tpu.vector_store %arg13[%c0_81, %c2048_82], %100 {strides = array<i32>} : memref<16x3072xf32, #tpu.memory_space<vmem>>, vector<16x1024xf32>,
    %c0_83 = arith.constant 0 : index
    %c0_84 = arith.constant 0 : index
    %102 = vector.load %arg13[%c0_83, %c0_84] : memref<16x3072xf32, #tpu.memory_space<vmem>>, vector<16x128xf32>
    %c0_85 = arith.constant 0 : index
    %c128_86 = arith.constant 128 : index
    %103 = vector.load %arg13[%c0_85, %c128_86] : memref<16x3072xf32, #tpu.memory_space<vmem>>, vector<16x128xf32>
    %104 = arith.maximumf %102, %103 : vector<16x128xf32>
    %c0_87 = arith.constant 0 : index
    %c256_88 = arith.constant 256 : index
    %105 = vector.load %arg13[%c0_87, %c256_88] : memref<16x3072xf32, #tpu.memory_space<vmem>>, vector<16x128xf32>
    %c0_89 = arith.constant 0 : index
    %c384_90 = arith.constant 384 : index
    %106 = vector.load %arg13[%c0_89, %c384_90] : memref<16x3072xf32, #tpu.memory_space<vmem>>, vector<16x128xf32>
    %107 = arith.maximumf %105, %106 : vector<16x128xf32>
    %108 = arith.maximumf %104, %107 : vector<16x128xf32>
    %109 = vector.broadcast %3 : vector<1x128xf32> to vector<16x128xf32>
    %110 = arith.addf %108, %109 : vector<16x128xf32>
    %cst_91 = arith.constant 0.000000e+00 : f32
    %111 = vector.broadcast %cst_91 : f32 to vector<16x128xf32>
    %112 = arith.maximumf %110, %111 : vector<16x128xf32>
    %113 = arith.truncf %112 : vector<16x128xf32> to vector<16x128xbf16>
    %c0_92 = arith.constant 0 : index
    %c768_93 = arith.constant 768 : index
    %114 = vector.load %arg14[%c0_92, %c768_93] : memref<16x1536xbf16, #tpu.memory_space<vmem>>, vector<16x128xbf16>
    tpu.vector_store %arg14[%c0_92, %c768_93], %113 {strides = array<i32>} : memref<16x1536xbf16, #tpu.memory_space<vmem>>, vector<16x128xbf16>,
    %c0_94 = arith.constant 0 : index
    %c512_95 = arith.constant 512 : index
    %115 = vector.load %arg13[%c0_94, %c512_95] : memref<16x3072xf32, #tpu.memory_space<vmem>>, vector<16x128xf32>
    %c0_96 = arith.constant 0 : index
    %c640_97 = arith.constant 640 : index
    %116 = vector.load %arg13[%c0_96, %c640_97] : memref<16x3072xf32, #tpu.memory_space<vmem>>, vector<16x128xf32>
    %117 = arith.maximumf %115, %116 : vector<16x128xf32>
    %c0_98 = arith.constant 0 : index
    %c768_99 = arith.constant 768 : index
    %118 = vector.load %arg13[%c0_98, %c768_99] : memref<16x3072xf32, #tpu.memory_space<vmem>>, vector<16x128xf32>
    %c0_100 = arith.constant 0 : index
    %c896_101 = arith.constant 896 : index
    %119 = vector.load %arg13[%c0_100, %c896_101] : memref<16x3072xf32, #tpu.memory_space<vmem>>, vector<16x128xf32>
    %120 = arith.maximumf %118, %119 : vector<16x128xf32>
    %121 = arith.maximumf %117, %120 : vector<16x128xf32>
    %122 = vector.broadcast %3 : vector<1x128xf32> to vector<16x128xf32>
    %123 = arith.addf %121, %122 : vector<16x128xf32>
    %cst_102 = arith.constant 0.000000e+00 : f32
    %124 = vector.broadcast %cst_102 : f32 to vector<16x128xf32>
    %125 = arith.maximumf %123, %124 : vector<16x128xf32>
    %126 = arith.truncf %125 : vector<16x128xf32> to vector<16x128xbf16>
    %c0_103 = arith.constant 0 : index
    %c896_104 = arith.constant 896 : index
    %127 = vector.load %arg14[%c0_103, %c896_104] : memref<16x1536xbf16, #tpu.memory_space<vmem>>, vector<16x128xbf16>
    tpu.vector_store %arg14[%c0_103, %c896_104], %126 {strides = array<i32>} : memref<16x1536xbf16, #tpu.memory_space<vmem>>, vector<16x128xbf16>,
    %c0_105 = arith.constant 0 : index
    %c1024_106 = arith.constant 1024 : index
    %128 = vector.load %arg13[%c0_105, %c1024_106] : memref<16x3072xf32, #tpu.memory_space<vmem>>, vector<16x128xf32>
    %c0_107 = arith.constant 0 : index
    %c1152_108 = arith.constant 1152 : index
    %129 = vector.load %arg13[%c0_107, %c1152_108] : memref<16x3072xf32, #tpu.memory_space<vmem>>, vector<16x128xf32>
    %130 = arith.maximumf %128, %129 : vector<16x128xf32>
    %c0_109 = arith.constant 0 : index
    %c1280_110 = arith.constant 1280 : index
    %131 = vector.load %arg13[%c0_109, %c1280_110] : memref<16x3072xf32, #tpu.memory_space<vmem>>, vector<16x128xf32>
    %c0_111 = arith.constant 0 : index
    %c1408_112 = arith.constant 1408 : index
    %132 = vector.load %arg13[%c0_111, %c1408_112] : memref<16x3072xf32, #tpu.memory_space<vmem>>, vector<16x128xf32>
    %133 = arith.maximumf %131, %132 : vector<16x128xf32>
    %134 = arith.maximumf %130, %133 : vector<16x128xf32>
    %135 = vector.broadcast %3 : vector<1x128xf32> to vector<16x128xf32>
    %136 = arith.addf %134, %135 : vector<16x128xf32>
    %cst_113 = arith.constant 0.000000e+00 : f32
    %137 = vector.broadcast %cst_113 : f32 to vector<16x128xf32>
    %138 = arith.maximumf %136, %137 : vector<16x128xf32>
    %139 = arith.truncf %138 : vector<16x128xf32> to vector<16x128xbf16>
    %c0_114 = arith.constant 0 : index
    %c1024_115 = arith.constant 1024 : index
    %140 = vector.load %arg14[%c0_114, %c1024_115] : memref<16x1536xbf16, #tpu.memory_space<vmem>>, vector<16x128xbf16>
    tpu.vector_store %arg14[%c0_114, %c1024_115], %139 {strides = array<i32>} : memref<16x1536xbf16, #tpu.memory_space<vmem>>, vector<16x128xbf16>,
    %c0_116 = arith.constant 0 : index
    %c1536_117 = arith.constant 1536 : index
    %141 = vector.load %arg13[%c0_116, %c1536_117] : memref<16x3072xf32, #tpu.memory_space<vmem>>, vector<16x128xf32>
    %c0_118 = arith.constant 0 : index
    %c1664_119 = arith.constant 1664 : index
    %142 = vector.load %arg13[%c0_118, %c1664_119] : memref<16x3072xf32, #tpu.memory_space<vmem>>, vector<16x128xf32>
    %143 = arith.maximumf %141, %142 : vector<16x128xf32>
    %c0_120 = arith.constant 0 : index
    %c1792_121 = arith.constant 1792 : index
    %144 = vector.load %arg13[%c0_120, %c1792_121] : memref<16x3072xf32, #tpu.memory_space<vmem>>, vector<16x128xf32>
    %c0_122 = arith.constant 0 : index
    %c1920_123 = arith.constant 1920 : index
    %145 = vector.load %arg13[%c0_122, %c1920_123] : memref<16x3072xf32, #tpu.memory_space<vmem>>, vector<16x128xf32>
    %146 = arith.maximumf %144, %145 : vector<16x128xf32>
    %147 = arith.maximumf %143, %146 : vector<16x128xf32>
    %148 = vector.broadcast %3 : vector<1x128xf32> to vector<16x128xf32>
    %149 = arith.addf %147, %148 : vector<16x128xf32>
    %cst_124 = arith.constant 0.000000e+00 : f32
    %150 = vector.broadcast %cst_124 : f32 to vector<16x128xf32>
    %151 = arith.maximumf %149, %150 : vector<16x128xf32>
    %152 = arith.truncf %151 : vector<16x128xf32> to vector<16x128xbf16>
    %c0_125 = arith.constant 0 : index
    %c1152_126 = arith.constant 1152 : index
    %153 = vector.load %arg14[%c0_125, %c1152_126] : memref<16x1536xbf16, #tpu.memory_space<vmem>>, vector<16x128xbf16>
    tpu.vector_store %arg14[%c0_125, %c1152_126], %152 {strides = array<i32>} : memref<16x1536xbf16, #tpu.memory_space<vmem>>, vector<16x128xbf16>,
    %c0_127 = arith.constant 0 : index
    %c2048_128 = arith.constant 2048 : index
    %154 = vector.load %arg13[%c0_127, %c2048_128] : memref<16x3072xf32, #tpu.memory_space<vmem>>, vector<16x128xf32>
    %c0_129 = arith.constant 0 : index
    %c2176_130 = arith.constant 2176 : index
    %155 = vector.load %arg13[%c0_129, %c2176_130] : memref<16x3072xf32, #tpu.memory_space<vmem>>, vector<16x128xf32>
    %156 = arith.maximumf %154, %155 : vector<16x128xf32>
    %c0_131 = arith.constant 0 : index
    %c2304_132 = arith.constant 2304 : index
    %157 = vector.load %arg13[%c0_131, %c2304_132] : memref<16x3072xf32, #tpu.memory_space<vmem>>, vector<16x128xf32>
    %c0_133 = arith.constant 0 : index
    %c2432_134 = arith.constant 2432 : index
    %158 = vector.load %arg13[%c0_133, %c2432_134] : memref<16x3072xf32, #tpu.memory_space<vmem>>, vector<16x128xf32>
    %159 = arith.maximumf %157, %158 : vector<16x128xf32>
    %160 = arith.maximumf %156, %159 : vector<16x128xf32>
    %161 = vector.broadcast %3 : vector<1x128xf32> to vector<16x128xf32>
    %162 = arith.addf %160, %161 : vector<16x128xf32>
    %cst_135 = arith.constant 0.000000e+00 : f32
    %163 = vector.broadcast %cst_135 : f32 to vector<16x128xf32>
    %164 = arith.maximumf %162, %163 : vector<16x128xf32>
    %165 = arith.truncf %164 : vector<16x128xf32> to vector<16x128xbf16>
    %c0_136 = arith.constant 0 : index
    %c1280_137 = arith.constant 1280 : index
    %166 = vector.load %arg14[%c0_136, %c1280_137] : memref<16x1536xbf16, #tpu.memory_space<vmem>>, vector<16x128xbf16>
    tpu.vector_store %arg14[%c0_136, %c1280_137], %165 {strides = array<i32>} : memref<16x1536xbf16, #tpu.memory_space<vmem>>, vector<16x128xbf16>,
    %c0_138 = arith.constant 0 : index
    %c2560_139 = arith.constant 2560 : index
    %167 = vector.load %arg13[%c0_138, %c2560_139] : memref<16x3072xf32, #tpu.memory_space<vmem>>, vector<16x128xf32>
    %c0_140 = arith.constant 0 : index
    %c2688_141 = arith.constant 2688 : index
    %168 = vector.load %arg13[%c0_140, %c2688_141] : memref<16x3072xf32, #tpu.memory_space<vmem>>, vector<16x128xf32>
    %169 = arith.maximumf %167, %168 : vector<16x128xf32>
    %c0_142 = arith.constant 0 : index
    %c2816_143 = arith.constant 2816 : index
    %170 = vector.load %arg13[%c0_142, %c2816_143] : memref<16x3072xf32, #tpu.memory_space<vmem>>, vector<16x128xf32>
    %c0_144 = arith.constant 0 : index
    %c2944_145 = arith.constant 2944 : index
    %171 = vector.load %arg13[%c0_144, %c2944_145] : memref<16x3072xf32, #tpu.memory_space<vmem>>, vector<16x128xf32>
    %172 = arith.maximumf %170, %171 : vector<16x128xf32>
    %173 = arith.maximumf %169, %172 : vector<16x128xf32>
    %174 = vector.broadcast %3 : vector<1x128xf32> to vector<16x128xf32>
    %175 = arith.addf %173, %174 : vector<16x128xf32>
    %cst_146 = arith.constant 0.000000e+00 : f32
    %176 = vector.broadcast %cst_146 : f32 to vector<16x128xf32>
    %177 = arith.maximumf %175, %176 : vector<16x128xf32>
    %178 = arith.truncf %177 : vector<16x128xf32> to vector<16x128xbf16>
    %c0_147 = arith.constant 0 : index
    %c1408_148 = arith.constant 1408 : index
    %179 = vector.load %arg14[%c0_147, %c1408_148] : memref<16x1536xbf16, #tpu.memory_space<vmem>>, vector<16x128xbf16>
    tpu.vector_store %arg14[%c0_147, %c1408_148], %178 {strides = array<i32>} : memref<16x1536xbf16, #tpu.memory_space<vmem>>, vector<16x128xbf16>,
    %c0_149 = arith.constant 0 : index
    %c0_150 = arith.constant 0 : index
    %180 = vector.load %arg14[%c0_149, %c0_150] : memref<16x1536xbf16, #tpu.memory_space<vmem>>, vector<16x640xbf16>
    %cst_151 = arith.constant dense<0.000000e+00> : vector<16x256xf32>
    %181 = tpu.matmul %180, %1, %cst_151 {dimension_numbers = #tpu.dot_dimension_numbers<[1], [0], [0], [1], [0, 0, 1, 1], [], []>} : vector<16x640xbf16>, vector<640x256xbf16>, vector<16x256xf32> -> vector<16x256xf32>
    %c0_152 = arith.constant 0 : index
    %c0_153 = arith.constant 0 : index
    %182 = vector.load %arg13[%c0_152, %c0_153] : memref<16x3072xf32, #tpu.memory_space<vmem>>, vector<16x256xf32>
    tpu.vector_store %arg13[%c0_152, %c0_153], %181 {strides = array<i32>} : memref<16x3072xf32, #tpu.memory_space<vmem>>, vector<16x256xf32>,
    %c0_154 = arith.constant 0 : index
    %c128_155 = arith.constant 128 : index
    %183 = vector.load %arg14[%c0_154, %c128_155] : memref<16x1536xbf16, #tpu.memory_space<vmem>>, vector<16x640xbf16>
    %cst_156 = arith.constant dense<0.000000e+00> : vector<16x256xf32>
    %184 = tpu.matmul %183, %1, %cst_156 {dimension_numbers = #tpu.dot_dimension_numbers<[1], [0], [0], [1], [0, 0, 1, 1], [], []>} : vector<16x640xbf16>, vector<640x256xbf16>, vector<16x256xf32> -> vector<16x256xf32>
    %c0_157 = arith.constant 0 : index
    %c256_158 = arith.constant 256 : index
    %185 = vector.load %arg13[%c0_157, %c256_158] : memref<16x3072xf32, #tpu.memory_space<vmem>>, vector<16x256xf32>
    tpu.vector_store %arg13[%c0_157, %c256_158], %184 {strides = array<i32>} : memref<16x3072xf32, #tpu.memory_space<vmem>>, vector<16x256xf32>,
    %c0_159 = arith.constant 0 : index
    %c256_160 = arith.constant 256 : index
    %186 = vector.load %arg14[%c0_159, %c256_160] : memref<16x1536xbf16, #tpu.memory_space<vmem>>, vector<16x640xbf16>
    %cst_161 = arith.constant dense<0.000000e+00> : vector<16x256xf32>
    %187 = tpu.matmul %186, %1, %cst_161 {dimension_numbers = #tpu.dot_dimension_numbers<[1], [0], [0], [1], [0, 0, 1, 1], [], []>} : vector<16x640xbf16>, vector<640x256xbf16>, vector<16x256xf32> -> vector<16x256xf32>
    %c0_162 = arith.constant 0 : index
    %c512_163 = arith.constant 512 : index
    %188 = vector.load %arg13[%c0_162, %c512_163] : memref<16x3072xf32, #tpu.memory_space<vmem>>, vector<16x256xf32>
    tpu.vector_store %arg13[%c0_162, %c512_163], %187 {strides = array<i32>} : memref<16x3072xf32, #tpu.memory_space<vmem>>, vector<16x256xf32>,
    %c0_164 = arith.constant 0 : index
    %c384_165 = arith.constant 384 : index
    %189 = vector.load %arg14[%c0_164, %c384_165] : memref<16x1536xbf16, #tpu.memory_space<vmem>>, vector<16x640xbf16>
    %cst_166 = arith.constant dense<0.000000e+00> : vector<16x256xf32>
    %190 = tpu.matmul %189, %1, %cst_166 {dimension_numbers = #tpu.dot_dimension_numbers<[1], [0], [0], [1], [0, 0, 1, 1], [], []>} : vector<16x640xbf16>, vector<640x256xbf16>, vector<16x256xf32> -> vector<16x256xf32>
    %c0_167 = arith.constant 0 : index
    %c768_168 = arith.constant 768 : index
    %191 = vector.load %arg13[%c0_167, %c768_168] : memref<16x3072xf32, #tpu.memory_space<vmem>>, vector<16x256xf32>
    tpu.vector_store %arg13[%c0_167, %c768_168], %190 {strides = array<i32>} : memref<16x3072xf32, #tpu.memory_space<vmem>>, vector<16x256xf32>,
    %c0_169 = arith.constant 0 : index
    %c512_170 = arith.constant 512 : index
    %192 = vector.load %arg14[%c0_169, %c512_170] : memref<16x1536xbf16, #tpu.memory_space<vmem>>, vector<16x640xbf16>
    %cst_171 = arith.constant dense<0.000000e+00> : vector<16x256xf32>
    %193 = tpu.matmul %192, %1, %cst_171 {dimension_numbers = #tpu.dot_dimension_numbers<[1], [0], [0], [1], [0, 0, 1, 1], [], []>} : vector<16x640xbf16>, vector<640x256xbf16>, vector<16x256xf32> -> vector<16x256xf32>
    %c0_172 = arith.constant 0 : index
    %c1024_173 = arith.constant 1024 : index
    %194 = vector.load %arg13[%c0_172, %c1024_173] : memref<16x3072xf32, #tpu.memory_space<vmem>>, vector<16x256xf32>
    tpu.vector_store %arg13[%c0_172, %c1024_173], %193 {strides = array<i32>} : memref<16x3072xf32, #tpu.memory_space<vmem>>, vector<16x256xf32>,
    %c0_174 = arith.constant 0 : index
    %c640_175 = arith.constant 640 : index
    %195 = vector.load %arg14[%c0_174, %c640_175] : memref<16x1536xbf16, #tpu.memory_space<vmem>>, vector<16x640xbf16>
    %cst_176 = arith.constant dense<0.000000e+00> : vector<16x256xf32>
    %196 = tpu.matmul %195, %1, %cst_176 {dimension_numbers = #tpu.dot_dimension_numbers<[1], [0], [0], [1], [0, 0, 1, 1], [], []>} : vector<16x640xbf16>, vector<640x256xbf16>, vector<16x256xf32> -> vector<16x256xf32>
    %c0_177 = arith.constant 0 : index
    %c1280_178 = arith.constant 1280 : index
    %197 = vector.load %arg13[%c0_177, %c1280_178] : memref<16x3072xf32, #tpu.memory_space<vmem>>, vector<16x256xf32>
    tpu.vector_store %arg13[%c0_177, %c1280_178], %196 {strides = array<i32>} : memref<16x3072xf32, #tpu.memory_space<vmem>>, vector<16x256xf32>,
    %c0_179 = arith.constant 0 : index
    %c768_180 = arith.constant 768 : index
    %198 = vector.load %arg14[%c0_179, %c768_180] : memref<16x1536xbf16, #tpu.memory_space<vmem>>, vector<16x640xbf16>
    %cst_181 = arith.constant dense<0.000000e+00> : vector<16x256xf32>
    %199 = tpu.matmul %198, %1, %cst_181 {dimension_numbers = #tpu.dot_dimension_numbers<[1], [0], [0], [1], [0, 0, 1, 1], [], []>} : vector<16x640xbf16>, vector<640x256xbf16>, vector<16x256xf32> -> vector<16x256xf32>
    %c0_182 = arith.constant 0 : index
    %c1536_183 = arith.constant 1536 : index
    %200 = vector.load %arg13[%c0_182, %c1536_183] : memref<16x3072xf32, #tpu.memory_space<vmem>>, vector<16x256xf32>
    tpu.vector_store %arg13[%c0_182, %c1536_183], %199 {strides = array<i32>} : memref<16x3072xf32, #tpu.memory_space<vmem>>, vector<16x256xf32>,
    %c0_184 = arith.constant 0 : index
    %c896_185 = arith.constant 896 : index
    %201 = vector.load %arg14[%c0_184, %c896_185] : memref<16x1536xbf16, #tpu.memory_space<vmem>>, vector<16x640xbf16>
    %cst_186 = arith.constant dense<0.000000e+00> : vector<16x256xf32>
    %202 = tpu.matmul %201, %1, %cst_186 {dimension_numbers = #tpu.dot_dimension_numbers<[1], [0], [0], [1], [0, 0, 1, 1], [], []>} : vector<16x640xbf16>, vector<640x256xbf16>, vector<16x256xf32> -> vector<16x256xf32>
    %c0_187 = arith.constant 0 : index
    %c1792_188 = arith.constant 1792 : index
    %203 = vector.load %arg13[%c0_187, %c1792_188] : memref<16x3072xf32, #tpu.memory_space<vmem>>, vector<16x256xf32>
    tpu.vector_store %arg13[%c0_187, %c1792_188], %202 {strides = array<i32>} : memref<16x3072xf32, #tpu.memory_space<vmem>>, vector<16x256xf32>,
    %c0_189 = arith.constant 0 : index
    %c0_190 = arith.constant 0 : index
    %204 = vector.load %arg13[%c0_189, %c0_190] : memref<16x3072xf32, #tpu.memory_space<vmem>>, vector<16x128xf32>
    %c0_191 = arith.constant 0 : index
    %c128_192 = arith.constant 128 : index
    %205 = vector.load %arg13[%c0_191, %c128_192] : memref<16x3072xf32, #tpu.memory_space<vmem>>, vector<16x128xf32>
    %206 = arith.maximumf %204, %205 : vector<16x128xf32>
    %c0_193 = arith.constant 0 : index
    %c256_194 = arith.constant 256 : index
    %207 = vector.load %arg13[%c0_193, %c256_194] : memref<16x3072xf32, #tpu.memory_space<vmem>>, vector<16x128xf32>
    %c0_195 = arith.constant 0 : index
    %c384_196 = arith.constant 384 : index
    %208 = vector.load %arg13[%c0_195, %c384_196] : memref<16x3072xf32, #tpu.memory_space<vmem>>, vector<16x128xf32>
    %209 = arith.maximumf %207, %208 : vector<16x128xf32>
    %210 = arith.maximumf %206, %209 : vector<16x128xf32>
    %211 = vector.broadcast %4 : vector<1x128xf32> to vector<16x128xf32>
    %212 = arith.addf %210, %211 : vector<16x128xf32>
    %cst_197 = arith.constant 0.000000e+00 : f32
    %213 = vector.broadcast %cst_197 : f32 to vector<16x128xf32>
    %214 = arith.maximumf %212, %213 : vector<16x128xf32>
    %215 = arith.truncf %214 : vector<16x128xf32> to vector<16x128xbf16>
    %c0_198 = arith.constant 0 : index
    %c0_199 = arith.constant 0 : index
    %216 = vector.load %arg15[%c0_198, %c0_199] : memref<16x512xbf16, #tpu.memory_space<vmem>>, vector<16x128xbf16>
    tpu.vector_store %arg15[%c0_198, %c0_199], %215 {strides = array<i32>} : memref<16x512xbf16, #tpu.memory_space<vmem>>, vector<16x128xbf16>,
    %c0_200 = arith.constant 0 : index
    %c512_201 = arith.constant 512 : index
    %217 = vector.load %arg13[%c0_200, %c512_201] : memref<16x3072xf32, #tpu.memory_space<vmem>>, vector<16x128xf32>
    %c0_202 = arith.constant 0 : index
    %c640_203 = arith.constant 640 : index
    %218 = vector.load %arg13[%c0_202, %c640_203] : memref<16x3072xf32, #tpu.memory_space<vmem>>, vector<16x128xf32>
    %219 = arith.maximumf %217, %218 : vector<16x128xf32>
    %c0_204 = arith.constant 0 : index
    %c768_205 = arith.constant 768 : index
    %220 = vector.load %arg13[%c0_204, %c768_205] : memref<16x3072xf32, #tpu.memory_space<vmem>>, vector<16x128xf32>
    %c0_206 = arith.constant 0 : index
    %c896_207 = arith.constant 896 : index
    %221 = vector.load %arg13[%c0_206, %c896_207] : memref<16x3072xf32, #tpu.memory_space<vmem>>, vector<16x128xf32>
    %222 = arith.maximumf %220, %221 : vector<16x128xf32>
    %223 = arith.maximumf %219, %222 : vector<16x128xf32>
    %224 = vector.broadcast %4 : vector<1x128xf32> to vector<16x128xf32>
    %225 = arith.addf %223, %224 : vector<16x128xf32>
    %cst_208 = arith.constant 0.000000e+00 : f32
    %226 = vector.broadcast %cst_208 : f32 to vector<16x128xf32>
    %227 = arith.maximumf %225, %226 : vector<16x128xf32>
    %228 = arith.truncf %227 : vector<16x128xf32> to vector<16x128xbf16>
    %c0_209 = arith.constant 0 : index
    %c128_210 = arith.constant 128 : index
    %229 = vector.load %arg15[%c0_209, %c128_210] : memref<16x512xbf16, #tpu.memory_space<vmem>>, vector<16x128xbf16>
    tpu.vector_store %arg15[%c0_209, %c128_210], %228 {strides = array<i32>} : memref<16x512xbf16, #tpu.memory_space<vmem>>, vector<16x128xbf16>,
    %c0_211 = arith.constant 0 : index
    %c1024_212 = arith.constant 1024 : index
    %230 = vector.load %arg13[%c0_211, %c1024_212] : memref<16x3072xf32, #tpu.memory_space<vmem>>, vector<16x128xf32>
    %c0_213 = arith.constant 0 : index
    %c1152_214 = arith.constant 1152 : index
    %231 = vector.load %arg13[%c0_213, %c1152_214] : memref<16x3072xf32, #tpu.memory_space<vmem>>, vector<16x128xf32>
    %232 = arith.maximumf %230, %231 : vector<16x128xf32>
    %c0_215 = arith.constant 0 : index
    %c1280_216 = arith.constant 1280 : index
    %233 = vector.load %arg13[%c0_215, %c1280_216] : memref<16x3072xf32, #tpu.memory_space<vmem>>, vector<16x128xf32>
    %c0_217 = arith.constant 0 : index
    %c1408_218 = arith.constant 1408 : index
    %234 = vector.load %arg13[%c0_217, %c1408_218] : memref<16x3072xf32, #tpu.memory_space<vmem>>, vector<16x128xf32>
    %235 = arith.maximumf %233, %234 : vector<16x128xf32>
    %236 = arith.maximumf %232, %235 : vector<16x128xf32>
    %237 = vector.broadcast %4 : vector<1x128xf32> to vector<16x128xf32>
    %238 = arith.addf %236, %237 : vector<16x128xf32>
    %cst_219 = arith.constant 0.000000e+00 : f32
    %239 = vector.broadcast %cst_219 : f32 to vector<16x128xf32>
    %240 = arith.maximumf %238, %239 : vector<16x128xf32>
    %241 = arith.truncf %240 : vector<16x128xf32> to vector<16x128xbf16>
    %c0_220 = arith.constant 0 : index
    %c256_221 = arith.constant 256 : index
    %242 = vector.load %arg15[%c0_220, %c256_221] : memref<16x512xbf16, #tpu.memory_space<vmem>>, vector<16x128xbf16>
    tpu.vector_store %arg15[%c0_220, %c256_221], %241 {strides = array<i32>} : memref<16x512xbf16, #tpu.memory_space<vmem>>, vector<16x128xbf16>,
    %c0_222 = arith.constant 0 : index
    %c1536_223 = arith.constant 1536 : index
    %243 = vector.load %arg13[%c0_222, %c1536_223] : memref<16x3072xf32, #tpu.memory_space<vmem>>, vector<16x128xf32>
    %c0_224 = arith.constant 0 : index
    %c1664_225 = arith.constant 1664 : index
    %244 = vector.load %arg13[%c0_224, %c1664_225] : memref<16x3072xf32, #tpu.memory_space<vmem>>, vector<16x128xf32>
    %245 = arith.maximumf %243, %244 : vector<16x128xf32>
    %c0_226 = arith.constant 0 : index
    %c1792_227 = arith.constant 1792 : index
    %246 = vector.load %arg13[%c0_226, %c1792_227] : memref<16x3072xf32, #tpu.memory_space<vmem>>, vector<16x128xf32>
    %c0_228 = arith.constant 0 : index
    %c1920_229 = arith.constant 1920 : index
    %247 = vector.load %arg13[%c0_228, %c1920_229] : memref<16x3072xf32, #tpu.memory_space<vmem>>, vector<16x128xf32>
    %248 = arith.maximumf %246, %247 : vector<16x128xf32>
    %249 = arith.maximumf %245, %248 : vector<16x128xf32>
    %250 = vector.broadcast %4 : vector<1x128xf32> to vector<16x128xf32>
    %251 = arith.addf %249, %250 : vector<16x128xf32>
    %cst_230 = arith.constant 0.000000e+00 : f32
    %252 = vector.broadcast %cst_230 : f32 to vector<16x128xf32>
    %253 = arith.maximumf %251, %252 : vector<16x128xf32>
    %254 = arith.truncf %253 : vector<16x128xf32> to vector<16x128xbf16>
    %c0_231 = arith.constant 0 : index
    %c384_232 = arith.constant 384 : index
    %255 = vector.load %arg15[%c0_231, %c384_232] : memref<16x512xbf16, #tpu.memory_space<vmem>>, vector<16x128xbf16>
    tpu.vector_store %arg15[%c0_231, %c384_232], %254 {strides = array<i32>} : memref<16x512xbf16, #tpu.memory_space<vmem>>, vector<16x128xbf16>,
    %c0_233 = arith.constant 0 : index
    %c0_234 = arith.constant 0 : index
    %256 = vector.load %arg15[%c0_233, %c0_234] : memref<16x512xbf16, #tpu.memory_space<vmem>>, vector<16x384xbf16>
    %cst_235 = arith.constant dense<0.000000e+00> : vector<16x128xf32>
    %257 = tpu.matmul %256, %2, %cst_235 {dimension_numbers = #tpu.dot_dimension_numbers<[1], [0], [0], [1], [0, 0, 1, 1], [], []>} : vector<16x384xbf16>, vector<384x128xbf16>, vector<16x128xf32> -> vector<16x128xf32>
    %c0_236 = arith.constant 0 : index
    %c128_237 = arith.constant 128 : index
    %258 = vector.load %arg15[%c0_236, %c128_237] : memref<16x512xbf16, #tpu.memory_space<vmem>>, vector<16x384xbf16>
    %cst_238 = arith.constant dense<0.000000e+00> : vector<16x128xf32>
    %259 = tpu.matmul %258, %2, %cst_238 {dimension_numbers = #tpu.dot_dimension_numbers<[1], [0], [0], [1], [0, 0, 1, 1], [], []>} : vector<16x384xbf16>, vector<384x128xbf16>, vector<16x128xf32> -> vector<16x128xf32>
    %260 = vector.broadcast %5 : vector<1x128xf32> to vector<16x128xf32>
    %261 = arith.addf %257, %260 : vector<16x128xf32>
    %cst_239 = arith.constant 0.000000e+00 : f32
    %262 = vector.broadcast %cst_239 : f32 to vector<16x128xf32>
    %263 = arith.maximumf %261, %262 : vector<16x128xf32>
    %264 = vector.broadcast %5 : vector<1x128xf32> to vector<16x128xf32>
    %265 = arith.addf %259, %264 : vector<16x128xf32>
    %cst_240 = arith.constant 0.000000e+00 : f32
    %266 = vector.broadcast %cst_240 : f32 to vector<16x128xf32>
    %267 = arith.maximumf %265, %266 : vector<16x128xf32>
    %268 = tpu.concatenate %263, %267 in 1 : vector<16x128xf32>, vector<16x128xf32> -> vector<16x256xf32>
    %269 = arith.truncf %268 : vector<16x256xf32> to vector<16x256xbf16>
    %c0_241 = arith.constant 0 : index
    %c0_242 = arith.constant 0 : index
    %270 = vector.load %arg8[%c0_241, %c0_242] : memref<256x128xbf16, #tpu.memory_space<vmem>>, vector<256x128xbf16>
    %cst_243 = arith.constant dense<0.000000e+00> : vector<16x128xf32>
    %271 = tpu.matmul %269, %270, %cst_243 {dimension_numbers = #tpu.dot_dimension_numbers<[1], [0], [0], [1], [0, 0, 1, 1], [], []>} : vector<16x256xbf16>, vector<256x128xbf16>, vector<16x128xf32> -> vector<16x128xf32>
    %c0_244 = arith.constant 0 : index
    %c0_245 = arith.constant 0 : index
    %272 = vector.load %arg9[%c0_244, %c0_245] : memref<1x128xf32, #tpu.memory_space<vmem>>, vector<1x128xf32>
    %273 = vector.broadcast %272 : vector<1x128xf32> to vector<16x128xf32>
    %274 = arith.addf %271, %273 : vector<16x128xf32>
    %cst_246 = arith.constant 0.000000e+00 : f32
    %275 = vector.broadcast %cst_246 : f32 to vector<16x128xf32>
    %276 = arith.maximumf %274, %275 : vector<16x128xf32>
    %277 = arith.truncf %276 : vector<16x128xf32> to vector<16x128xbf16>
    %c0_247 = arith.constant 0 : index
    %c0_248 = arith.constant 0 : index
    %278 = vector.load %arg10[%c0_247, %c0_248] : memref<128x128xbf16, #tpu.memory_space<vmem>>, vector<128x128xbf16>
    %cst_249 = arith.constant dense<0.000000e+00> : vector<16x128xf32>
    %279 = tpu.matmul %277, %278, %cst_249 {dimension_numbers = #tpu.dot_dimension_numbers<[1], [0], [0], [1], [0, 0, 1, 1], [], []>} : vector<16x128xbf16>, vector<128x128xbf16>, vector<16x128xf32> -> vector<16x128xf32>
    %c0_250 = arith.constant 0 : index
    %c0_251 = arith.constant 0 : index
    %280 = vector.load %arg11[%c0_250, %c0_251] : memref<1x128xf32, #tpu.memory_space<vmem>>, vector<1x128xf32>
    %281 = vector.broadcast %280 : vector<1x128xf32> to vector<16x128xf32>
    %282 = arith.addf %279, %281 : vector<16x128xf32>
    %cst_252 = arith.constant dense<0xFF800000> : vector<16xf32>
    %283 = vector.multi_reduction <maximumf>, %282, %cst_252 [1] : vector<16x128xf32> to vector<16xf32>
    %284 = vector.shape_cast %283 : vector<16xf32> to vector<16x1xf32>
    %285 = vector.broadcast %284 : vector<16x1xf32> to vector<16x128xf32>
    %286 = arith.subf %282, %285 : vector<16x128xf32>
    %287 = math.exp %286 : vector<16x128xf32>
    %cst_253 = arith.constant dense<0.000000e+00> : vector<16xf32>
    %288 = vector.multi_reduction <add>, %287, %cst_253 [1] : vector<16x128xf32> to vector<16xf32>
    %289 = vector.shape_cast %288 : vector<16xf32> to vector<16x1xf32>
    %290 = math.log %289 : vector<16x1xf32>
    %291 = vector.broadcast %290 : vector<16x1xf32> to vector<16x128xf32>
    %292 = arith.subf %286, %291 : vector<16x128xf32>
    %c0_254 = arith.constant 0 : index
    %c0_255 = arith.constant 0 : index
    %293 = vector.load %arg12[%c0_254, %c0_255] : memref<16x128xf32, #tpu.memory_space<vmem>>, vector<16x128xf32>
    tpu.vector_store %arg12[%c0_254, %c0_255], %292 {strides = array<i32>} : memref<16x128xf32, #tpu.memory_space<vmem>>, vector<16x128xf32>,
    return
  }
  func.func @transform_0(%arg0: i32) -> (i32, i32) {
    %c0_i32 = arith.constant 0 : i32
    %c0_i32_0 = arith.constant 0 : i32
    return %arg0, %c0_i32 : i32, i32
  }
  func.func @transform_1(%arg0: i32) -> (i32, i32) {
    %c0_i32 = arith.constant 0 : i32
    %c0_i32_0 = arith.constant 0 : i32
    %c0_i32_1 = arith.constant 0 : i32
    return %c0_i32, %c0_i32_0 : i32, i32
  }
  func.func @transform_2(%arg0: i32) -> (i32, i32) {
    %c0_i32 = arith.constant 0 : i32
    %c0_i32_0 = arith.constant 0 : i32
    %c0_i32_1 = arith.constant 0 : i32
    return %c0_i32, %c0_i32_0 : i32, i32
  }
  func.func @transform_3(%arg0: i32) -> (i32, i32) {
    %c0_i32 = arith.constant 0 : i32
    %c0_i32_0 = arith.constant 0 : i32
    %c0_i32_1 = arith.constant 0 : i32
    return %c0_i32, %c0_i32_0 : i32, i32
  }
  func.func @transform_4(%arg0: i32) -> (i32, i32) {
    %c0_i32 = arith.constant 0 : i32
    %c0_i32_0 = arith.constant 0 : i32
    %c0_i32_1 = arith.constant 0 : i32
    return %c0_i32, %c0_i32_0 : i32, i32
  }
  func.func @transform_5(%arg0: i32) -> (i32, i32) {
    %c0_i32 = arith.constant 0 : i32
    %c0_i32_0 = arith.constant 0 : i32
    %c0_i32_1 = arith.constant 0 : i32
    return %c0_i32, %c0_i32_0 : i32, i32
  }
  func.func @transform_6(%arg0: i32) -> (i32, i32) {
    %c0_i32 = arith.constant 0 : i32
    %c0_i32_0 = arith.constant 0 : i32
    %c0_i32_1 = arith.constant 0 : i32
    return %c0_i32, %c0_i32_0 : i32, i32
  }
  func.func @transform_7(%arg0: i32) -> (i32, i32) {
    %c0_i32 = arith.constant 0 : i32
    %c0_i32_0 = arith.constant 0 : i32
    %c0_i32_1 = arith.constant 0 : i32
    return %c0_i32, %c0_i32_0 : i32, i32
  }
  func.func @transform_8(%arg0: i32) -> (i32, i32) {
    %c0_i32 = arith.constant 0 : i32
    %c0_i32_0 = arith.constant 0 : i32
    %c0_i32_1 = arith.constant 0 : i32
    return %c0_i32, %c0_i32_0 : i32, i32
  }
  func.func @transform_9(%arg0: i32) -> (i32, i32) {
    %c0_i32 = arith.constant 0 : i32
    %c0_i32_0 = arith.constant 0 : i32
    %c0_i32_1 = arith.constant 0 : i32
    return %c0_i32, %c0_i32_0 : i32, i32
  }
  func.func @transform_10(%arg0: i32) -> (i32, i32) {
    %c0_i32 = arith.constant 0 : i32
    %c0_i32_0 = arith.constant 0 : i32
    %c0_i32_1 = arith.constant 0 : i32
    return %c0_i32, %c0_i32_0 : i32, i32
  }
  func.func @transform_11(%arg0: i32) -> (i32, i32) {
    %c0_i32 = arith.constant 0 : i32
    %c0_i32_0 = arith.constant 0 : i32
    return %arg0, %c0_i32 : i32, i32
  }
}

</mosaic_0001>

<llo_original>
// kernel: forward.1
$region0: #{forward.1}
  #allocation0 [shape = 'u32[]', space=smem, size = 0x4, offset = 0x4, fixed_abs, tag = 'smem constant byte address 0x4 - core index']
  #allocation1 [shape = 'u32[144,128]{1,0:T(1,128)}', space=vmem, size = 0x12000, scoped, tag = 'internal scratch']
  #allocation2 [shape = 'f32[16,3072]{1,0:T(8,128)}', space=vmem, size = 0x30000, scoped, tag = 'scratch operand']
  #allocation3 [shape = 'bf16[16,1536]{1,0:T(8,128)(2,1)}', space=vmem, size = 0xc000, scoped, tag = 'scratch operand']
  #allocation4 [shape = 'bf16[16,512]{1,0:T(8,128)(2,1)}', space=vmem, size = 0x4000, scoped, tag = 'scratch operand']
  %s0 = inlined_call_operand.vmem [shape: bf16[32,896], index: 0, kind: input, shape index: {}]
  %s1 = inlined_call_operand.vmem [shape: bf16[256,1024], index: 1, kind: input, shape index: {}]
  %s2 = inlined_call_operand.vmem [shape: f32[1,128], index: 2, kind: input, shape index: {}]
  %s3 = inlined_call_operand.hbm [shape: bf16[640,256], index: 3, kind: input, shape index: {}]
  %s4 = inlined_call_operand.vmem [shape: f32[1,128], index: 4, kind: input, shape index: {}]
  %s5 = inlined_call_operand.hbm [shape: bf16[384,128], index: 5, kind: input, shape index: {}]
  %s6 = inlined_call_operand.vmem [shape: f32[1,128], index: 6, kind: input, shape index: {}]
  %s7 = inlined_call_operand.vmem [shape: bf16[256,128], index: 7, kind: input, shape index: {}]
  %s8 = inlined_call_operand.vmem [shape: f32[1,128], index: 8, kind: input, shape index: {}]
  %s9 = inlined_call_operand.hbm [shape: bf16[128,128], index: 9, kind: input, shape index: {}]
  %s10 = inlined_call_operand.vmem [shape: f32[1,128], index: 10, kind: input, shape index: {}]
  %s11 = inlined_call_operand.vmem [shape: f32[32,128], index: 11, kind: output, shape index: {}]
  %s12 = sld [smem:[#allocation0]]
  $region89: #{forward.1} parent=0
    _
  %s14 = ssub.s32 1, %s12
  %s15 = scalar_select 0, %s14, %s12
  $region1: #{forward.1} parent=0
    #allocation5 [shape = 'u8[327680]{0}', space=vmem, size = 0x50000, scoped, tag = 'input window, operand 3, single buffered']
    #allocation6 [shape = 's32[2]{0}', space=sflag, size = 0x8, scoped, tag = 'scoped memory for forward.1']
    #allocation7 [shape = 'u8[98304]{0}', space=vmem, size = 0x18000, scoped, tag = 'input window, operand 5, single buffered']
    #allocation8 [shape = 's32[1]{0}', space=sflag, size = 0x4, scoped, tag = 'scoped memory for forward.1']
    #allocation9 [shape = 'u8[32768]{0}', space=vmem, size = 0x8000, scoped, tag = 'input window, operand 9, single buffered']
    %16 = vsyncpa [#allocation6], 0
    %17 = vsyncpa [#allocation8], 0
    loop: start=0, step=1, limit=4
    $region2: #{forward.1} parent=1 // loop_pre_header
      _
    $region3: #{forward.1} parent=1 // loop_header
      %s19 = sphi 0, %s23
      %p20 = scmp.ge.s32.totalorder %s19, 4
      %s29 = sphi 0, %s31
      %s32 = sphi 0, %s29
      %s33 = sphi 0, %s32
      %s49 = sphi 0, %s33
      %s53 = sphi 0, %s53
      %s55 = sphi 0, %s53
      %s56 = sphi 0, %s55
      %s70 = sphi 0, %s56
      %s74 = sphi 0, %s74
      %s76 = sphi 0, %s74
      %s77 = sphi 0, %s76
      %s91 = sphi 0, %s77
      %s95 = sphi 0, %s95
      %s97 = sphi 0, %s95
      %s98 = sphi 0, %s97
      %s112 = sphi 0, %s98
      %s116 = sphi 0, %s116
      %s118 = sphi 0, %s116
      %s119 = sphi 0, %s118
      %s133 = sphi 0, %s119
      %s137 = sphi 0, %s137
      %s139 = sphi 0, %s137
      %s140 = sphi 0, %s139
      %s154 = sphi 0, %s140
      %s158 = sphi 0, %s158
      %s160 = sphi 0, %s158
      %s161 = sphi 0, %s160
      %s175 = sphi 0, %s161
      %s179 = sphi 0, %s179
      %s181 = sphi 0, %s179
      %s182 = sphi 0, %s181
      %s196 = sphi 0, %s182
      %s200 = sphi 0, %s200
      %s202 = sphi 0, %s200
      %s203 = sphi 0, %s202
      %s217 = sphi 0, %s203
      %s221 = sphi 0, %s221
      %s223 = sphi 0, %s221
      %s224 = sphi 0, %s223
      %s238 = sphi 0, %s224
      %s242 = sphi 0, %s242
      %s244 = sphi 0, %s242
      %s245 = sphi 0, %s244
      %s259 = sphi 0, %s245
      %s265 = sphi 0, %s267
      %s268 = sphi 0, %s265
      %s269 = sphi 0, %s268
      %s285 = sphi 0, %s269
    $region4: #{forward.1} parent=1 // loop_header_branch
      %22 = sbr.rel (%p20) target = $region8
    $region5: #{forward.1} parent=1 // loop_body
      %s24 = ssub.s32 %s19, 1
      %s25 = ssub.s32 %s19, 2
      %s26 = sadd.s32 %s19, 1
      %s27 = ssub.s32 %s19, %s26
      %p28 = scmp.eq.s32.totalorder %s27, 0
      %s30 = sadd.s32 %s29, 1
      %s31 = scalar_select %p28, %s29, %s30
      %p34 = pneg %p28
      %p35 = scmp.eq.s32.totalorder %s19, 1
      %p36 = por %p34, %p35
      %p37 = scmp.ne.s32.totalorder %s29, %s32
      %p38 = scmp.eq.s32.totalorder %s19, 0
      %p39 = por %p37, %p38
      %p40 = scmp.ne.s32.totalorder %s29, %s32
      %p41 = scmp.eq.s32.totalorder %s24, 1
      %p42 = por %p40, %p41
      %p43 = scmp.ne.s32.totalorder %s32, %s33
      %p44 = scmp.eq.s32.totalorder %s24, 0
      %p45 = por %p43, %p44
      %p46 = scmp.ne.s32.totalorder %s32, %s33
      %p47 = scmp.eq.s32.totalorder %s25, 1
      %p48 = por %p46, %p47
      %p50 = scmp.ne.s32.totalorder %s33, %s49
      %p51 = scmp.eq.s32.totalorder %s25, 0
      %p52 = por %p50, %p51
      %s54 = sadd.s32 %s53, 1
      %p57 = scmp.eq.s32.totalorder %s19, 1
      %p58 = scmp.ne.s32.totalorder %s53, %s55
      %p59 = scmp.eq.s32.totalorder %s19, 0
      %p60 = por %p58, %p59
      %p61 = scmp.ne.s32.totalorder %s53, %s55
      %p62 = scmp.eq.s32.totalorder %s24, 1
      %p63 = por %p61, %p62
      %p64 = scmp.ne.s32.totalorder %s55, %s56
      %p65 = scmp.eq.s32.totalorder %s24, 0
      %p66 = por %p64, %p65
      %p67 = scmp.ne.s32.totalorder %s55, %s56
      %p68 = scmp.eq.s32.totalorder %s25, 1
      %p69 = por %p67, %p68
      %p71 = scmp.ne.s32.totalorder %s56, %s70
      %p72 = scmp.eq.s32.totalorder %s25, 0
      %p73 = por %p71, %p72
      %s75 = sadd.s32 %s74, 1
      %p78 = scmp.eq.s32.totalorder %s19, 1
      %p79 = scmp.ne.s32.totalorder %s74, %s76
      %p80 = scmp.eq.s32.totalorder %s19, 0
      %p81 = por %p79, %p80
      %p82 = scmp.ne.s32.totalorder %s74, %s76
      %p83 = scmp.eq.s32.totalorder %s24, 1
      %p84 = por %p82, %p83
      %p85 = scmp.ne.s32.totalorder %s76, %s77
      %p86 = scmp.eq.s32.totalorder %s24, 0
      %p87 = por %p85, %p86
      %p88 = scmp.ne.s32.totalorder %s76, %s77
      %p89 = scmp.eq.s32.totalorder %s25, 1
      %p90 = por %p88, %p89
      %p92 = scmp.ne.s32.totalorder %s77, %s91
      %p93 = scmp.eq.s32.totalorder %s25, 0
      %p94 = por %p92, %p93
      %s96 = sadd.s32 %s95, 1
      %p99 = scmp.eq.s32.totalorder %s19, 1
      %p100 = scmp.ne.s32.totalorder %s95, %s97
      %p101 = scmp.eq.s32.totalorder %s19, 0
      %p102 = por %p100, %p101
      %p103 = scmp.ne.s32.totalorder %s95, %s97
      %p104 = scmp.eq.s32.totalorder %s24, 1
      %p105 = por %p103, %p104
      %p106 = scmp.ne.s32.totalorder %s97, %s98
      %p107 = scmp.eq.s32.totalorder %s24, 0
      %p108 = por %p106, %p107
      %p109 = scmp.ne.s32.totalorder %s97, %s98
      %p110 = scmp.eq.s32.totalorder %s25, 1
      %p111 = por %p109, %p110
      %p113 = scmp.ne.s32.totalorder %s98, %s112
      %p114 = scmp.eq.s32.totalorder %s25, 0
      %p115 = por %p113, %p114
      %s117 = sadd.s32 %s116, 1
      %p120 = scmp.eq.s32.totalorder %s19, 1
      %p121 = scmp.ne.s32.totalorder %s116, %s118
      %p122 = scmp.eq.s32.totalorder %s19, 0
      %p123 = por %p121, %p122
      %p124 = scmp.ne.s32.totalorder %s116, %s118
      %p125 = scmp.eq.s32.totalorder %s24, 1
      %p126 = por %p124, %p125
      %p127 = scmp.ne.s32.totalorder %s118, %s119
      %p128 = scmp.eq.s32.totalorder %s24, 0
      %p129 = por %p127, %p128
      %p130 = scmp.ne.s32.totalorder %s118, %s119
      %p131 = scmp.eq.s32.totalorder %s25, 1
      %p132 = por %p130, %p131
      %p134 = scmp.ne.s32.totalorder %s119, %s133
      %p135 = scmp.eq.s32.totalorder %s25, 0
      %p136 = por %p134, %p135
      %s138 = sadd.s32 %s137, 1
      %p141 = scmp.eq.s32.totalorder %s19, 1
      %p142 = scmp.ne.s32.totalorder %s137, %s139
      %p143 = scmp.eq.s32.totalorder %s19, 0
      %p144 = por %p142, %p143
      %p145 = scmp.ne.s32.totalorder %s137, %s139
      %p146 = scmp.eq.s32.totalorder %s24, 1
      %p147 = por %p145, %p146
      %p148 = scmp.ne.s32.totalorder %s139, %s140
      %p149 = scmp.eq.s32.totalorder %s24, 0
      %p150 = por %p148, %p149
      %p151 = scmp.ne.s32.totalorder %s139, %s140
      %p152 = scmp.eq.s32.totalorder %s25, 1
      %p153 = por %p151, %p152
      %p155 = scmp.ne.s32.totalorder %s140, %s154
      %p156 = scmp.eq.s32.totalorder %s25, 0
      %p157 = por %p155, %p156
      %s159 = sadd.s32 %s158, 1
      %p162 = scmp.eq.s32.totalorder %s19, 1
      %p163 = scmp.ne.s32.totalorder %s158, %s160
      %p164 = scmp.eq.s32.totalorder %s19, 0
      %p165 = por %p163, %p164
      %p166 = scmp.ne.s32.totalorder %s158, %s160
      %p167 = scmp.eq.s32.totalorder %s24, 1
      %p168 = por %p166, %p167
      %p169 = scmp.ne.s32.totalorder %s160, %s161
      %p170 = scmp.eq.s32.totalorder %s24, 0
      %p171 = por %p169, %p170
      %p172 = scmp.ne.s32.totalorder %s160, %s161
      %p173 = scmp.eq.s32.totalorder %s25, 1
      %p174 = por %p172, %p173
      %p176 = scmp.ne.s32.totalorder %s161, %s175
      %p177 = scmp.eq.s32.totalorder %s25, 0
      %p178 = por %p176, %p177
      %s180 = sadd.s32 %s179, 1
      %p183 = scmp.eq.s32.totalorder %s19, 1
      %p184 = scmp.ne.s32.totalorder %s179, %s181
      %p185 = scmp.eq.s32.totalorder %s19, 0
      %p186 = por %p184, %p185
      %p187 = scmp.ne.s32.totalorder %s179, %s181
      %p188 = scmp.eq.s32.totalorder %s24, 1
      %p189 = por %p187, %p188
      %p190 = scmp.ne.s32.totalorder %s181, %s182
      %p191 = scmp.eq.s32.totalorder %s24, 0
      %p192 = por %p190, %p191
      %p193 = scmp.ne.s32.totalorder %s181, %s182
      %p194 = scmp.eq.s32.totalorder %s25, 1
      %p195 = por %p193, %p194
      %p197 = scmp.ne.s32.totalorder %s182, %s196
      %p198 = scmp.eq.s32.totalorder %s25, 0
      %p199 = por %p197, %p198
      %s201 = sadd.s32 %s200, 1
      %p204 = scmp.eq.s32.totalorder %s19, 1
      %p205 = scmp.ne.s32.totalorder %s200, %s202
      %p206 = scmp.eq.s32.totalorder %s19, 0
      %p207 = por %p205, %p206
      %p208 = scmp.ne.s32.totalorder %s200, %s202
      %p209 = scmp.eq.s32.totalorder %s24, 1
      %p210 = por %p208, %p209
      %p211 = scmp.ne.s32.totalorder %s202, %s203
      %p212 = scmp.eq.s32.totalorder %s24, 0
      %p213 = por %p211, %p212
      %p214 = scmp.ne.s32.totalorder %s202, %s203
      %p215 = scmp.eq.s32.totalorder %s25, 1
      %p216 = por %p214, %p215
      %p218 = scmp.ne.s32.totalorder %s203, %s217
      %p219 = scmp.eq.s32.totalorder %s25, 0
      %p220 = por %p218, %p219
      %s222 = sadd.s32 %s221, 1
      %p225 = scmp.eq.s32.totalorder %s19, 1
      %p226 = scmp.ne.s32.totalorder %s221, %s223
      %p227 = scmp.eq.s32.totalorder %s19, 0
      %p228 = por %p226, %p227
      %p229 = scmp.ne.s32.totalorder %s221, %s223
      %p230 = scmp.eq.s32.totalorder %s24, 1
      %p231 = por %p229, %p230
      %p232 = scmp.ne.s32.totalorder %s223, %s224
      %p233 = scmp.eq.s32.totalorder %s24, 0
      %p234 = por %p232, %p233
      %p235 = scmp.ne.s32.totalorder %s223, %s224
      %p236 = scmp.eq.s32.totalorder %s25, 1
      %p237 = por %p235, %p236
      %p239 = scmp.ne.s32.totalorder %s224, %s238
      %p240 = scmp.eq.s32.totalorder %s25, 0
      %p241 = por %p239, %p240
      %s243 = sadd.s32 %s242, 1
      %p246 = scmp.eq.s32.totalorder %s19, 1
      %p247 = scmp.ne.s32.totalorder %s242, %s244
      %p248 = scmp.eq.s32.totalorder %s19, 0
      %p249 = por %p247, %p248
      %p250 = scmp.ne.s32.totalorder %s242, %s244
      %p251 = scmp.eq.s32.totalorder %s24, 1
      %p252 = por %p250, %p251
      %p253 = scmp.ne.s32.totalorder %s244, %s245
      %p254 = scmp.eq.s32.totalorder %s24, 0
      %p255 = por %p253, %p254
      %p256 = scmp.ne.s32.totalorder %s244, %s245
      %p257 = scmp.eq.s32.totalorder %s25, 1
      %p258 = por %p256, %p257
      %p260 = scmp.ne.s32.totalorder %s245, %s259
      %p261 = scmp.eq.s32.totalorder %s25, 0
      %p262 = por %p260, %p261
      %s263 = ssub.s32 %s19, %s26
      %p264 = scmp.eq.s32.totalorder %s263, 0
      %s266 = sadd.s32 %s265, 1
      %s267 = scalar_select %p264, %s265, %s266
      %p270 = pneg %p264
      %p271 = scmp.eq.s32.totalorder %s19, 1
      %p272 = por %p270, %p271
      %p273 = scmp.ne.s32.totalorder %s265, %s268
      %p274 = scmp.eq.s32.totalorder %s19, 0
      %p275 = por %p273, %p274
      %p276 = scmp.ne.s32.totalorder %s265, %s268
      %p277 = scmp.eq.s32.totalorder %s24, 1
      %p278 = por %p276, %p277
      %p279 = scmp.ne.s32.totalorder %s268, %s269
      %p280 = scmp.eq.s32.totalorder %s24, 0
      %p281 = por %p279, %p280
      %p282 = scmp.ne.s32.totalorder %s268, %s269
      %p283 = scmp.eq.s32.totalorder %s25, 1
      %p284 = por %p282, %p283
      %p286 = scmp.ne.s32.totalorder %s269, %s285
      %p287 = scmp.eq.s32.totalorder %s25, 0
      %p288 = por %p286, %p287
      %p289 = scmp.le.s32.totalorder 1, %s19
      %p290 = scmp.lt.s32.totalorder %s19, 3
      %p291 = pnand %p289, %p290
      %p292 = pneg %p291
      // Predicated region
      $region9: #{forward.1} parent=5 // pred_check
        _
      $region10: #{forward.1} parent=5 // pred_check_branch
        %294 = sbr.rel (%p291) target = $region12
      $region11: #{forward.1} parent=5 // pred_region
        %s295 = ssub.s32 %s19, 1
        // Predicated region
        $region13: #{forward.1} parent=11 // pred_check
          %p296 = pneg %p66
        $region14: #{forward.1} parent=11 // pred_check_branch
          %298 = sbr.rel (%p296) target = $region16
        $region15: #{forward.1} parent=11 // pred_region
          _
        $region16: #{forward.1} parent=11 // pred_fallthru
          _
        // Predicated region
        $region17: #{forward.1} parent=11 // pred_check
          %p299 = pneg %p87
        $region18: #{forward.1} parent=11 // pred_check_branch
          %301 = sbr.rel (%p299) target = $region20
        $region19: #{forward.1} parent=11 // pred_region
          _
        $region20: #{forward.1} parent=11 // pred_fallthru
          _
        // Predicated region
        $region21: #{forward.1} parent=11 // pred_check
          %p302 = pneg %p108
        $region22: #{forward.1} parent=11 // pred_check_branch
          %304 = sbr.rel (%p302) target = $region24
        $region23: #{forward.1} parent=11 // pred_region
          %s306 = ssub.s32 10240, 10240
          %307 = vsyncadd [#allocation6], %s306
          %s308 = sshll.u32 [#allocation5], 4
          %s309 = int_to_ptr.vmem [resolvable:$true] %s308
          %314 = dma.hbm_to_vmem [thread:$0]  %s3, 10240, %s309, [#allocation6], 128, 128, 8
        $region24: #{forward.1} parent=11 // pred_fallthru
          _
        // Predicated region
        $region25: #{forward.1} parent=11 // pred_check
          %p315 = pneg %p129
        $region26: #{forward.1} parent=11 // pred_check_branch
          %317 = sbr.rel (%p315) target = $region28
        $region27: #{forward.1} parent=11 // pred_region
          _
        $region28: #{forward.1} parent=11 // pred_fallthru
          _
        // Predicated region
        $region29: #{forward.1} parent=11 // pred_check
          %p318 = pneg %p150
        $region30: #{forward.1} parent=11 // pred_check_branch
          %320 = sbr.rel (%p318) target = $region32
        $region31: #{forward.1} parent=11 // pred_region
          %s322 = ssub.s32 3072, 3072
          %323 = vsyncadd [#allocation8], %s322
          %s324 = sshll.u32 [#allocation7], 4
          %s325 = int_to_ptr.vmem [resolvable:$true] %s324
          %330 = dma.hbm_to_vmem [thread:$0]  %s5, 3072, %s325, [#allocation8], 64, 64, 4
        $region32: #{forward.1} parent=11 // pred_fallthru
          _
        // Predicated region
        $region33: #{forward.1} parent=11 // pred_check
          %p331 = pneg %p171
        $region34: #{forward.1} parent=11 // pred_check_branch
          %333 = sbr.rel (%p331) target = $region36
        $region35: #{forward.1} parent=11 // pred_region
          _
        $region36: #{forward.1} parent=11 // pred_fallthru
          _
        // Predicated region
        $region37: #{forward.1} parent=11 // pred_check
          %p334 = pneg %p192
        $region38: #{forward.1} parent=11 // pred_check_branch
          %336 = sbr.rel (%p334) target = $region40
        $region39: #{forward.1} parent=11 // pred_region
          _
        $region40: #{forward.1} parent=11 // pred_fallthru
          _
        // Predicated region
        $region41: #{forward.1} parent=11 // pred_check
          %p337 = pneg %p213
        $region42: #{forward.1} parent=11 // pred_check_branch
          %339 = sbr.rel (%p337) target = $region44
        $region43: #{forward.1} parent=11 // pred_region
          _
        $region44: #{forward.1} parent=11 // pred_fallthru
          _
        // Predicated region
        $region45: #{forward.1} parent=11 // pred_check
          %p340 = pneg %p234
        $region46: #{forward.1} parent=11 // pred_check_branch
          %342 = sbr.rel (%p340) target = $region48
        $region47: #{forward.1} parent=11 // pred_region
          %s344 = ssub.s32 1024, 1024
          %345 = vsyncadd [#allocation8], %s344
          %s346 = sshll.u32 [#allocation9], 4
          %s347 = int_to_ptr.vmem [resolvable:$true] %s346
          %352 = dma.hbm_to_vmem [thread:$0]  %s9, 1024, %s347, [#allocation8], 64, 64, 4
        $region48: #{forward.1} parent=11 // pred_fallthru
          _
        // Predicated region
        $region49: #{forward.1} parent=11 // pred_check
          %p353 = pneg %p255
        $region50: #{forward.1} parent=11 // pred_check_branch
          %355 = sbr.rel (%p353) target = $region52
        $region51: #{forward.1} parent=11 // pred_region
          _
        $region52: #{forward.1} parent=11 // pred_fallthru
          _
      $region12: #{forward.1} parent=5 // pred_fallthru
        _
      %p356 = scmp.lt.s32.totalorder %s19, 2
      // Predicated region
      $region53: #{forward.1} parent=5 // pred_check
        %p357 = pneg %p356
      $region54: #{forward.1} parent=5 // pred_check_branch
        %359 = sbr.rel (%p357) target = $region56
      $region55: #{forward.1} parent=5 // pred_region
        // Predicated region
        $region57: #{forward.1} parent=55 // pred_check
          %p360 = pneg %p39
        $region58: #{forward.1} parent=55 // pred_check_branch
          %362 = sbr.rel (%p360) target = $region60
        $region59: #{forward.1} parent=55 // pred_region
          %s363 = smul.u32 2, %s19
          %p364 = scmp.lt.s32.totalorder %s363, 3
          %s365 = scalar_select %p364, %s363, 3
          %s366 = smul.addr %s365, 7
          %s367 = smul.addr %s366, 4
          %s368 = scalar_lea.vmem %s0, %s367
          %s369 = smul.u32 2, %s19
        $region60: #{forward.1} parent=55 // pred_fallthru
          _
      $region56: #{forward.1} parent=5 // pred_fallthru
        _
      %p370 = scmp.le.s32.totalorder 1, %s19
      %p371 = scmp.lt.s32.totalorder %s19, 3
      %p372 = pnand %p370, %p371
      %p373 = pneg %p372
      // Predicated region
      $region61: #{forward.1} parent=5 // pred_check
        _
      $region62: #{forward.1} parent=5 // pred_check_branch
        %375 = sbr.rel (%p372) target = $region64
      $region63: #{forward.1} parent=5 // pred_region
        %s376 = ssub.s32 %s19, 1
        // Predicated region
        $region65: #{forward.1} parent=63 // pred_check
          %p377 = pneg %p108
        $region66: #{forward.1} parent=63 // pred_check_branch
          %379 = sbr.rel (%p377) target = $region68
        $region67: #{forward.1} parent=63 // pred_region
          %380 = dma.done [#allocation6], 10240
        $region68: #{forward.1} parent=63 // pred_fallthru
          _
        // Predicated region
        $region69: #{forward.1} parent=63 // pred_check
          %p381 = pneg %p150
        $region70: #{forward.1} parent=63 // pred_check_branch
          %383 = sbr.rel (%p381) target = $region72
        $region71: #{forward.1} parent=63 // pred_region
          %384 = dma.done [#allocation8], 3072
        $region72: #{forward.1} parent=63 // pred_fallthru
          _
        // Predicated region
        $region73: #{forward.1} parent=63 // pred_check
          %p385 = pneg %p234
        $region74: #{forward.1} parent=63 // pred_check_branch
          %387 = sbr.rel (%p385) target = $region76
        $region75: #{forward.1} parent=63 // pred_region
          %388 = dma.done [#allocation8], 1024
        $region76: #{forward.1} parent=63 // pred_fallthru
          _
        %s389 = smul.u32 2, %s24
        %p390 = scmp.lt.s32.totalorder %s389, 3
        %s391 = scalar_select %p390, %s389, 3
        %s392 = smul.addr %s391, 7
        %s393 = smul.addr %s392, 4
        %s394 = scalar_lea.vmem %s0, %s393
        %p395 = pneg %p45
        %p396 = pneg %p42
        %p397 = pneg %p66
        %p398 = pneg %p63
        %p399 = pneg %p87
        %p400 = pneg %p84
        %p401 = pneg %p108
        %p402 = pneg %p105
        %p403 = pneg %p129
        %p404 = pneg %p126
        %p405 = pneg %p150
        %p406 = pneg %p147
        %p407 = pneg %p171
        %p408 = pneg %p168
        %p409 = pneg %p192
        %p410 = pneg %p189
        %p411 = pneg %p213
        %p412 = pneg %p210
        %p413 = pneg %p234
        %p414 = pneg %p231
        %p415 = pneg %p255
        %p416 = pneg %p252
        %p417 = pneg %p281
        %p418 = pneg %p278
        %s419 = smul.u32 2, %s24
        %p420 = scmp.lt.s32.totalorder %s419, 3
        %s421 = scalar_select %p420, %s419, 3
        %s422 = smul.addr %s421, 8
        %s423 = scalar_lea.vmem %s11, %s422
        %s424 = smul.u32 2, %s24
        %p425 = scmp.lt.s32.totalorder %s424, 3
        %s426 = scalar_select %p425, %s424, 3
        %s427 = smul.addr %s426, 7
        %s428 = smul.addr %s427, 4
        %s429 = scalar_lea.vmem %s0, %s428
        %s430 = smul.u32 2, %s24
        %s431 = smul.u32 2, %s24
        %p432 = scmp.lt.s32.totalorder %s431, 3
        %s433 = scalar_select %p432, %s431, 3
        %s434 = smul.addr %s433, 8
        %s435 = scalar_lea.vmem %s11, %s434
        %s436 = smul.u32 2, %s24
        %v438 = vld [vmem:[%s1] sm:$0xff]
        %v439 = vld [vmem:[%s1 + $0x8] sm:$0xff]
        %v440 = vld [vmem:[%s1 + $0x10] sm:$0xff]
        %v441 = vld [vmem:[%s1 + $0x18] sm:$0xff]
        %v442 = vld [vmem:[%s1 + $0x20] sm:$0xff]
        %v443 = vld [vmem:[%s1 + $0x28] sm:$0xff]
        %v444 = vld [vmem:[%s1 + $0x30] sm:$0xff]
        %v445 = vld [vmem:[%s1 + $0x38] sm:$0xff]
        %v446 = vld [vmem:[%s1 + $0x40] sm:$0xff]
        %v447 = vld [vmem:[%s1 + $0x48] sm:$0xff]
        %v448 = vld [vmem:[%s1 + $0x50] sm:$0xff]
        %v449 = vld [vmem:[%s1 + $0x58] sm:$0xff]
        %v450 = vld [vmem:[%s1 + $0x60] sm:$0xff]
        %v451 = vld [vmem:[%s1 + $0x68] sm:$0xff]
        %v452 = vld [vmem:[%s1 + $0x70] sm:$0xff]
        %v453 = vld [vmem:[%s1 + $0x78] sm:$0xff]
        %v454 = vld [vmem:[%s1 + $0x80] sm:$0xff]
        %v455 = vld [vmem:[%s1 + $0x88] sm:$0xff]
        %v456 = vld [vmem:[%s1 + $0x90] sm:$0xff]
        %v457 = vld [vmem:[%s1 + $0x98] sm:$0xff]
        %v458 = vld [vmem:[%s1 + $0xa0] sm:$0xff]
        %v459 = vld [vmem:[%s1 + $0xa8] sm:$0xff]
        %v460 = vld [vmem:[%s1 + $0xb0] sm:$0xff]
        %v461 = vld [vmem:[%s1 + $0xb8] sm:$0xff]
        %v462 = vld [vmem:[%s1 + $0xc0] sm:$0xff]
        %v463 = vld [vmem:[%s1 + $0xc8] sm:$0xff]
        %v464 = vld [vmem:[%s1 + $0xd0] sm:$0xff]
        %v465 = vld [vmem:[%s1 + $0xd8] sm:$0xff]
        %v466 = vld [vmem:[%s1 + $0xe0] sm:$0xff]
        %v467 = vld [vmem:[%s1 + $0xe8] sm:$0xff]
        %v468 = vld [vmem:[%s1 + $0xf0] sm:$0xff]
        %v469 = vld [vmem:[%s1 + $0xf8] sm:$0xff]
        %v470 = vld [vmem:[%s1 + $0x100] sm:$0xff]
        %v471 = vld [vmem:[%s1 + $0x108] sm:$0xff]
        %v472 = vld [vmem:[%s1 + $0x110] sm:$0xff]
        %v473 = vld [vmem:[%s1 + $0x118] sm:$0xff]
        %v474 = vld [vmem:[%s1 + $0x120] sm:$0xff]
        %v475 = vld [vmem:[%s1 + $0x128] sm:$0xff]
        %v476 = vld [vmem:[%s1 + $0x130] sm:$0xff]
        %v477 = vld [vmem:[%s1 + $0x138] sm:$0xff]
        %v478 = vld [vmem:[%s1 + $0x140] sm:$0xff]
        %v479 = vld [vmem:[%s1 + $0x148] sm:$0xff]
        %v480 = vld [vmem:[%s1 + $0x150] sm:$0xff]
        %v481 = vld [vmem:[%s1 + $0x158] sm:$0xff]
        %v482 = vld [vmem:[%s1 + $0x160] sm:$0xff]
        %v483 = vld [vmem:[%s1 + $0x168] sm:$0xff]
        %v484 = vld [vmem:[%s1 + $0x170] sm:$0xff]
        %v485 = vld [vmem:[%s1 + $0x178] sm:$0xff]
        %v486 = vld [vmem:[%s1 + $0x180] sm:$0xff]
        %v487 = vld [vmem:[%s1 + $0x188] sm:$0xff]
        %v488 = vld [vmem:[%s1 + $0x190] sm:$0xff]
        %v489 = vld [vmem:[%s1 + $0x198] sm:$0xff]
        %v490 = vld [vmem:[%s1 + $0x1a0] sm:$0xff]
        %v491 = vld [vmem:[%s1 + $0x1a8] sm:$0xff]
        %v492 = vld [vmem:[%s1 + $0x1b0] sm:$0xff]
        %v493 = vld [vmem:[%s1 + $0x1b8] sm:$0xff]
        %v494 = vld [vmem:[%s1 + $0x1c0] sm:$0xff]
        %v495 = vld [vmem:[%s1 + $0x1c8] sm:$0xff]
        %v496 = vld [vmem:[%s1 + $0x1d0] sm:$0xff]
        %v497 = vld [vmem:[%s1 + $0x1d8] sm:$0xff]
        %v498 = vld [vmem:[%s1 + $0x1e0] sm:$0xff]
        %v499 = vld [vmem:[%s1 + $0x1e8] sm:$0xff]
        %v500 = vld [vmem:[%s1 + $0x1f0] sm:$0xff]
        %v501 = vld [vmem:[%s1 + $0x1f8] sm:$0xff]
        %v502 = vld [vmem:[%s1 + $0x200] sm:$0xff]
        %v503 = vld [vmem:[%s1 + $0x208] sm:$0xff]
        %v504 = vld [vmem:[%s1 + $0x210] sm:$0xff]
        %v505 = vld [vmem:[%s1 + $0x218] sm:$0xff]
        %v506 = vld [vmem:[%s1 + $0x220] sm:$0xff]
        %v507 = vld [vmem:[%s1 + $0x228] sm:$0xff]
        %v508 = vld [vmem:[%s1 + $0x230] sm:$0xff]
        %v509 = vld [vmem:[%s1 + $0x238] sm:$0xff]
        %v510 = vld [vmem:[%s1 + $0x240] sm:$0xff]
        %v511 = vld [vmem:[%s1 + $0x248] sm:$0xff]
        %v512 = vld [vmem:[%s1 + $0x250] sm:$0xff]
        %v513 = vld [vmem:[%s1 + $0x258] sm:$0xff]
        %v514 = vld [vmem:[%s1 + $0x260] sm:$0xff]
        %v515 = vld [vmem:[%s1 + $0x268] sm:$0xff]
        %v516 = vld [vmem:[%s1 + $0x270] sm:$0xff]
        %v517 = vld [vmem:[%s1 + $0x278] sm:$0xff]
        %v518 = vld [vmem:[%s1 + $0x280] sm:$0xff]
        %v519 = vld [vmem:[%s1 + $0x288] sm:$0xff]
        %v520 = vld [vmem:[%s1 + $0x290] sm:$0xff]
        %v521 = vld [vmem:[%s1 + $0x298] sm:$0xff]
        %v522 = vld [vmem:[%s1 + $0x2a0] sm:$0xff]
        %v523 = vld [vmem:[%s1 + $0x2a8] sm:$0xff]
        %v524 = vld [vmem:[%s1 + $0x2b0] sm:$0xff]
        %v525 = vld [vmem:[%s1 + $0x2b8] sm:$0xff]
        %v526 = vld [vmem:[%s1 + $0x2c0] sm:$0xff]
        %v527 = vld [vmem:[%s1 + $0x2c8] sm:$0xff]
        %v528 = vld [vmem:[%s1 + $0x2d0] sm:$0xff]
        %v529 = vld [vmem:[%s1 + $0x2d8] sm:$0xff]
        %v530 = vld [vmem:[%s1 + $0x2e0] sm:$0xff]
        %v531 = vld [vmem:[%s1 + $0x2e8] sm:$0xff]
        %v532 = vld [vmem:[%s1 + $0x2f0] sm:$0xff]
        %v533 = vld [vmem:[%s1 + $0x2f8] sm:$0xff]
        %v534 = vld [vmem:[%s1 + $0x300] sm:$0xff]
        %v535 = vld [vmem:[%s1 + $0x308] sm:$0xff]
        %v536 = vld [vmem:[%s1 + $0x310] sm:$0xff]
        %v537 = vld [vmem:[%s1 + $0x318] sm:$0xff]
        %v538 = vld [vmem:[%s1 + $0x320] sm:$0xff]
        %v539 = vld [vmem:[%s1 + $0x328] sm:$0xff]
        %v540 = vld [vmem:[%s1 + $0x330] sm:$0xff]
        %v541 = vld [vmem:[%s1 + $0x338] sm:$0xff]
        %v542 = vld [vmem:[%s1 + $0x340] sm:$0xff]
        %v543 = vld [vmem:[%s1 + $0x348] sm:$0xff]
        %v544 = vld [vmem:[%s1 + $0x350] sm:$0xff]
        %v545 = vld [vmem:[%s1 + $0x358] sm:$0xff]
        %v546 = vld [vmem:[%s1 + $0x360] sm:$0xff]
        %v547 = vld [vmem:[%s1 + $0x368] sm:$0xff]
        %v548 = vld [vmem:[%s1 + $0x370] sm:$0xff]
        %v549 = vld [vmem:[%s1 + $0x378] sm:$0xff]
        %v550 = vld [vmem:[%s1 + $0x380] sm:$0xff]
        %v551 = vld [vmem:[%s1 + $0x388] sm:$0xff]
        %v552 = vld [vmem:[%s1 + $0x390] sm:$0xff]
        %v553 = vld [vmem:[%s1 + $0x398] sm:$0xff]
        %v554 = vld [vmem:[%s1 + $0x3a0] sm:$0xff]
        %v555 = vld [vmem:[%s1 + $0x3a8] sm:$0xff]
        %v556 = vld [vmem:[%s1 + $0x3b0] sm:$0xff]
        %v557 = vld [vmem:[%s1 + $0x3b8] sm:$0xff]
        %v558 = vld [vmem:[%s1 + $0x3c0] sm:$0xff]
        %v559 = vld [vmem:[%s1 + $0x3c8] sm:$0xff]
        %v560 = vld [vmem:[%s1 + $0x3d0] sm:$0xff]
        %v561 = vld [vmem:[%s1 + $0x3d8] sm:$0xff]
        %v562 = vld [vmem:[%s1 + $0x3e0] sm:$0xff]
        %v563 = vld [vmem:[%s1 + $0x3e8] sm:$0xff]
        %v564 = vld [vmem:[%s1 + $0x3f0] sm:$0xff]
        %v565 = vld [vmem:[%s1 + $0x3f8] sm:$0xff]
        %v566 = vld [vmem:[#allocation5] sm:$0xff]
        %v567 = vld [vmem:[#allocation5 + $0x8] sm:$0xff]
        %v568 = vld [vmem:[#allocation5 + $0x10] sm:$0xff]
        %v569 = vld [vmem:[#allocation5 + $0x18] sm:$0xff]
        %v570 = vld [vmem:[#allocation5 + $0x20] sm:$0xff]
        %v571 = vld [vmem:[#allocation5 + $0x28] sm:$0xff]
        %v572 = vld [vmem:[#allocation5 + $0x30] sm:$0xff]
        %v573 = vld [vmem:[#allocation5 + $0x38] sm:$0xff]
        %v574 = vld [vmem:[#allocation5 + $0x40] sm:$0xff]
        %v575 = vld [vmem:[#allocation5 + $0x48] sm:$0xff]
        %v576 = vld [vmem:[#allocation5 + $0x50] sm:$0xff]
        %v577 = vld [vmem:[#allocation5 + $0x58] sm:$0xff]
        %v578 = vld [vmem:[#allocation5 + $0x60] sm:$0xff]
        %v579 = vld [vmem:[#allocation5 + $0x68] sm:$0xff]
        %v580 = vld [vmem:[#allocation5 + $0x70] sm:$0xff]
        %v581 = vld [vmem:[#allocation5 + $0x78] sm:$0xff]
        %v582 = vld [vmem:[#allocation5 + $0x80] sm:$0xff]
        %v583 = vld [vmem:[#allocation5 + $0x88] sm:$0xff]
        %v584 = vld [vmem:[#allocation5 + $0x90] sm:$0xff]
        %v585 = vld [vmem:[#allocation5 + $0x98] sm:$0xff]
        %v586 = vld [vmem:[#allocation5 + $0xa0] sm:$0xff]
        %v587 = vld [vmem:[#allocation5 + $0xa8] sm:$0xff]
        %v588 = vld [vmem:[#allocation5 + $0xb0] sm:$0xff]
        %v589 = vld [vmem:[#allocation5 + $0xb8] sm:$0xff]
        %v590 = vld [vmem:[#allocation5 + $0xc0] sm:$0xff]
        %v591 = vld [vmem:[#allocation5 + $0xc8] sm:$0xff]
        %v592 = vld [vmem:[#allocation5 + $0xd0] sm:$0xff]
        %v593 = vld [vmem:[#allocation5 + $0xd8] sm:$0xff]
        %v594 = vld [vmem:[#allocation5 + $0xe0] sm:$0xff]
        %v595 = vld [vmem:[#allocation5 + $0xe8] sm:$0xff]
        %v596 = vld [vmem:[#allocation5 + $0xf0] sm:$0xff]
        %v597 = vld [vmem:[#allocation5 + $0xf8] sm:$0xff]
        %v598 = vld [vmem:[#allocation5 + $0x100] sm:$0xff]
        %v599 = vld [vmem:[#allocation5 + $0x108] sm:$0xff]
        %v600 = vld [vmem:[#allocation5 + $0x110] sm:$0xff]
        %v601 = vld [vmem:[#allocation5 + $0x118] sm:$0xff]
        %v602 = vld [vmem:[#allocation5 + $0x120] sm:$0xff]
        %v603 = vld [vmem:[#allocation5 + $0x128] sm:$0xff]
        %v604 = vld [vmem:[#allocation5 + $0x130] sm:$0xff]
        %v605 = vld [vmem:[#allocation5 + $0x138] sm:$0xff]
        %v606 = vld [vmem:[#allocation5 + $0x140] sm:$0xff]
        %v607 = vld [vmem:[#allocation5 + $0x148] sm:$0xff]
        %v608 = vld [vmem:[#allocation5 + $0x150] sm:$0xff]
        %v609 = vld [vmem:[#allocation5 + $0x158] sm:$0xff]
        %v610 = vld [vmem:[#allocation5 + $0x160] sm:$0xff]
        %v611 = vld [vmem:[#allocation5 + $0x168] sm:$0xff]
        %v612 = vld [vmem:[#allocation5 + $0x170] sm:$0xff]
        %v613 = vld [vmem:[#allocation5 + $0x178] sm:$0xff]
        %v614 = vld [vmem:[#allocation5 + $0x180] sm:$0xff]
        %v615 = vld [vmem:[#allocation5 + $0x188] sm:$0xff]
        %v616 = vld [vmem:[#allocation5 + $0x190] sm:$0xff]
        %v617 = vld [vmem:[#allocation5 + $0x198] sm:$0xff]
        %v618 = vld [vmem:[#allocation5 + $0x1a0] sm:$0xff]
        %v619 = vld [vmem:[#allocation5 + $0x1a8] sm:$0xff]
        %v620 = vld [vmem:[#allocation5 + $0x1b0] sm:$0xff]
        %v621 = vld [vmem:[#allocation5 + $0x1b8] sm:$0xff]
        %v622 = vld [vmem:[#allocation5 + $0x1c0] sm:$0xff]
        %v623 = vld [vmem:[#allocation5 + $0x1c8] sm:$0xff]
        %v624 = vld [vmem:[#allocation5 + $0x1d0] sm:$0xff]
        %v625 = vld [vmem:[#allocation5 + $0x1d8] sm:$0xff]
        %v626 = vld [vmem:[#allocation5 + $0x1e0] sm:$0xff]
        %v627 = vld [vmem:[#allocation5 + $0x1e8] sm:$0xff]
        %v628 = vld [vmem:[#allocation5 + $0x1f0] sm:$0xff]
        %v629 = vld [vmem:[#allocation5 + $0x1f8] sm:$0xff]
        %v630 = vld [vmem:[#allocation5 + $0x200] sm:$0xff]
        %v631 = vld [vmem:[#allocation5 + $0x208] sm:$0xff]
        %v632 = vld [vmem:[#allocation5 + $0x210] sm:$0xff]
        %v633 = vld [vmem:[#allocation5 + $0x218] sm:$0xff]
        %v634 = vld [vmem:[#allocation5 + $0x220] sm:$0xff]
        %v635 = vld [vmem:[#allocation5 + $0x228] sm:$0xff]
        %v636 = vld [vmem:[#allocation5 + $0x230] sm:$0xff]
        %v637 = vld [vmem:[#allocation5 + $0x238] sm:$0xff]
        %v638 = vld [vmem:[#allocation5 + $0x240] sm:$0xff]
        %v639 = vld [vmem:[#allocation5 + $0x248] sm:$0xff]
        %v640 = vld [vmem:[#allocation5 + $0x250] sm:$0xff]
        %v641 = vld [vmem:[#allocation5 + $0x258] sm:$0xff]
        %v642 = vld [vmem:[#allocation5 + $0x260] sm:$0xff]
        %v643 = vld [vmem:[#allocation5 + $0x268] sm:$0xff]
        %v644 = vld [vmem:[#allocation5 + $0x270] sm:$0xff]
        %v645 = vld [vmem:[#allocation5 + $0x278] sm:$0xff]
        %v646 = vld [vmem:[#allocation7] sm:$0xf]
        %v647 = vld [vmem:[#allocation7 + $0x4] sm:$0xf]
        %v648 = vld [vmem:[#allocation7 + $0x8] sm:$0xf]
        %v649 = vld [vmem:[#allocation7 + $0xc] sm:$0xf]
        %v650 = vld [vmem:[#allocation7 + $0x10] sm:$0xf]
        %v651 = vld [vmem:[#allocation7 + $0x14] sm:$0xf]
        %v652 = vld [vmem:[#allocation7 + $0x18] sm:$0xf]
        %v653 = vld [vmem:[#allocation7 + $0x1c] sm:$0xf]
        %v654 = vld [vmem:[#allocation7 + $0x20] sm:$0xf]
        %v655 = vld [vmem:[#allocation7 + $0x24] sm:$0xf]
        %v656 = vld [vmem:[#allocation7 + $0x28] sm:$0xf]
        %v657 = vld [vmem:[#allocation7 + $0x2c] sm:$0xf]
        %v658 = vld [vmem:[#allocation7 + $0x30] sm:$0xf]
        %v659 = vld [vmem:[#allocation7 + $0x34] sm:$0xf]
        %v660 = vld [vmem:[#allocation7 + $0x38] sm:$0xf]
        %v661 = vld [vmem:[#allocation7 + $0x3c] sm:$0xf]
        %v662 = vld [vmem:[#allocation7 + $0x40] sm:$0xf]
        %v663 = vld [vmem:[#allocation7 + $0x44] sm:$0xf]
        %v664 = vld [vmem:[#allocation7 + $0x48] sm:$0xf]
        %v665 = vld [vmem:[#allocation7 + $0x4c] sm:$0xf]
        %v666 = vld [vmem:[#allocation7 + $0x50] sm:$0xf]
        %v667 = vld [vmem:[#allocation7 + $0x54] sm:$0xf]
        %v668 = vld [vmem:[#allocation7 + $0x58] sm:$0xf]
        %v669 = vld [vmem:[#allocation7 + $0x5c] sm:$0xf]
        %v670 = vld [vmem:[#allocation7 + $0x60] sm:$0xf]
        %v671 = vld [vmem:[#allocation7 + $0x64] sm:$0xf]
        %v672 = vld [vmem:[#allocation7 + $0x68] sm:$0xf]
        %v673 = vld [vmem:[#allocation7 + $0x6c] sm:$0xf]
        %v674 = vld [vmem:[#allocation7 + $0x70] sm:$0xf]
        %v675 = vld [vmem:[#allocation7 + $0x74] sm:$0xf]
        %v676 = vld [vmem:[#allocation7 + $0x78] sm:$0xf]
        %v677 = vld [vmem:[#allocation7 + $0x7c] sm:$0xf]
        %v678 = vld [vmem:[#allocation7 + $0x80] sm:$0xf]
        %v679 = vld [vmem:[#allocation7 + $0x84] sm:$0xf]
        %v680 = vld [vmem:[#allocation7 + $0x88] sm:$0xf]
        %v681 = vld [vmem:[#allocation7 + $0x8c] sm:$0xf]
        %v682 = vld [vmem:[#allocation7 + $0x90] sm:$0xf]
        %v683 = vld [vmem:[#allocation7 + $0x94] sm:$0xf]
        %v684 = vld [vmem:[#allocation7 + $0x98] sm:$0xf]
        %v685 = vld [vmem:[#allocation7 + $0x9c] sm:$0xf]
        %v686 = vld [vmem:[#allocation7 + $0xa0] sm:$0xf]
        %v687 = vld [vmem:[#allocation7 + $0xa4] sm:$0xf]
        %v688 = vld [vmem:[#allocation7 + $0xa8] sm:$0xf]
        %v689 = vld [vmem:[#allocation7 + $0xac] sm:$0xf]
        %v690 = vld [vmem:[#allocation7 + $0xb0] sm:$0xf]
        %v691 = vld [vmem:[#allocation7 + $0xb4] sm:$0xf]
        %v692 = vld [vmem:[#allocation7 + $0xb8] sm:$0xf]
        %v693 = vld [vmem:[#allocation7 + $0xbc] sm:$0xf]
        %v694 = vld [vmem:[%s2] sm:$0x1]
        %v695 = vld [vmem:[%s4] sm:$0x1]
        %v696 = vld [vmem:[%s6] sm:$0x1]
        %v697 = vld [vmem:[%s429] sm:$0xff]
        %v698 = vld [vmem:[%s429 + $0x1c] sm:$0xff]
        %v701 = vunpack.c.l.b16 %v697
        %v702 = vunpack.c.h.b16 %v697
        %v703 = vunpack.c.l.b16 %v698
        %v704 = vunpack.c.h.b16 %v698
        %v705 = vpack.c.b16 %v703, %v701
        %v706 = vpack.c.b16 %v704, %v702
        %v837 = vunpack.c.l.b16 %v438
        %v838 = vunpack.c.h.b16 %v438
        %v839 = vunpack.c.l.b16 %v439
        %v840 = vunpack.c.h.b16 %v439
        %v841 = vunpack.c.l.b16 %v440
        %v842 = vunpack.c.h.b16 %v440
        %v843 = vunpack.c.l.b16 %v441
        %v844 = vunpack.c.h.b16 %v441
        %v845 = vunpack.c.l.b16 %v442
        %v846 = vunpack.c.h.b16 %v442
        %v847 = vunpack.c.l.b16 %v443
        %v848 = vunpack.c.h.b16 %v443
        %v849 = vunpack.c.l.b16 %v444
        %v850 = vunpack.c.h.b16 %v444
        %v851 = vunpack.c.l.b16 %v445
        %v852 = vunpack.c.h.b16 %v445
        %v853 = vunpack.c.l.b16 %v446
        %v854 = vunpack.c.h.b16 %v446
        %v855 = vunpack.c.l.b16 %v447
        %v856 = vunpack.c.h.b16 %v447
        %v857 = vunpack.c.l.b16 %v448
        %v858 = vunpack.c.h.b16 %v448
        %v859 = vunpack.c.l.b16 %v449
        %v860 = vunpack.c.h.b16 %v449
        %v861 = vunpack.c.l.b16 %v450
        %v862 = vunpack.c.h.b16 %v450
        %v863 = vunpack.c.l.b16 %v451
        %v864 = vunpack.c.h.b16 %v451
        %v865 = vunpack.c.l.b16 %v452
        %v866 = vunpack.c.h.b16 %v452
        %v867 = vunpack.c.l.b16 %v453
        %v868 = vunpack.c.h.b16 %v453
        %v869 = vunpack.c.l.b16 %v454
        %v870 = vunpack.c.h.b16 %v454
        %v871 = vunpack.c.l.b16 %v455
        %v872 = vunpack.c.h.b16 %v455
        %v873 = vunpack.c.l.b16 %v456
        %v874 = vunpack.c.h.b16 %v456
        %v875 = vunpack.c.l.b16 %v457
        %v876 = vunpack.c.h.b16 %v457
        %v877 = vunpack.c.l.b16 %v458
        %v878 = vunpack.c.h.b16 %v458
        %v879 = vunpack.c.l.b16 %v459
        %v880 = vunpack.c.h.b16 %v459
        %v881 = vunpack.c.l.b16 %v460
        %v882 = vunpack.c.h.b16 %v460
        %v883 = vunpack.c.l.b16 %v461
        %v884 = vunpack.c.h.b16 %v461
        %v885 = vunpack.c.l.b16 %v462
        %v886 = vunpack.c.h.b16 %v462
        %v887 = vunpack.c.l.b16 %v463
        %v888 = vunpack.c.h.b16 %v463
        %v889 = vunpack.c.l.b16 %v464
        %v890 = vunpack.c.h.b16 %v464
        %v891 = vunpack.c.l.b16 %v465
        %v892 = vunpack.c.h.b16 %v465
        %v893 = vunpack.c.l.b16 %v466
        %v894 = vunpack.c.h.b16 %v466
        %v895 = vunpack.c.l.b16 %v467
        %v896 = vunpack.c.h.b16 %v467
        %v897 = vunpack.c.l.b16 %v468
        %v898 = vunpack.c.h.b16 %v468
        %v899 = vunpack.c.l.b16 %v469
        %v900 = vunpack.c.h.b16 %v469
        %v901 = vunpack.c.l.b16 %v470
        %v902 = vunpack.c.h.b16 %v470
        %v903 = vunpack.c.l.b16 %v471
        %v904 = vunpack.c.h.b16 %v471
        %v905 = vunpack.c.l.b16 %v472
        %v906 = vunpack.c.h.b16 %v472
        %v907 = vunpack.c.l.b16 %v473
        %v908 = vunpack.c.h.b16 %v473
        %v909 = vunpack.c.l.b16 %v474
        %v910 = vunpack.c.h.b16 %v474
        %v911 = vunpack.c.l.b16 %v475
        %v912 = vunpack.c.h.b16 %v475
        %v913 = vunpack.c.l.b16 %v476
        %v914 = vunpack.c.h.b16 %v476
        %v915 = vunpack.c.l.b16 %v477
        %v916 = vunpack.c.h.b16 %v477
        %v917 = vunpack.c.l.b16 %v478
        %v918 = vunpack.c.h.b16 %v478
        %v919 = vunpack.c.l.b16 %v479
        %v920 = vunpack.c.h.b16 %v479
        %v921 = vunpack.c.l.b16 %v480
        %v922 = vunpack.c.h.b16 %v480
        %v923 = vunpack.c.l.b16 %v481
        %v924 = vunpack.c.h.b16 %v481
        %v925 = vunpack.c.l.b16 %v482
        %v926 = vunpack.c.h.b16 %v482
        %v927 = vunpack.c.l.b16 %v483
        %v928 = vunpack.c.h.b16 %v483
        %v929 = vunpack.c.l.b16 %v484
        %v930 = vunpack.c.h.b16 %v484
        %v931 = vunpack.c.l.b16 %v485
        %v932 = vunpack.c.h.b16 %v485
        %v933 = vunpack.c.l.b16 %v486
        %v934 = vunpack.c.h.b16 %v486
        %v935 = vunpack.c.l.b16 %v487
        %v936 = vunpack.c.h.b16 %v487
        %v937 = vunpack.c.l.b16 %v488
        %v938 = vunpack.c.h.b16 %v488
        %v939 = vunpack.c.l.b16 %v489
        %v940 = vunpack.c.h.b16 %v489
        %v941 = vunpack.c.l.b16 %v490
        %v942 = vunpack.c.h.b16 %v490
        %v943 = vunpack.c.l.b16 %v491
        %v944 = vunpack.c.h.b16 %v491
        %v945 = vunpack.c.l.b16 %v492
        %v946 = vunpack.c.h.b16 %v492
        %v947 = vunpack.c.l.b16 %v493
        %v948 = vunpack.c.h.b16 %v493
        %v949 = vunpack.c.l.b16 %v494
        %v950 = vunpack.c.h.b16 %v494
        %v951 = vunpack.c.l.b16 %v495
        %v952 = vunpack.c.h.b16 %v495
        %v953 = vunpack.c.l.b16 %v496
        %v954 = vunpack.c.h.b16 %v496
        %v955 = vunpack.c.l.b16 %v497
        %v956 = vunpack.c.h.b16 %v497
        %v957 = vunpack.c.l.b16 %v498
        %v958 = vunpack.c.h.b16 %v498
        %v959 = vunpack.c.l.b16 %v499
        %v960 = vunpack.c.h.b16 %v499
        %v961 = vunpack.c.l.b16 %v500
        %v962 = vunpack.c.h.b16 %v500
        %v963 = vunpack.c.l.b16 %v501
        %v964 = vunpack.c.h.b16 %v501
        %v965 = vunpack.c.l.b16 %v502
        %v966 = vunpack.c.h.b16 %v502
        %v967 = vunpack.c.l.b16 %v503
        %v968 = vunpack.c.h.b16 %v503
        %v969 = vunpack.c.l.b16 %v504
        %v970 = vunpack.c.h.b16 %v504
        %v971 = vunpack.c.l.b16 %v505
        %v972 = vunpack.c.h.b16 %v505
        %v973 = vunpack.c.l.b16 %v506
        %v974 = vunpack.c.h.b16 %v506
        %v975 = vunpack.c.l.b16 %v507
        %v976 = vunpack.c.h.b16 %v507
        %v977 = vunpack.c.l.b16 %v508
        %v978 = vunpack.c.h.b16 %v508
        %v979 = vunpack.c.l.b16 %v509
        %v980 = vunpack.c.h.b16 %v509
        %v981 = vunpack.c.l.b16 %v510
        %v982 = vunpack.c.h.b16 %v510
        %v983 = vunpack.c.l.b16 %v511
        %v984 = vunpack.c.h.b16 %v511
        %v985 = vunpack.c.l.b16 %v512
        %v986 = vunpack.c.h.b16 %v512
        %v987 = vunpack.c.l.b16 %v513
        %v988 = vunpack.c.h.b16 %v513
        %v989 = vunpack.c.l.b16 %v514
        %v990 = vunpack.c.h.b16 %v514
        %v991 = vunpack.c.l.b16 %v515
        %v992 = vunpack.c.h.b16 %v515
        %v993 = vunpack.c.l.b16 %v516
        %v994 = vunpack.c.h.b16 %v516
        %v995 = vunpack.c.l.b16 %v517
        %v996 = vunpack.c.h.b16 %v517
        %v997 = vunpack.c.l.b16 %v518
        %v998 = vunpack.c.h.b16 %v518
        %v999 = vunpack.c.l.b16 %v519
        %v1000 = vunpack.c.h.b16 %v519
        %v1001 = vunpack.c.l.b16 %v520
        %v1002 = vunpack.c.h.b16 %v520
        %v1003 = vunpack.c.l.b16 %v521
        %v1004 = vunpack.c.h.b16 %v521
        %v1005 = vunpack.c.l.b16 %v522
        %v1006 = vunpack.c.h.b16 %v522
        %v1007 = vunpack.c.l.b16 %v523
        %v1008 = vunpack.c.h.b16 %v523
        %v1009 = vunpack.c.l.b16 %v524
        %v1010 = vunpack.c.h.b16 %v524
        %v1011 = vunpack.c.l.b16 %v525
        %v1012 = vunpack.c.h.b16 %v525
        %v1013 = vunpack.c.l.b16 %v526
        %v1014 = vunpack.c.h.b16 %v526
        %v1015 = vunpack.c.l.b16 %v527
        %v1016 = vunpack.c.h.b16 %v527
        %v1017 = vunpack.c.l.b16 %v528
        %v1018 = vunpack.c.h.b16 %v528
        %v1019 = vunpack.c.l.b16 %v529
        %v1020 = vunpack.c.h.b16 %v529
        %v1021 = vunpack.c.l.b16 %v530
        %v1022 = vunpack.c.h.b16 %v530
        %v1023 = vunpack.c.l.b16 %v531
        %v1024 = vunpack.c.h.b16 %v531
        %v1025 = vunpack.c.l.b16 %v532
        %v1026 = vunpack.c.h.b16 %v532
        %v1027 = vunpack.c.l.b16 %v533
        %v1028 = vunpack.c.h.b16 %v533
        %v1029 = vunpack.c.l.b16 %v534
        %v1030 = vunpack.c.h.b16 %v534
        %v1031 = vunpack.c.l.b16 %v535
        %v1032 = vunpack.c.h.b16 %v535
        %v1033 = vunpack.c.l.b16 %v536
        %v1034 = vunpack.c.h.b16 %v536
        %v1035 = vunpack.c.l.b16 %v537
        %v1036 = vunpack.c.h.b16 %v537
        %v1037 = vunpack.c.l.b16 %v538
        %v1038 = vunpack.c.h.b16 %v538
        %v1039 = vunpack.c.l.b16 %v539
        %v1040 = vunpack.c.h.b16 %v539
        %v1041 = vunpack.c.l.b16 %v540
        %v1042 = vunpack.c.h.b16 %v540
        %v1043 = vunpack.c.l.b16 %v541
        %v1044 = vunpack.c.h.b16 %v541
        %v1045 = vunpack.c.l.b16 %v542
        %v1046 = vunpack.c.h.b16 %v542
        %v1047 = vunpack.c.l.b16 %v543
        %v1048 = vunpack.c.h.b16 %v543
        %v1049 = vunpack.c.l.b16 %v544
        %v1050 = vunpack.c.h.b16 %v544
        %v1051 = vunpack.c.l.b16 %v545
        %v1052 = vunpack.c.h.b16 %v545
        %v1053 = vunpack.c.l.b16 %v546
        %v1054 = vunpack.c.h.b16 %v546
        %v1055 = vunpack.c.l.b16 %v547
        %v1056 = vunpack.c.h.b16 %v547
        %v1057 = vunpack.c.l.b16 %v548
        %v1058 = vunpack.c.h.b16 %v548
        %v1059 = vunpack.c.l.b16 %v549
        %v1060 = vunpack.c.h.b16 %v549
        %v1061 = vunpack.c.l.b16 %v550
        %v1062 = vunpack.c.h.b16 %v550
        %v1063 = vunpack.c.l.b16 %v551
        %v1064 = vunpack.c.h.b16 %v551
        %v1065 = vunpack.c.l.b16 %v552
        %v1066 = vunpack.c.h.b16 %v552
        %v1067 = vunpack.c.l.b16 %v553
        %v1068 = vunpack.c.h.b16 %v553
        %v1069 = vunpack.c.l.b16 %v554
        %v1070 = vunpack.c.h.b16 %v554
        %v1071 = vunpack.c.l.b16 %v555
        %v1072 = vunpack.c.h.b16 %v555
        %v1073 = vunpack.c.l.b16 %v556
        %v1074 = vunpack.c.h.b16 %v556
        %v1075 = vunpack.c.l.b16 %v557
        %v1076 = vunpack.c.h.b16 %v557
        %v1077 = vunpack.c.l.b16 %v558
        %v1078 = vunpack.c.h.b16 %v558
        %v1079 = vunpack.c.l.b16 %v559
        %v1080 = vunpack.c.h.b16 %v559
        %v1081 = vunpack.c.l.b16 %v560
        %v1082 = vunpack.c.h.b16 %v560
        %v1083 = vunpack.c.l.b16 %v561
        %v1084 = vunpack.c.h.b16 %v561
        %v1085 = vunpack.c.l.b16 %v562
        %v1086 = vunpack.c.h.b16 %v562
        %v1087 = vunpack.c.l.b16 %v563
        %v1088 = vunpack.c.h.b16 %v563
        %v1089 = vunpack.c.l.b16 %v564
        %v1090 = vunpack.c.h.b16 %v564
        %v1091 = vunpack.c.l.b16 %v565
        %v1092 = vunpack.c.h.b16 %v565
        %v1093 = vpack.c.b16 %v845, %v837
        %v1094 = vpack.c.b16 %v846, %v838
        %v1095 = vpack.c.b16 %v847, %v839
        %v1096 = vpack.c.b16 %v848, %v840
        %v1097 = vpack.c.b16 %v849, %v841
        %v1098 = vpack.c.b16 %v850, %v842
        %v1099 = vpack.c.b16 %v851, %v843
        %v1100 = vpack.c.b16 %v852, %v844
        %v1101 = vpack.c.b16 %v861, %v853
        %v1102 = vpack.c.b16 %v862, %v854
        %v1103 = vpack.c.b16 %v863, %v855
        %v1104 = vpack.c.b16 %v864, %v856
        %v1105 = vpack.c.b16 %v865, %v857
        %v1106 = vpack.c.b16 %v866, %v858
        %v1107 = vpack.c.b16 %v867, %v859
        %v1108 = vpack.c.b16 %v868, %v860
        %v1109 = vpack.c.b16 %v877, %v869
        %v1110 = vpack.c.b16 %v878, %v870
        %v1111 = vpack.c.b16 %v879, %v871
        %v1112 = vpack.c.b16 %v880, %v872
        %v1113 = vpack.c.b16 %v881, %v873
        %v1114 = vpack.c.b16 %v882, %v874
        %v1115 = vpack.c.b16 %v883, %v875
        %v1116 = vpack.c.b16 %v884, %v876
        %v1117 = vpack.c.b16 %v893, %v885
        %v1118 = vpack.c.b16 %v894, %v886
        %v1119 = vpack.c.b16 %v895, %v887
        %v1120 = vpack.c.b16 %v896, %v888
        %v1121 = vpack.c.b16 %v897, %v889
        %v1122 = vpack.c.b16 %v898, %v890
        %v1123 = vpack.c.b16 %v899, %v891
        %v1124 = vpack.c.b16 %v900, %v892
        %v1125 = vpack.c.b16 %v909, %v901
        %v1126 = vpack.c.b16 %v910, %v902
        %v1127 = vpack.c.b16 %v911, %v903
        %v1128 = vpack.c.b16 %v912, %v904
        %v1129 = vpack.c.b16 %v913, %v905
        %v1130 = vpack.c.b16 %v914, %v906
        %v1131 = vpack.c.b16 %v915, %v907
        %v1132 = vpack.c.b16 %v916, %v908
        %v1133 = vpack.c.b16 %v925, %v917
        %v1134 = vpack.c.b16 %v926, %v918
        %v1135 = vpack.c.b16 %v927, %v919
        %v1136 = vpack.c.b16 %v928, %v920
        %v1137 = vpack.c.b16 %v929, %v921
        %v1138 = vpack.c.b16 %v930, %v922
        %v1139 = vpack.c.b16 %v931, %v923
        %v1140 = vpack.c.b16 %v932, %v924
        %v1141 = vpack.c.b16 %v941, %v933
        %v1142 = vpack.c.b16 %v942, %v934
        %v1143 = vpack.c.b16 %v943, %v935
        %v1144 = vpack.c.b16 %v944, %v936
        %v1145 = vpack.c.b16 %v945, %v937
        %v1146 = vpack.c.b16 %v946, %v938
        %v1147 = vpack.c.b16 %v947, %v939
        %v1148 = vpack.c.b16 %v948, %v940
        %v1149 = vpack.c.b16 %v957, %v949
        %v1150 = vpack.c.b16 %v958, %v950
        %v1151 = vpack.c.b16 %v959, %v951
        %v1152 = vpack.c.b16 %v960, %v952
        %v1153 = vpack.c.b16 %v961, %v953
        %v1154 = vpack.c.b16 %v962, %v954
        %v1155 = vpack.c.b16 %v963, %v955
        %v1156 = vpack.c.b16 %v964, %v956
        %v1157 = vpack.c.b16 %v973, %v965
        %v1158 = vpack.c.b16 %v974, %v966
        %v1159 = vpack.c.b16 %v975, %v967
        %v1160 = vpack.c.b16 %v976, %v968
        %v1161 = vpack.c.b16 %v977, %v969
        %v1162 = vpack.c.b16 %v978, %v970
        %v1163 = vpack.c.b16 %v979, %v971
        %v1164 = vpack.c.b16 %v980, %v972
        %v1165 = vpack.c.b16 %v989, %v981
        %v1166 = vpack.c.b16 %v990, %v982
        %v1167 = vpack.c.b16 %v991, %v983
        %v1168 = vpack.c.b16 %v992, %v984
        %v1169 = vpack.c.b16 %v993, %v985
        %v1170 = vpack.c.b16 %v994, %v986
        %v1171 = vpack.c.b16 %v995, %v987
        %v1172 = vpack.c.b16 %v996, %v988
        %v1173 = vpack.c.b16 %v1005, %v997
        %v1174 = vpack.c.b16 %v1006, %v998
        %v1175 = vpack.c.b16 %v1007, %v999
        %v1176 = vpack.c.b16 %v1008, %v1000
        %v1177 = vpack.c.b16 %v1009, %v1001
        %v1178 = vpack.c.b16 %v1010, %v1002
        %v1179 = vpack.c.b16 %v1011, %v1003
        %v1180 = vpack.c.b16 %v1012, %v1004
        %v1181 = vpack.c.b16 %v1021, %v1013
        %v1182 = vpack.c.b16 %v1022, %v1014
        %v1183 = vpack.c.b16 %v1023, %v1015
        %v1184 = vpack.c.b16 %v1024, %v1016
        %v1185 = vpack.c.b16 %v1025, %v1017
        %v1186 = vpack.c.b16 %v1026, %v1018
        %v1187 = vpack.c.b16 %v1027, %v1019
        %v1188 = vpack.c.b16 %v1028, %v1020
        %v1189 = vpack.c.b16 %v1037, %v1029
        %v1190 = vpack.c.b16 %v1038, %v1030
        %v1191 = vpack.c.b16 %v1039, %v1031
        %v1192 = vpack.c.b16 %v1040, %v1032
        %v1193 = vpack.c.b16 %v1041, %v1033
        %v1194 = vpack.c.b16 %v1042, %v1034
        %v1195 = vpack.c.b16 %v1043, %v1035
        %v1196 = vpack.c.b16 %v1044, %v1036
        %v1197 = vpack.c.b16 %v1053, %v1045
        %v1198 = vpack.c.b16 %v1054, %v1046
        %v1199 = vpack.c.b16 %v1055, %v1047
        %v1200 = vpack.c.b16 %v1056, %v1048
        %v1201 = vpack.c.b16 %v1057, %v1049
        %v1202 = vpack.c.b16 %v1058, %v1050
        %v1203 = vpack.c.b16 %v1059, %v1051
        %v1204 = vpack.c.b16 %v1060, %v1052
        %v1205 = vpack.c.b16 %v1069, %v1061
        %v1206 = vpack.c.b16 %v1070, %v1062
        %v1207 = vpack.c.b16 %v1071, %v1063
        %v1208 = vpack.c.b16 %v1072, %v1064
        %v1209 = vpack.c.b16 %v1073, %v1065
        %v1210 = vpack.c.b16 %v1074, %v1066
        %v1211 = vpack.c.b16 %v1075, %v1067
        %v1212 = vpack.c.b16 %v1076, %v1068
        %v1213 = vpack.c.b16 %v1085, %v1077
        %v1214 = vpack.c.b16 %v1086, %v1078
        %v1215 = vpack.c.b16 %v1087, %v1079
        %v1216 = vpack.c.b16 %v1088, %v1080
        %v1217 = vpack.c.b16 %v1089, %v1081
        %v1218 = vpack.c.b16 %v1090, %v1082
        %v1219 = vpack.c.b16 %v1091, %v1083
        %v1220 = vpack.c.b16 %v1092, %v1084
        %1349 = vmatprep.subr.bf16.mxu0 %v1150
        %1350 = vmatpush1.bf16.msra.mxu0 %v1149
        %1351 = vmatprep.subr.bf16.mxu0 %v1142
        %1352 = vmatpush1.bf16.msra.mxu0 %v1141
        %1353 = vmatprep.subr.bf16.mxu0 %v1134
        %1354 = vmatpush1.bf16.msra.mxu0 %v1133
        %1355 = vmatprep.subr.bf16.mxu0 %v1126
        %1356 = vmatpush1.bf16.msra.mxu0 %v1125
        %1357 = vmatprep.subr.bf16.mxu0 %v1118
        %1358 = vmatpush1.bf16.msra.mxu0 %v1117
        %1359 = vmatprep.subr.bf16.mxu0 %v1110
        %1360 = vmatpush1.bf16.msra.mxu0 %v1109
        %1361 = vmatprep.subr.bf16.mxu0 %v1102
        %1362 = vmatpush1.bf16.msra.mxu0 %v1101
        %1363 = vmatprep.subr.bf16.mxu0 %v1094
        %1364 = vmatpush1.bf16.msra.mxu0 %v1093
        %1365 = vmatprep.subr.bf16.mxu0 %v1214
        %1366 = vmatpush2.bf16.msra.mxu0 %v1213
        %1367 = vmatprep.subr.bf16.mxu0 %v1206
        %1368 = vmatpush2.bf16.msra.mxu0 %v1205
        %1369 = vmatprep.subr.bf16.mxu0 %v1198
        %1370 = vmatpush2.bf16.msra.mxu0 %v1197
        %1371 = vmatprep.subr.bf16.mxu0 %v1190
        %1372 = vmatpush2.bf16.msra.mxu0 %v1189
        %1373 = vmatprep.subr.bf16.mxu0 %v1182
        %1374 = vmatpush2.bf16.msra.mxu0 %v1181
        %1375 = vmatprep.subr.bf16.mxu0 %v1174
        %1376 = vmatpush2.bf16.msra.mxu0 %v1173
        %1377 = vmatprep.subr.bf16.mxu0 %v1166
        %1378 = vmatpush2.bf16.msra.mxu0 %v1165
        %1379 = vmatprep.subr.bf16.mxu0 %v1158
        %1380 = vmatpush2.bf16.msra.mxu0 %v1157
        %1381 = vmatprep.mubr.bf16.mxu0 %v706
        %1382 = vmatmul.mubr.bf16.gmra.mxu0 %v705
        %v1383 = vpop.f32.mrf.mxu0
        %v1384 = vadd.f32 0.0, %v1383
        %v1385 = vpop.f32.mrf.mxu0
        %v1386 = vadd.f32 0.0, %v1385
        %v1387 = vpop.f32.mrf.mxu0
        %v1388 = vadd.f32 0.0, %v1387
        %v1389 = vpop.f32.mrf.mxu0
        %v1390 = vadd.f32 0.0, %v1389
        %1391 = vdwg.mxu0
        %1392 = vmatprep.subr.bf16.mxu0 %v1152
        %1393 = vmatpush1.bf16.msra.mxu0 %v1151
        %1394 = vmatprep.subr.bf16.mxu0 %v1144
        %1395 = vmatpush1.bf16.msra.mxu0 %v1143
        %1396 = vmatprep.subr.bf16.mxu0 %v1136
        %1397 = vmatpush1.bf16.msra.mxu0 %v1135
        %1398 = vmatprep.subr.bf16.mxu0 %v1128
        %1399 = vmatpush1.bf16.msra.mxu0 %v1127
        %1400 = vmatprep.subr.bf16.mxu0 %v1120
        %1401 = vmatpush1.bf16.msra.mxu0 %v1119
        %1402 = vmatprep.subr.bf16.mxu0 %v1112
        %1403 = vmatpush1.bf16.msra.mxu0 %v1111
        %1404 = vmatprep.subr.bf16.mxu0 %v1104
        %1405 = vmatpush1.bf16.msra.mxu0 %v1103
        %1406 = vmatprep.subr.bf16.mxu0 %v1096
        %1407 = vmatpush1.bf16.msra.mxu0 %v1095
        %1408 = vmatprep.subr.bf16.mxu0 %v1216
        %1409 = vmatpush2.bf16.msra.mxu0 %v1215
        %1410 = vmatprep.subr.bf16.mxu0 %v1208
        %1411 = vmatpush2.bf16.msra.mxu0 %v1207
        %1412 = vmatprep.subr.bf16.mxu0 %v1200
        %1413 = vmatpush2.bf16.msra.mxu0 %v1199
        %1414 = vmatprep.subr.bf16.mxu0 %v1192
        %1415 = vmatpush2.bf16.msra.mxu0 %v1191
        %1416 = vmatprep.subr.bf16.mxu0 %v1184
        %1417 = vmatpush2.bf16.msra.mxu0 %v1183
        %1418 = vmatprep.subr.bf16.mxu0 %v1176
        %1419 = vmatpush2.bf16.msra.mxu0 %v1175
        %1420 = vmatprep.subr.bf16.mxu0 %v1168
        %1421 = vmatpush2.bf16.msra.mxu0 %v1167
        %1422 = vmatprep.subr.bf16.mxu0 %v1160
        %1423 = vmatpush2.bf16.msra.mxu0 %v1159
        %1424 = vmatprep.mubr.bf16.mxu0 %v706
        %1425 = vmatmul.mubr.bf16.gmra.mxu0 %v705
        %v1426 = vpop.f32.mrf.mxu0
        %v1427 = vadd.f32 0.0, %v1426
        %v1428 = vpop.f32.mrf.mxu0
        %v1429 = vadd.f32 0.0, %v1428
        %v1430 = vpop.f32.mrf.mxu0
        %v1431 = vadd.f32 0.0, %v1430
        %v1432 = vpop.f32.mrf.mxu0
        %v1433 = vadd.f32 0.0, %v1432
        %1434 = vdwg.mxu0
        %1435 = vmatprep.subr.bf16.mxu0 %v1154
        %1436 = vmatpush1.bf16.msra.mxu0 %v1153
        %1437 = vmatprep.subr.bf16.mxu0 %v1146
        %1438 = vmatpush1.bf16.msra.mxu0 %v1145
        %1439 = vmatprep.subr.bf16.mxu0 %v1138
        %1440 = vmatpush1.bf16.msra.mxu0 %v1137
        %1441 = vmatprep.subr.bf16.mxu0 %v1130
        %1442 = vmatpush1.bf16.msra.mxu0 %v1129
        %1443 = vmatprep.subr.bf16.mxu0 %v1122
        %1444 = vmatpush1.bf16.msra.mxu0 %v1121
        %1445 = vmatprep.subr.bf16.mxu0 %v1114
        %1446 = vmatpush1.bf16.msra.mxu0 %v1113
        %1447 = vmatprep.subr.bf16.mxu0 %v1106
        %1448 = vmatpush1.bf16.msra.mxu0 %v1105
        %1449 = vmatprep.subr.bf16.mxu0 %v1098
        %1450 = vmatpush1.bf16.msra.mxu0 %v1097
        %1451 = vmatprep.subr.bf16.mxu0 %v1218
        %1452 = vmatpush2.bf16.msra.mxu0 %v1217
        %1453 = vmatprep.subr.bf16.mxu0 %v1210
        %1454 = vmatpush2.bf16.msra.mxu0 %v1209
        %1455 = vmatprep.subr.bf16.mxu0 %v1202
        %1456 = vmatpush2.bf16.msra.mxu0 %v1201
        %1457 = vmatprep.subr.bf16.mxu0 %v1194
        %1458 = vmatpush2.bf16.msra.mxu0 %v1193
        %1459 = vmatprep.subr.bf16.mxu0 %v1186
        %1460 = vmatpush2.bf16.msra.mxu0 %v1185
        %1461 = vmatprep.subr.bf16.mxu0 %v1178
        %1462 = vmatpush2.bf16.msra.mxu0 %v1177
        %1463 = vmatprep.subr.bf16.mxu0 %v1170
        %1464 = vmatpush2.bf16.msra.mxu0 %v1169
        %1465 = vmatprep.subr.bf16.mxu0 %v1162
        %1466 = vmatpush2.bf16.msra.mxu0 %v1161
        %1467 = vmatprep.mubr.bf16.mxu0 %v706
        %1468 = vmatmul.mubr.bf16.gmra.mxu0 %v705
        %v1469 = vpop.f32.mrf.mxu0
        %v1470 = vadd.f32 0.0, %v1469
        %v1471 = vpop.f32.mrf.mxu0
        %v1472 = vadd.f32 0.0, %v1471
        %v1473 = vpop.f32.mrf.mxu0
        %v1474 = vadd.f32 0.0, %v1473
        %v1475 = vpop.f32.mrf.mxu0
        %v1476 = vadd.f32 0.0, %v1475
        %1477 = vdwg.mxu0
        %1478 = vmatprep.subr.bf16.mxu0 %v1156
        %1479 = vmatpush1.bf16.msra.mxu0 %v1155
        %1480 = vmatprep.subr.bf16.mxu0 %v1148
        %1481 = vmatpush1.bf16.msra.mxu0 %v1147
        %1482 = vmatprep.subr.bf16.mxu0 %v1140
        %1483 = vmatpush1.bf16.msra.mxu0 %v1139
        %1484 = vmatprep.subr.bf16.mxu0 %v1132
        %1485 = vmatpush1.bf16.msra.mxu0 %v1131
        %1486 = vmatprep.subr.bf16.mxu0 %v1124
        %1487 = vmatpush1.bf16.msra.mxu0 %v1123
        %1488 = vmatprep.subr.bf16.mxu0 %v1116
        %1489 = vmatpush1.bf16.msra.mxu0 %v1115
        %1490 = vmatprep.subr.bf16.mxu0 %v1108
        %1491 = vmatpush1.bf16.msra.mxu0 %v1107
        %1492 = vmatprep.subr.bf16.mxu0 %v1100
        %1493 = vmatpush1.bf16.msra.mxu0 %v1099
        %1494 = vmatprep.subr.bf16.mxu0 %v1220
        %1495 = vmatpush2.bf16.msra.mxu0 %v1219
        %1496 = vmatprep.subr.bf16.mxu0 %v1212
        %1497 = vmatpush2.bf16.msra.mxu0 %v1211
        %1498 = vmatprep.subr.bf16.mxu0 %v1204
        %1499 = vmatpush2.bf16.msra.mxu0 %v1203
        %1500 = vmatprep.subr.bf16.mxu0 %v1196
        %1501 = vmatpush2.bf16.msra.mxu0 %v1195
        %1502 = vmatprep.subr.bf16.mxu0 %v1188
        %1503 = vmatpush2.bf16.msra.mxu0 %v1187
        %1504 = vmatprep.subr.bf16.mxu0 %v1180
        %1505 = vmatpush2.bf16.msra.mxu0 %v1179
        %1506 = vmatprep.subr.bf16.mxu0 %v1172
        %1507 = vmatpush2.bf16.msra.mxu0 %v1171
        %1508 = vmatprep.subr.bf16.mxu0 %v1164
        %1509 = vmatpush2.bf16.msra.mxu0 %v1163
        %1510 = vmatprep.mubr.bf16.mxu0 %v706
        %1511 = vmatmul.mubr.bf16.gmra.mxu0 %v705
        %v1512 = vpop.f32.mrf.mxu0
        %v1513 = vadd.f32 0.0, %v1512
        %v1514 = vpop.f32.mrf.mxu0
        %v1515 = vadd.f32 0.0, %v1514
        %v1516 = vpop.f32.mrf.mxu0
        %v1517 = vadd.f32 0.0, %v1516
        %v1518 = vpop.f32.mrf.mxu0
        %v1519 = vadd.f32 0.0, %v1518
        %1520 = vdwg.mxu0
        %1521 = vst [vmem:[#allocation2] sm:$0xff] %v1384
        %1522 = vst [vmem:[#allocation2 + $0x8] sm:$0xff] %v1386
        %1523 = vst [vmem:[#allocation2 + $0x10] sm:$0xff] %v1427
        %1524 = vst [vmem:[#allocation2 + $0x18] sm:$0xff] %v1429
        %1525 = vst [vmem:[#allocation2 + $0x20] sm:$0xff] %v1470
        %1526 = vst [vmem:[#allocation2 + $0x28] sm:$0xff] %v1472
        %1527 = vst [vmem:[#allocation2 + $0x30] sm:$0xff] %v1513
        %1528 = vst [vmem:[#allocation2 + $0x38] sm:$0xff] %v1515
        %1529 = vst [vmem:[#allocation2 + $0xc0] sm:$0xff] %v1388
        %1530 = vst [vmem:[#allocation2 + $0xc8] sm:$0xff] %v1390
        %1531 = vst [vmem:[#allocation2 + $0xd0] sm:$0xff] %v1431
        %1532 = vst [vmem:[#allocation2 + $0xd8] sm:$0xff] %v1433
        %1533 = vst [vmem:[#allocation2 + $0xe0] sm:$0xff] %v1474
        %1534 = vst [vmem:[#allocation2 + $0xe8] sm:$0xff] %v1476
        %1535 = vst [vmem:[#allocation2 + $0xf0] sm:$0xff] %v1517
        %1536 = vst [vmem:[#allocation2 + $0xf8] sm:$0xff] %v1519
        %v1537 = vld [vmem:[%s429 + $0x4] sm:$0xff]
        %v1538 = vld [vmem:[%s429 + $0x20] sm:$0xff]
        %v1541 = vunpack.c.l.b16 %v1537
        %v1542 = vunpack.c.h.b16 %v1537
        %v1543 = vunpack.c.l.b16 %v1538
        %v1544 = vunpack.c.h.b16 %v1538
        %v1545 = vpack.c.b16 %v1543, %v1541
        %v1546 = vpack.c.b16 %v1544, %v1542
        %1549 = vmatprep.subr.bf16.mxu0 %v1150
        %1550 = vmatpush1.bf16.msra.mxu0 %v1149
        %1551 = vmatprep.subr.bf16.mxu0 %v1142
        %1552 = vmatpush1.bf16.msra.mxu0 %v1141
        %1553 = vmatprep.subr.bf16.mxu0 %v1134
        %1554 = vmatpush1.bf16.msra.mxu0 %v1133
        %1555 = vmatprep.subr.bf16.mxu0 %v1126
        %1556 = vmatpush1.bf16.msra.mxu0 %v1125
        %1557 = vmatprep.subr.bf16.mxu0 %v1118
        %1558 = vmatpush1.bf16.msra.mxu0 %v1117
        %1559 = vmatprep.subr.bf16.mxu0 %v1110
        %1560 = vmatpush1.bf16.msra.mxu0 %v1109
        %1561 = vmatprep.subr.bf16.mxu0 %v1102
        %1562 = vmatpush1.bf16.msra.mxu0 %v1101
        %1563 = vmatprep.subr.bf16.mxu0 %v1094
        %1564 = vmatpush1.bf16.msra.mxu0 %v1093
        %1565 = vmatprep.subr.bf16.mxu0 %v1214
        %1566 = vmatpush2.bf16.msra.mxu0 %v1213
        %1567 = vmatprep.subr.bf16.mxu0 %v1206
        %1568 = vmatpush2.bf16.msra.mxu0 %v1205
        %1569 = vmatprep.subr.bf16.mxu0 %v1198
        %1570 = vmatpush2.bf16.msra.mxu0 %v1197
        %1571 = vmatprep.subr.bf16.mxu0 %v1190
        %1572 = vmatpush2.bf16.msra.mxu0 %v1189
        %1573 = vmatprep.subr.bf16.mxu0 %v1182
        %1574 = vmatpush2.bf16.msra.mxu0 %v1181
        %1575 = vmatprep.subr.bf16.mxu0 %v1174
        %1576 = vmatpush2.bf16.msra.mxu0 %v1173
        %1577 = vmatprep.subr.bf16.mxu0 %v1166
        %1578 = vmatpush2.bf16.msra.mxu0 %v1165
        %1579 = vmatprep.subr.bf16.mxu0 %v1158
        %1580 = vmatpush2.bf16.msra.mxu0 %v1157
        %1581 = vmatprep.mubr.bf16.mxu0 %v1546
        %1582 = vmatmul.mubr.bf16.gmra.mxu0 %v1545
        %v1583 = vpop.f32.mrf.mxu0
        %v1584 = vadd.f32 0.0, %v1583
        %v1585 = vpop.f32.mrf.mxu0
        %v1586 = vadd.f32 0.0, %v1585
        %v1587 = vpop.f32.mrf.mxu0
        %v1588 = vadd.f32 0.0, %v1587
        %v1589 = vpop.f32.mrf.mxu0
        %v1590 = vadd.f32 0.0, %v1589
        %1591 = vdwg.mxu0
        %1592 = vmatprep.subr.bf16.mxu0 %v1152
        %1593 = vmatpush1.bf16.msra.mxu0 %v1151
        %1594 = vmatprep.subr.bf16.mxu0 %v1144
        %1595 = vmatpush1.bf16.msra.mxu0 %v1143
        %1596 = vmatprep.subr.bf16.mxu0 %v1136
        %1597 = vmatpush1.bf16.msra.mxu0 %v1135
        %1598 = vmatprep.subr.bf16.mxu0 %v1128
        %1599 = vmatpush1.bf16.msra.mxu0 %v1127
        %1600 = vmatprep.subr.bf16.mxu0 %v1120
        %1601 = vmatpush1.bf16.msra.mxu0 %v1119
        %1602 = vmatprep.subr.bf16.mxu0 %v1112
        %1603 = vmatpush1.bf16.msra.mxu0 %v1111
        %1604 = vmatprep.subr.bf16.mxu0 %v1104
        %1605 = vmatpush1.bf16.msra.mxu0 %v1103
        %1606 = vmatprep.subr.bf16.mxu0 %v1096
        %1607 = vmatpush1.bf16.msra.mxu0 %v1095
        %1608 = vmatprep.subr.bf16.mxu0 %v1216
        %1609 = vmatpush2.bf16.msra.mxu0 %v1215
        %1610 = vmatprep.subr.bf16.mxu0 %v1208
        %1611 = vmatpush2.bf16.msra.mxu0 %v1207
        %1612 = vmatprep.subr.bf16.mxu0 %v1200
        %1613 = vmatpush2.bf16.msra.mxu0 %v1199
        %1614 = vmatprep.subr.bf16.mxu0 %v1192
        %1615 = vmatpush2.bf16.msra.mxu0 %v1191
        %1616 = vmatprep.subr.bf16.mxu0 %v1184
        %1617 = vmatpush2.bf16.msra.mxu0 %v1183
        %1618 = vmatprep.subr.bf16.mxu0 %v1176
        %1619 = vmatpush2.bf16.msra.mxu0 %v1175
        %1620 = vmatprep.subr.bf16.mxu0 %v1168
        %1621 = vmatpush2.bf16.msra.mxu0 %v1167
        %1622 = vmatprep.subr.bf16.mxu0 %v1160
        %1623 = vmatpush2.bf16.msra.mxu0 %v1159
        %1624 = vmatprep.mubr.bf16.mxu0 %v1546
        %1625 = vmatmul.mubr.bf16.gmra.mxu0 %v1545
        %v1626 = vpop.f32.mrf.mxu0
        %v1627 = vadd.f32 0.0, %v1626
        %v1628 = vpop.f32.mrf.mxu0
        %v1629 = vadd.f32 0.0, %v1628
        %v1630 = vpop.f32.mrf.mxu0
        %v1631 = vadd.f32 0.0, %v1630
        %v1632 = vpop.f32.mrf.mxu0
        %v1633 = vadd.f32 0.0, %v1632
        %1634 = vdwg.mxu0
        %1635 = vmatprep.subr.bf16.mxu0 %v1154
        %1636 = vmatpush1.bf16.msra.mxu0 %v1153
        %1637 = vmatprep.subr.bf16.mxu0 %v1146
        %1638 = vmatpush1.bf16.msra.mxu0 %v1145
        %1639 = vmatprep.subr.bf16.mxu0 %v1138
        %1640 = vmatpush1.bf16.msra.mxu0 %v1137
        %1641 = vmatprep.subr.bf16.mxu0 %v1130
        %1642 = vmatpush1.bf16.msra.mxu0 %v1129
        %1643 = vmatprep.subr.bf16.mxu0 %v1122
        %1644 = vmatpush1.bf16.msra.mxu0 %v1121
        %1645 = vmatprep.subr.bf16.mxu0 %v1114
        %1646 = vmatpush1.bf16.msra.mxu0 %v1113
        %1647 = vmatprep.subr.bf16.mxu0 %v1106
        %1648 = vmatpush1.bf16.msra.mxu0 %v1105
        %1649 = vmatprep.subr.bf16.mxu0 %v1098
        %1650 = vmatpush1.bf16.msra.mxu0 %v1097
        %1651 = vmatprep.subr.bf16.mxu0 %v1218
        %1652 = vmatpush2.bf16.msra.mxu0 %v1217
        %1653 = vmatprep.subr.bf16.mxu0 %v1210
        %1654 = vmatpush2.bf16.msra.mxu0 %v1209
        %1655 = vmatprep.subr.bf16.mxu0 %v1202
        %1656 = vmatpush2.bf16.msra.mxu0 %v1201
        %1657 = vmatprep.subr.bf16.mxu0 %v1194
        %1658 = vmatpush2.bf16.msra.mxu0 %v1193
        %1659 = vmatprep.subr.bf16.mxu0 %v1186
        %1660 = vmatpush2.bf16.msra.mxu0 %v1185
        %1661 = vmatprep.subr.bf16.mxu0 %v1178
        %1662 = vmatpush2.bf16.msra.mxu0 %v1177
        %1663 = vmatprep.subr.bf16.mxu0 %v1170
        %1664 = vmatpush2.bf16.msra.mxu0 %v1169
        %1665 = vmatprep.subr.bf16.mxu0 %v1162
        %1666 = vmatpush2.bf16.msra.mxu0 %v1161
        %1667 = vmatprep.mubr.bf16.mxu0 %v1546
        %1668 = vmatmul.mubr.bf16.gmra.mxu0 %v1545
        %v1669 = vpop.f32.mrf.mxu0
        %v1670 = vadd.f32 0.0, %v1669
        %v1671 = vpop.f32.mrf.mxu0
        %v1672 = vadd.f32 0.0, %v1671
        %v1673 = vpop.f32.mrf.mxu0
        %v1674 = vadd.f32 0.0, %v1673
        %v1675 = vpop.f32.mrf.mxu0
        %v1676 = vadd.f32 0.0, %v1675
        %1677 = vdwg.mxu0
        %1678 = vmatprep.subr.bf16.mxu0 %v1156
        %1679 = vmatpush1.bf16.msra.mxu0 %v1155
        %1680 = vmatprep.subr.bf16.mxu0 %v1148
        %1681 = vmatpush1.bf16.msra.mxu0 %v1147
        %1682 = vmatprep.subr.bf16.mxu0 %v1140
        %1683 = vmatpush1.bf16.msra.mxu0 %v1139
        %1684 = vmatprep.subr.bf16.mxu0 %v1132
        %1685 = vmatpush1.bf16.msra.mxu0 %v1131
        %1686 = vmatprep.subr.bf16.mxu0 %v1124
        %1687 = vmatpush1.bf16.msra.mxu0 %v1123
        %1688 = vmatprep.subr.bf16.mxu0 %v1116
        %1689 = vmatpush1.bf16.msra.mxu0 %v1115
        %1690 = vmatprep.subr.bf16.mxu0 %v1108
        %1691 = vmatpush1.bf16.msra.mxu0 %v1107
        %1692 = vmatprep.subr.bf16.mxu0 %v1100
        %1693 = vmatpush1.bf16.msra.mxu0 %v1099
        %1694 = vmatprep.subr.bf16.mxu0 %v1220
        %1695 = vmatpush2.bf16.msra.mxu0 %v1219
        %1696 = vmatprep.subr.bf16.mxu0 %v1212
        %1697 = vmatpush2.bf16.msra.mxu0 %v1211
        %1698 = vmatprep.subr.bf16.mxu0 %v1204
        %1699 = vmatpush2.bf16.msra.mxu0 %v1203
        %1700 = vmatprep.subr.bf16.mxu0 %v1196
        %1701 = vmatpush2.bf16.msra.mxu0 %v1195
        %1702 = vmatprep.subr.bf16.mxu0 %v1188
        %1703 = vmatpush2.bf16.msra.mxu0 %v1187
        %1704 = vmatprep.subr.bf16.mxu0 %v1180
        %1705 = vmatpush2.bf16.msra.mxu0 %v1179
        %1706 = vmatprep.subr.bf16.mxu0 %v1172
        %1707 = vmatpush2.bf16.msra.mxu0 %v1171
        %1708 = vmatprep.subr.bf16.mxu0 %v1164
        %1709 = vmatpush2.bf16.msra.mxu0 %v1163
        %1710 = vmatprep.mubr.bf16.mxu0 %v1546
        %1711 = vmatmul.mubr.bf16.gmra.mxu0 %v1545
        %v1712 = vpop.f32.mrf.mxu0
        %v1713 = vadd.f32 0.0, %v1712
        %v1714 = vpop.f32.mrf.mxu0
        %v1715 = vadd.f32 0.0, %v1714
        %v1716 = vpop.f32.mrf.mxu0
        %v1717 = vadd.f32 0.0, %v1716
        %v1718 = vpop.f32.mrf.mxu0
        %v1719 = vadd.f32 0.0, %v1718
        %1720 = vdwg.mxu0
        %1721 = vst [vmem:[#allocation2 + $0x40] sm:$0xff] %v1584
        %1722 = vst [vmem:[#allocation2 + $0x48] sm:$0xff] %v1586
        %1723 = vst [vmem:[#allocation2 + $0x50] sm:$0xff] %v1627
        %1724 = vst [vmem:[#allocation2 + $0x58] sm:$0xff] %v1629
        %1725 = vst [vmem:[#allocation2 + $0x60] sm:$0xff] %v1670
        %1726 = vst [vmem:[#allocation2 + $0x68] sm:$0xff] %v1672
        %1727 = vst [vmem:[#allocation2 + $0x70] sm:$0xff] %v1713
        %1728 = vst [vmem:[#allocation2 + $0x78] sm:$0xff] %v1715
        %1729 = vst [vmem:[#allocation2 + $0x100] sm:$0xff] %v1588
        %1730 = vst [vmem:[#allocation2 + $0x108] sm:$0xff] %v1590
        %1731 = vst [vmem:[#allocation2 + $0x110] sm:$0xff] %v1631
        %1732 = vst [vmem:[#allocation2 + $0x118] sm:$0xff] %v1633
        %1733 = vst [vmem:[#allocation2 + $0x120] sm:$0xff] %v1674
        %1734 = vst [vmem:[#allocation2 + $0x128] sm:$0xff] %v1676
        %1735 = vst [vmem:[#allocation2 + $0x130] sm:$0xff] %v1717
        %1736 = vst [vmem:[#allocation2 + $0x138] sm:$0xff] %v1719
        %v1737 = vld [vmem:[%s429 + $0x8] sm:$0xff]
        %v1738 = vld [vmem:[%s429 + $0x24] sm:$0xff]
        %v1741 = vunpack.c.l.b16 %v1737
        %v1742 = vunpack.c.h.b16 %v1737
        %v1743 = vunpack.c.l.b16 %v1738
        %v1744 = vunpack.c.h.b16 %v1738
        %v1745 = vpack.c.b16 %v1743, %v1741
        %v1746 = vpack.c.b16 %v1744, %v1742
        %1749 = vmatprep.subr.bf16.mxu0 %v1150
        %1750 = vmatpush1.bf16.msra.mxu0 %v1149
        %1751 = vmatprep.subr.bf16.mxu0 %v1142
        %1752 = vmatpush1.bf16.msra.mxu0 %v1141
        %1753 = vmatprep.subr.bf16.mxu0 %v1134
        %1754 = vmatpush1.bf16.msra.mxu0 %v1133
        %1755 = vmatprep.subr.bf16.mxu0 %v1126
        %1756 = vmatpush1.bf16.msra.mxu0 %v1125
        %1757 = vmatprep.subr.bf16.mxu0 %v1118
        %1758 = vmatpush1.bf16.msra.mxu0 %v1117
        %1759 = vmatprep.subr.bf16.mxu0 %v1110
        %1760 = vmatpush1.bf16.msra.mxu0 %v1109
        %1761 = vmatprep.subr.bf16.mxu0 %v1102
        %1762 = vmatpush1.bf16.msra.mxu0 %v1101
        %1763 = vmatprep.subr.bf16.mxu0 %v1094
        %1764 = vmatpush1.bf16.msra.mxu0 %v1093
        %1765 = vmatprep.subr.bf16.mxu0 %v1214
        %1766 = vmatpush2.bf16.msra.mxu0 %v1213
        %1767 = vmatprep.subr.bf16.mxu0 %v1206
        %1768 = vmatpush2.bf16.msra.mxu0 %v1205
        %1769 = vmatprep.subr.bf16.mxu0 %v1198
        %1770 = vmatpush2.bf16.msra.mxu0 %v1197
        %1771 = vmatprep.subr.bf16.mxu0 %v1190
        %1772 = vmatpush2.bf16.msra.mxu0 %v1189
        %1773 = vmatprep.subr.bf16.mxu0 %v1182
        %1774 = vmatpush2.bf16.msra.mxu0 %v1181
        %1775 = vmatprep.subr.bf16.mxu0 %v1174
        %1776 = vmatpush2.bf16.msra.mxu0 %v1173
        %1777 = vmatprep.subr.bf16.mxu0 %v1166
        %1778 = vmatpush2.bf16.msra.mxu0 %v1165
        %1779 = vmatprep.subr.bf16.mxu0 %v1158
        %1780 = vmatpush2.bf16.msra.mxu0 %v1157
        %1781 = vmatprep.mubr.bf16.mxu0 %v1746
        %1782 = vmatmul.mubr.bf16.gmra.mxu0 %v1745
        %v1783 = vpop.f32.mrf.mxu0
        %v1784 = vadd.f32 0.0, %v1783
        %v1785 = vpop.f32.mrf.mxu0
        %v1786 = vadd.f32 0.0, %v1785
        %v1787 = vpop.f32.mrf.mxu0
        %v1788 = vadd.f32 0.0, %v1787
        %v1789 = vpop.f32.mrf.mxu0
        %v1790 = vadd.f32 0.0, %v1789
        %1791 = vdwg.mxu0
        %1792 = vmatprep.subr.bf16.mxu0 %v1152
        %1793 = vmatpush1.bf16.msra.mxu0 %v1151
        %1794 = vmatprep.subr.bf16.mxu0 %v1144
        %1795 = vmatpush1.bf16.msra.mxu0 %v1143
        %1796 = vmatprep.subr.bf16.mxu0 %v1136
        %1797 = vmatpush1.bf16.msra.mxu0 %v1135
        %1798 = vmatprep.subr.bf16.mxu0 %v1128
        %1799 = vmatpush1.bf16.msra.mxu0 %v1127
        %1800 = vmatprep.subr.bf16.mxu0 %v1120
        %1801 = vmatpush1.bf16.msra.mxu0 %v1119
        %1802 = vmatprep.subr.bf16.mxu0 %v1112
        %1803 = vmatpush1.bf16.msra.mxu0 %v1111
        %1804 = vmatprep.subr.bf16.mxu0 %v1104
        %1805 = vmatpush1.bf16.msra.mxu0 %v1103
        %1806 = vmatprep.subr.bf16.mxu0 %v1096
        %1807 = vmatpush1.bf16.msra.mxu0 %v1095
        %1808 = vmatprep.subr.bf16.mxu0 %v1216
        %1809 = vmatpush2.bf16.msra.mxu0 %v1215
        %1810 = vmatprep.subr.bf16.mxu0 %v1208
        %1811 = vmatpush2.bf16.msra.mxu0 %v1207
        %1812 = vmatprep.subr.bf16.mxu0 %v1200
        %1813 = vmatpush2.bf16.msra.mxu0 %v1199
        %1814 = vmatprep.subr.bf16.mxu0 %v1192
        %1815 = vmatpush2.bf16.msra.mxu0 %v1191
        %1816 = vmatprep.subr.bf16.mxu0 %v1184
        %1817 = vmatpush2.bf16.msra.mxu0 %v1183
        %1818 = vmatprep.subr.bf16.mxu0 %v1176
        %1819 = vmatpush2.bf16.msra.mxu0 %v1175
        %1820 = vmatprep.subr.bf16.mxu0 %v1168
        %1821 = vmatpush2.bf16.msra.mxu0 %v1167
        %1822 = vmatprep.subr.bf16.mxu0 %v1160
        %1823 = vmatpush2.bf16.msra.mxu0 %v1159
        %1824 = vmatprep.mubr.bf16.mxu0 %v1746
        %1825 = vmatmul.mubr.bf16.gmra.mxu0 %v1745
        %v1826 = vpop.f32.mrf.mxu0
        %v1827 = vadd.f32 0.0, %v1826
        %v1828 = vpop.f32.mrf.mxu0
        %v1829 = vadd.f32 0.0, %v1828
        %v1830 = vpop.f32.mrf.mxu0
        %v1831 = vadd.f32 0.0, %v1830
        %v1832 = vpop.f32.mrf.mxu0
        %v1833 = vadd.f32 0.0, %v1832
        %1834 = vdwg.mxu0
        %1835 = vmatprep.subr.bf16.mxu0 %v1154
        %1836 = vmatpush1.bf16.msra.mxu0 %v1153
        %1837 = vmatprep.subr.bf16.mxu0 %v1146
        %1838 = vmatpush1.bf16.msra.mxu0 %v1145
        %1839 = vmatprep.subr.bf16.mxu0 %v1138
        %1840 = vmatpush1.bf16.msra.mxu0 %v1137
        %1841 = vmatprep.subr.bf16.mxu0 %v1130
        %1842 = vmatpush1.bf16.msra.mxu0 %v1129
        %1843 = vmatprep.subr.bf16.mxu0 %v1122
        %1844 = vmatpush1.bf16.msra.mxu0 %v1121
        %1845 = vmatprep.subr.bf16.mxu0 %v1114
        %1846 = vmatpush1.bf16.msra.mxu0 %v1113
        %1847 = vmatprep.subr.bf16.mxu0 %v1106
        %1848 = vmatpush1.bf16.msra.mxu0 %v1105
        %1849 = vmatprep.subr.bf16.mxu0 %v1098
        %1850 = vmatpush1.bf16.msra.mxu0 %v1097
        %1851 = vmatprep.subr.bf16.mxu0 %v1218
        %1852 = vmatpush2.bf16.msra.mxu0 %v1217
        %1853 = vmatprep.subr.bf16.mxu0 %v1210
        %1854 = vmatpush2.bf16.msra.mxu0 %v1209
        %1855 = vmatprep.subr.bf16.mxu0 %v1202
        %1856 = vmatpush2.bf16.msra.mxu0 %v1201
        %1857 = vmatprep.subr.bf16.mxu0 %v1194
        %1858 = vmatpush2.bf16.msra.mxu0 %v1193
        %1859 = vmatprep.subr.bf16.mxu0 %v1186
        %1860 = vmatpush2.bf16.msra.mxu0 %v1185
        %1861 = vmatprep.subr.bf16.mxu0 %v1178
        %1862 = vmatpush2.bf16.msra.mxu0 %v1177
        %1863 = vmatprep.subr.bf16.mxu0 %v1170
        %1864 = vmatpush2.bf16.msra.mxu0 %v1169
        %1865 = vmatprep.subr.bf16.mxu0 %v1162
        %1866 = vmatpush2.bf16.msra.mxu0 %v1161
        %1867 = vmatprep.mubr.bf16.mxu0 %v1746
        %1868 = vmatmul.mubr.bf16.gmra.mxu0 %v1745
        %v1869 = vpop.f32.mrf.mxu0
        %v1870 = vadd.f32 0.0, %v1869
        %v1871 = vpop.f32.mrf.mxu0
        %v1872 = vadd.f32 0.0, %v1871
        %v1873 = vpop.f32.mrf.mxu0
        %v1874 = vadd.f32 0.0, %v1873
        %v1875 = vpop.f32.mrf.mxu0
        %v1876 = vadd.f32 0.0, %v1875
        %1877 = vdwg.mxu0
        %1878 = vmatprep.subr.bf16.mxu0 %v1156
        %1879 = vmatpush1.bf16.msra.mxu0 %v1155
        %1880 = vmatprep.subr.bf16.mxu0 %v1148
        %1881 = vmatpush1.bf16.msra.mxu0 %v1147
        %1882 = vmatprep.subr.bf16.mxu0 %v1140
        %1883 = vmatpush1.bf16.msra.mxu0 %v1139
        %1884 = vmatprep.subr.bf16.mxu0 %v1132
        %1885 = vmatpush1.bf16.msra.mxu0 %v1131
        %1886 = vmatprep.subr.bf16.mxu0 %v1124
        %1887 = vmatpush1.bf16.msra.mxu0 %v1123
        %1888 = vmatprep.subr.bf16.mxu0 %v1116
        %1889 = vmatpush1.bf16.msra.mxu0 %v1115
        %1890 = vmatprep.subr.bf16.mxu0 %v1108
        %1891 = vmatpush1.bf16.msra.mxu0 %v1107
        %1892 = vmatprep.subr.bf16.mxu0 %v1100
        %1893 = vmatpush1.bf16.msra.mxu0 %v1099
        %1894 = vmatprep.subr.bf16.mxu0 %v1220
        %1895 = vmatpush2.bf16.msra.mxu0 %v1219
        %1896 = vmatprep.subr.bf16.mxu0 %v1212
        %1897 = vmatpush2.bf16.msra.mxu0 %v1211
        %1898 = vmatprep.subr.bf16.mxu0 %v1204
        %1899 = vmatpush2.bf16.msra.mxu0 %v1203
        %1900 = vmatprep.subr.bf16.mxu0 %v1196
        %1901 = vmatpush2.bf16.msra.mxu0 %v1195
        %1902 = vmatprep.subr.bf16.mxu0 %v1188
        %1903 = vmatpush2.bf16.msra.mxu0 %v1187
        %1904 = vmatprep.subr.bf16.mxu0 %v1180
        %1905 = vmatpush2.bf16.msra.mxu0 %v1179
        %1906 = vmatprep.subr.bf16.mxu0 %v1172
        %1907 = vmatpush2.bf16.msra.mxu0 %v1171
        %1908 = vmatprep.subr.bf16.mxu0 %v1164
        %1909 = vmatpush2.bf16.msra.mxu0 %v1163
        %1910 = vmatprep.mubr.bf16.mxu0 %v1746
        %1911 = vmatmul.mubr.bf16.gmra.mxu0 %v1745
        %v1912 = vpop.f32.mrf.mxu0
        %v1913 = vadd.f32 0.0, %v1912
        %v1914 = vpop.f32.mrf.mxu0
        %v1915 = vadd.f32 0.0, %v1914
        %v1916 = vpop.f32.mrf.mxu0
        %v1917 = vadd.f32 0.0, %v1916
        %v1918 = vpop.f32.mrf.mxu0
        %v1919 = vadd.f32 0.0, %v1918
        %1920 = vdwg.mxu0
        %1921 = vst [vmem:[#allocation2 + $0x80] sm:$0xff] %v1784
        %1922 = vst [vmem:[#allocation2 + $0x88] sm:$0xff] %v1786
        %1923 = vst [vmem:[#allocation2 + $0x90] sm:$0xff] %v1827
        %1924 = vst [vmem:[#allocation2 + $0x98] sm:$0xff] %v1829
        %1925 = vst [vmem:[#allocation2 + $0xa0] sm:$0xff] %v1870
        %1926 = vst [vmem:[#allocation2 + $0xa8] sm:$0xff] %v1872
        %1927 = vst [vmem:[#allocation2 + $0xb0] sm:$0xff] %v1913
        %1928 = vst [vmem:[#allocation2 + $0xb8] sm:$0xff] %v1915
        %1929 = vst [vmem:[#allocation2 + $0x140] sm:$0xff] %v1788
        %1930 = vst [vmem:[#allocation2 + $0x148] sm:$0xff] %v1790
        %1931 = vst [vmem:[#allocation2 + $0x150] sm:$0xff] %v1831
        %1932 = vst [vmem:[#allocation2 + $0x158] sm:$0xff] %v1833
        %1933 = vst [vmem:[#allocation2 + $0x160] sm:$0xff] %v1874
        %1934 = vst [vmem:[#allocation2 + $0x168] sm:$0xff] %v1876
        %1935 = vst [vmem:[#allocation2 + $0x170] sm:$0xff] %v1917
        %1936 = vst [vmem:[#allocation2 + $0x178] sm:$0xff] %v1919
        %v1937 = vld [vmem:[#allocation2] sm:$0xff]
        %v1938 = vld [vmem:[#allocation2 + $0xc0] sm:$0xff]
        %v1939 = vld [vmem:[#allocation2 + $0x8] sm:$0xff]
        %v1940 = vld [vmem:[#allocation2 + $0xc8] sm:$0xff]
        %v1941 = vmax.f32 %v1937, %v1939
        %v1942 = vmax.f32 %v1938, %v1940
        %v1943 = vld [vmem:[#allocation2 + $0x10] sm:$0xff]
        %v1944 = vld [vmem:[#allocation2 + $0xd0] sm:$0xff]
        %v1945 = vld [vmem:[#allocation2 + $0x18] sm:$0xff]
        %v1946 = vld [vmem:[#allocation2 + $0xd8] sm:$0xff]
        %v1947 = vmax.f32 %v1943, %v1945
        %v1948 = vmax.f32 %v1944, %v1946
        %v1949 = vmax.f32 %v1941, %v1947
        %v1950 = vmax.f32 %v1942, %v1948
        %v1952 = vlaneseq
        %v1953 = vshrl.u32 %v1952, 7
        %v1954 = vsub.s32 0, %v1953
        %v1955 = vrot.slane %v694, %v1954
        %v1957 = vadd.f32 %v1949, %v1955
        %v1958 = vadd.f32 %v1950, %v1955
        %v1959 = vmax.f32 %v1957, 0.0
        %v1960 = vmax.f32 %v1958, 0.0
        %v1961 = vpack.c.bf16 %v1960, %v1959
        %v1963 = vunpack.c.l.b16 %v1961
        %v1964 = vunpack.c.h.b16 %v1961
        %v1965 = vpack.c.b16 %v1963, %v1963
        %v1966 = vpack.c.b16 %v1964, %v1964
        %1969 = vst [vmem:[#allocation3] sm:$0xf] %v1965
        %1970 = vst [vmem:[#allocation3 + $0x30] sm:$0xf] %v1966
        %v1971 = vld [vmem:[#allocation2 + $0x20] sm:$0xff]
        %v1972 = vld [vmem:[#allocation2 + $0xe0] sm:$0xff]
        %v1973 = vld [vmem:[#allocation2 + $0x28] sm:$0xff]
        %v1974 = vld [vmem:[#allocation2 + $0xe8] sm:$0xff]
        %v1975 = vmax.f32 %v1971, %v1973
        %v1976 = vmax.f32 %v1972, %v1974
        %v1977 = vld [vmem:[#allocation2 + $0x30] sm:$0xff]
        %v1978 = vld [vmem:[#allocation2 + $0xf0] sm:$0xff]
        %v1979 = vld [vmem:[#allocation2 + $0x38] sm:$0xff]
        %v1980 = vld [vmem:[#allocation2 + $0xf8] sm:$0xff]
        %v1981 = vmax.f32 %v1977, %v1979
        %v1982 = vmax.f32 %v1978, %v1980
        %v1983 = vmax.f32 %v1975, %v1981
        %v1984 = vmax.f32 %v1976, %v1982
        %v1985 = vadd.f32 %v1983, %v1955
        %v1986 = vadd.f32 %v1984, %v1955
        %v1987 = vmax.f32 %v1985, 0.0
        %v1988 = vmax.f32 %v1986, 0.0
        %v1989 = vpack.c.bf16 %v1988, %v1987
        %v1991 = vunpack.c.l.b16 %v1989
        %v1992 = vunpack.c.h.b16 %v1989
        %v1993 = vpack.c.b16 %v1991, %v1991
        %v1994 = vpack.c.b16 %v1992, %v1992
        %1997 = vst [vmem:[#allocation3 + $0x4] sm:$0xf] %v1993
        %1998 = vst [vmem:[#allocation3 + $0x34] sm:$0xf] %v1994
        %v1999 = vld [vmem:[#allocation2 + $0x40] sm:$0xff]
        %v2000 = vld [vmem:[#allocation2 + $0x100] sm:$0xff]
        %v2001 = vld [vmem:[#allocation2 + $0x48] sm:$0xff]
        %v2002 = vld [vmem:[#allocation2 + $0x108] sm:$0xff]
        %v2003 = vmax.f32 %v1999, %v2001
        %v2004 = vmax.f32 %v2000, %v2002
        %v2005 = vld [vmem:[#allocation2 + $0x50] sm:$0xff]
        %v2006 = vld [vmem:[#allocation2 + $0x110] sm:$0xff]
        %v2007 = vld [vmem:[#allocation2 + $0x58] sm:$0xff]
        %v2008 = vld [vmem:[#allocation2 + $0x118] sm:$0xff]
        %v2009 = vmax.f32 %v2005, %v2007
        %v2010 = vmax.f32 %v2006, %v2008
        %v2011 = vmax.f32 %v2003, %v2009
        %v2012 = vmax.f32 %v2004, %v2010
        %v2013 = vadd.f32 %v2011, %v1955
        %v2014 = vadd.f32 %v2012, %v1955
        %v2015 = vmax.f32 %v2013, 0.0
        %v2016 = vmax.f32 %v2014, 0.0
        %v2017 = vpack.c.bf16 %v2016, %v2015
        %v2019 = vunpack.c.l.b16 %v2017
        %v2020 = vunpack.c.h.b16 %v2017
        %v2021 = vpack.c.b16 %v2019, %v2019
        %v2022 = vpack.c.b16 %v2020, %v2020
        %2025 = vst [vmem:[#allocation3 + $0x8] sm:$0xf] %v2021
        %2026 = vst [vmem:[#allocation3 + $0x38] sm:$0xf] %v2022
        %v2027 = vld [vmem:[#allocation2 + $0x60] sm:$0xff]
        %v2028 = vld [vmem:[#allocation2 + $0x120] sm:$0xff]
        %v2029 = vld [vmem:[#allocation2 + $0x68] sm:$0xff]
        %v2030 = vld [vmem:[#allocation2 + $0x128] sm:$0xff]
        %v2031 = vmax.f32 %v2027, %v2029
        %v2032 = vmax.f32 %v2028, %v2030
        %v2033 = vld [vmem:[#allocation2 + $0x70] sm:$0xff]
        %v2034 = vld [vmem:[#allocation2 + $0x130] sm:$0xff]
        %v2035 = vld [vmem:[#allocation2 + $0x78] sm:$0xff]
        %v2036 = vld [vmem:[#allocation2 + $0x138] sm:$0xff]
        %v2037 = vmax.f32 %v2033, %v2035
        %v2038 = vmax.f32 %v2034, %v2036
        %v2039 = vmax.f32 %v2031, %v2037
        %v2040 = vmax.f32 %v2032, %v2038
        %v2041 = vadd.f32 %v2039, %v1955
        %v2042 = vadd.f32 %v2040, %v1955
        %v2043 = vmax.f32 %v2041, 0.0
        %v2044 = vmax.f32 %v2042, 0.0
        %v2045 = vpack.c.bf16 %v2044, %v2043
        %v2047 = vunpack.c.l.b16 %v2045
        %v2048 = vunpack.c.h.b16 %v2045
        %v2049 = vpack.c.b16 %v2047, %v2047
        %v2050 = vpack.c.b16 %v2048, %v2048
        %2053 = vst [vmem:[#allocation3 + $0xc] sm:$0xf] %v2049
        %2054 = vst [vmem:[#allocation3 + $0x3c] sm:$0xf] %v2050
        %v2055 = vld [vmem:[#allocation2 + $0x80] sm:$0xff]
        %v2056 = vld [vmem:[#allocation2 + $0x140] sm:$0xff]
        %v2057 = vld [vmem:[#allocation2 + $0x88] sm:$0xff]
        %v2058 = vld [vmem:[#allocation2 + $0x148] sm:$0xff]
        %v2059 = vmax.f32 %v2055, %v2057
        %v2060 = vmax.f32 %v2056, %v2058
        %v2061 = vld [vmem:[#allocation2 + $0x90] sm:$0xff]
        %v2062 = vld [vmem:[#allocation2 + $0x150] sm:$0xff]
        %v2063 = vld [vmem:[#allocation2 + $0x98] sm:$0xff]
        %v2064 = vld [vmem:[#allocation2 + $0x158] sm:$0xff]
        %v2065 = vmax.f32 %v2061, %v2063
        %v2066 = vmax.f32 %v2062, %v2064
        %v2067 = vmax.f32 %v2059, %v2065
        %v2068 = vmax.f32 %v2060, %v2066
        %v2069 = vadd.f32 %v2067, %v1955
        %v2070 = vadd.f32 %v2068, %v1955
        %v2071 = vmax.f32 %v2069, 0.0
        %v2072 = vmax.f32 %v2070, 0.0
        %v2073 = vpack.c.bf16 %v2072, %v2071
        %v2075 = vunpack.c.l.b16 %v2073
        %v2076 = vunpack.c.h.b16 %v2073
        %v2077 = vpack.c.b16 %v2075, %v2075
        %v2078 = vpack.c.b16 %v2076, %v2076
        %2081 = vst [vmem:[#allocation3 + $0x10] sm:$0xf] %v2077
        %2082 = vst [vmem:[#allocation3 + $0x40] sm:$0xf] %v2078
        %v2083 = vld [vmem:[#allocation2 + $0xa0] sm:$0xff]
        %v2084 = vld [vmem:[#allocation2 + $0x160] sm:$0xff]
        %v2085 = vld [vmem:[#allocation2 + $0xa8] sm:$0xff]
        %v2086 = vld [vmem:[#allocation2 + $0x168] sm:$0xff]
        %v2087 = vmax.f32 %v2083, %v2085
        %v2088 = vmax.f32 %v2084, %v2086
        %v2089 = vld [vmem:[#allocation2 + $0xb0] sm:$0xff]
        %v2090 = vld [vmem:[#allocation2 + $0x170] sm:$0xff]
        %v2091 = vld [vmem:[#allocation2 + $0xb8] sm:$0xff]
        %v2092 = vld [vmem:[#allocation2 + $0x178] sm:$0xff]
        %v2093 = vmax.f32 %v2089, %v2091
        %v2094 = vmax.f32 %v2090, %v2092
        %v2095 = vmax.f32 %v2087, %v2093
        %v2096 = vmax.f32 %v2088, %v2094
        %v2097 = vadd.f32 %v2095, %v1955
        %v2098 = vadd.f32 %v2096, %v1955
        %v2099 = vmax.f32 %v2097, 0.0
        %v2100 = vmax.f32 %v2098, 0.0
        %v2101 = vpack.c.bf16 %v2100, %v2099
        %v2103 = vunpack.c.l.b16 %v2101
        %v2104 = vunpack.c.h.b16 %v2101
        %v2105 = vpack.c.b16 %v2103, %v2103
        %v2106 = vpack.c.b16 %v2104, %v2104
        %2109 = vst [vmem:[#allocation3 + $0x14] sm:$0xf] %v2105
        %2110 = vst [vmem:[#allocation3 + $0x44] sm:$0xf] %v2106
        %v2111 = vld [vmem:[%s429 + $0xc] sm:$0xff]
        %v2112 = vld [vmem:[%s429 + $0x28] sm:$0xff]
        %v2115 = vunpack.c.l.b16 %v2111
        %v2116 = vunpack.c.h.b16 %v2111
        %v2117 = vunpack.c.l.b16 %v2112
        %v2118 = vunpack.c.h.b16 %v2112
        %v2119 = vpack.c.b16 %v2117, %v2115
        %v2120 = vpack.c.b16 %v2118, %v2116
        %2123 = vmatprep.subr.bf16.mxu0 %v1150
        %2124 = vmatpush1.bf16.msra.mxu0 %v1149
        %2125 = vmatprep.subr.bf16.mxu0 %v1142
        %2126 = vmatpush1.bf16.msra.mxu0 %v1141
        %2127 = vmatprep.subr.bf16.mxu0 %v1134
        %2128 = vmatpush1.bf16.msra.mxu0 %v1133
        %2129 = vmatprep.subr.bf16.mxu0 %v1126
        %2130 = vmatpush1.bf16.msra.mxu0 %v1125
        %2131 = vmatprep.subr.bf16.mxu0 %v1118
        %2132 = vmatpush1.bf16.msra.mxu0 %v1117
        %2133 = vmatprep.subr.bf16.mxu0 %v1110
        %2134 = vmatpush1.bf16.msra.mxu0 %v1109
        %2135 = vmatprep.subr.bf16.mxu0 %v1102
        %2136 = vmatpush1.bf16.msra.mxu0 %v1101
        %2137 = vmatprep.subr.bf16.mxu0 %v1094
        %2138 = vmatpush1.bf16.msra.mxu0 %v1093
        %2139 = vmatprep.subr.bf16.mxu0 %v1214
        %2140 = vmatpush2.bf16.msra.mxu0 %v1213
        %2141 = vmatprep.subr.bf16.mxu0 %v1206
        %2142 = vmatpush2.bf16.msra.mxu0 %v1205
        %2143 = vmatprep.subr.bf16.mxu0 %v1198
        %2144 = vmatpush2.bf16.msra.mxu0 %v1197
        %2145 = vmatprep.subr.bf16.mxu0 %v1190
        %2146 = vmatpush2.bf16.msra.mxu0 %v1189
        %2147 = vmatprep.subr.bf16.mxu0 %v1182
        %2148 = vmatpush2.bf16.msra.mxu0 %v1181
        %2149 = vmatprep.subr.bf16.mxu0 %v1174
        %2150 = vmatpush2.bf16.msra.mxu0 %v1173
        %2151 = vmatprep.subr.bf16.mxu0 %v1166
        %2152 = vmatpush2.bf16.msra.mxu0 %v1165
        %2153 = vmatprep.subr.bf16.mxu0 %v1158
        %2154 = vmatpush2.bf16.msra.mxu0 %v1157
        %2155 = vmatprep.mubr.bf16.mxu0 %v2120
        %2156 = vmatmul.mubr.bf16.gmra.mxu0 %v2119
        %v2157 = vpop.f32.mrf.mxu0
        %v2158 = vadd.f32 0.0, %v2157
        %v2159 = vpop.f32.mrf.mxu0
        %v2160 = vadd.f32 0.0, %v2159
        %v2161 = vpop.f32.mrf.mxu0
        %v2162 = vadd.f32 0.0, %v2161
        %v2163 = vpop.f32.mrf.mxu0
        %v2164 = vadd.f32 0.0, %v2163
        %2165 = vdwg.mxu0
        %2166 = vmatprep.subr.bf16.mxu0 %v1152
        %2167 = vmatpush1.bf16.msra.mxu0 %v1151
        %2168 = vmatprep.subr.bf16.mxu0 %v1144
        %2169 = vmatpush1.bf16.msra.mxu0 %v1143
        %2170 = vmatprep.subr.bf16.mxu0 %v1136
        %2171 = vmatpush1.bf16.msra.mxu0 %v1135
        %2172 = vmatprep.subr.bf16.mxu0 %v1128
        %2173 = vmatpush1.bf16.msra.mxu0 %v1127
        %2174 = vmatprep.subr.bf16.mxu0 %v1120
        %2175 = vmatpush1.bf16.msra.mxu0 %v1119
        %2176 = vmatprep.subr.bf16.mxu0 %v1112
        %2177 = vmatpush1.bf16.msra.mxu0 %v1111
        %2178 = vmatprep.subr.bf16.mxu0 %v1104
        %2179 = vmatpush1.bf16.msra.mxu0 %v1103
        %2180 = vmatprep.subr.bf16.mxu0 %v1096
        %2181 = vmatpush1.bf16.msra.mxu0 %v1095
        %2182 = vmatprep.subr.bf16.mxu0 %v1216
        %2183 = vmatpush2.bf16.msra.mxu0 %v1215
        %2184 = vmatprep.subr.bf16.mxu0 %v1208
        %2185 = vmatpush2.bf16.msra.mxu0 %v1207
        %2186 = vmatprep.subr.bf16.mxu0 %v1200
        %2187 = vmatpush2.bf16.msra.mxu0 %v1199
        %2188 = vmatprep.subr.bf16.mxu0 %v1192
        %2189 = vmatpush2.bf16.msra.mxu0 %v1191
        %2190 = vmatprep.subr.bf16.mxu0 %v1184
        %2191 = vmatpush2.bf16.msra.mxu0 %v1183
        %2192 = vmatprep.subr.bf16.mxu0 %v1176
        %2193 = vmatpush2.bf16.msra.mxu0 %v1175
        %2194 = vmatprep.subr.bf16.mxu0 %v1168
        %2195 = vmatpush2.bf16.msra.mxu0 %v1167
        %2196 = vmatprep.subr.bf16.mxu0 %v1160
        %2197 = vmatpush2.bf16.msra.mxu0 %v1159
        %2198 = vmatprep.mubr.bf16.mxu0 %v2120
        %2199 = vmatmul.mubr.bf16.gmra.mxu0 %v2119
        %v2200 = vpop.f32.mrf.mxu0
        %v2201 = vadd.f32 0.0, %v2200
        %v2202 = vpop.f32.mrf.mxu0
        %v2203 = vadd.f32 0.0, %v2202
        %v2204 = vpop.f32.mrf.mxu0
        %v2205 = vadd.f32 0.0, %v2204
        %v2206 = vpop.f32.mrf.mxu0
        %v2207 = vadd.f32 0.0, %v2206
        %2208 = vdwg.mxu0
        %2209 = vmatprep.subr.bf16.mxu0 %v1154
        %2210 = vmatpush1.bf16.msra.mxu0 %v1153
        %2211 = vmatprep.subr.bf16.mxu0 %v1146
        %2212 = vmatpush1.bf16.msra.mxu0 %v1145
        %2213 = vmatprep.subr.bf16.mxu0 %v1138
        %2214 = vmatpush1.bf16.msra.mxu0 %v1137
        %2215 = vmatprep.subr.bf16.mxu0 %v1130
        %2216 = vmatpush1.bf16.msra.mxu0 %v1129
        %2217 = vmatprep.subr.bf16.mxu0 %v1122
        %2218 = vmatpush1.bf16.msra.mxu0 %v1121
        %2219 = vmatprep.subr.bf16.mxu0 %v1114
        %2220 = vmatpush1.bf16.msra.mxu0 %v1113
        %2221 = vmatprep.subr.bf16.mxu0 %v1106
        %2222 = vmatpush1.bf16.msra.mxu0 %v1105
        %2223 = vmatprep.subr.bf16.mxu0 %v1098
        %2224 = vmatpush1.bf16.msra.mxu0 %v1097
        %2225 = vmatprep.subr.bf16.mxu0 %v1218
        %2226 = vmatpush2.bf16.msra.mxu0 %v1217
        %2227 = vmatprep.subr.bf16.mxu0 %v1210
        %2228 = vmatpush2.bf16.msra.mxu0 %v1209
        %2229 = vmatprep.subr.bf16.mxu0 %v1202
        %2230 = vmatpush2.bf16.msra.mxu0 %v1201
        %2231 = vmatprep.subr.bf16.mxu0 %v1194
        %2232 = vmatpush2.bf16.msra.mxu0 %v1193
        %2233 = vmatprep.subr.bf16.mxu0 %v1186
        %2234 = vmatpush2.bf16.msra.mxu0 %v1185
        %2235 = vmatprep.subr.bf16.mxu0 %v1178
        %2236 = vmatpush2.bf16.msra.mxu0 %v1177
        %2237 = vmatprep.subr.bf16.mxu0 %v1170
        %2238 = vmatpush2.bf16.msra.mxu0 %v1169
        %2239 = vmatprep.subr.bf16.mxu0 %v1162
        %2240 = vmatpush2.bf16.msra.mxu0 %v1161
        %2241 = vmatprep.mubr.bf16.mxu0 %v2120
        %2242 = vmatmul.mubr.bf16.gmra.mxu0 %v2119
        %v2243 = vpop.f32.mrf.mxu0
        %v2244 = vadd.f32 0.0, %v2243
        %v2245 = vpop.f32.mrf.mxu0
        %v2246 = vadd.f32 0.0, %v2245
        %v2247 = vpop.f32.mrf.mxu0
        %v2248 = vadd.f32 0.0, %v2247
        %v2249 = vpop.f32.mrf.mxu0
        %v2250 = vadd.f32 0.0, %v2249
        %2251 = vdwg.mxu0
        %2252 = vmatprep.subr.bf16.mxu0 %v1156
        %2253 = vmatpush1.bf16.msra.mxu0 %v1155
        %2254 = vmatprep.subr.bf16.mxu0 %v1148
        %2255 = vmatpush1.bf16.msra.mxu0 %v1147
        %2256 = vmatprep.subr.bf16.mxu0 %v1140
        %2257 = vmatpush1.bf16.msra.mxu0 %v1139
        %2258 = vmatprep.subr.bf16.mxu0 %v1132
        %2259 = vmatpush1.bf16.msra.mxu0 %v1131
        %2260 = vmatprep.subr.bf16.mxu0 %v1124
        %2261 = vmatpush1.bf16.msra.mxu0 %v1123
        %2262 = vmatprep.subr.bf16.mxu0 %v1116
        %2263 = vmatpush1.bf16.msra.mxu0 %v1115
        %2264 = vmatprep.subr.bf16.mxu0 %v1108
        %2265 = vmatpush1.bf16.msra.mxu0 %v1107
        %2266 = vmatprep.subr.bf16.mxu0 %v1100
        %2267 = vmatpush1.bf16.msra.mxu0 %v1099
        %2268 = vmatprep.subr.bf16.mxu0 %v1220
        %2269 = vmatpush2.bf16.msra.mxu0 %v1219
        %2270 = vmatprep.subr.bf16.mxu0 %v1212
        %2271 = vmatpush2.bf16.msra.mxu0 %v1211
        %2272 = vmatprep.subr.bf16.mxu0 %v1204
        %2273 = vmatpush2.bf16.msra.mxu0 %v1203
        %2274 = vmatprep.subr.bf16.mxu0 %v1196
        %2275 = vmatpush2.bf16.msra.mxu0 %v1195
        %2276 = vmatprep.subr.bf16.mxu0 %v1188
        %2277 = vmatpush2.bf16.msra.mxu0 %v1187
        %2278 = vmatprep.subr.bf16.mxu0 %v1180
        %2279 = vmatpush2.bf16.msra.mxu0 %v1179
        %2280 = vmatprep.subr.bf16.mxu0 %v1172
        %2281 = vmatpush2.bf16.msra.mxu0 %v1171
        %2282 = vmatprep.subr.bf16.mxu0 %v1164
        %2283 = vmatpush2.bf16.msra.mxu0 %v1163
        %2284 = vmatprep.mubr.bf16.mxu0 %v2120
        %2285 = vmatmul.mubr.bf16.gmra.mxu0 %v2119
        %v2286 = vpop.f32.mrf.mxu0
        %v2287 = vadd.f32 0.0, %v2286
        %v2288 = vpop.f32.mrf.mxu0
        %v2289 = vadd.f32 0.0, %v2288
        %v2290 = vpop.f32.mrf.mxu0
        %v2291 = vadd.f32 0.0, %v2290
        %v2292 = vpop.f32.mrf.mxu0
        %v2293 = vadd.f32 0.0, %v2292
        %2294 = vdwg.mxu0
        %2295 = vst [vmem:[#allocation2] sm:$0xff] %v2158
        %2296 = vst [vmem:[#allocation2 + $0x8] sm:$0xff] %v2160
        %2297 = vst [vmem:[#allocation2 + $0x10] sm:$0xff] %v2201
        %2298 = vst [vmem:[#allocation2 + $0x18] sm:$0xff] %v2203
        %2299 = vst [vmem:[#allocation2 + $0x20] sm:$0xff] %v2244
        %2300 = vst [vmem:[#allocation2 + $0x28] sm:$0xff] %v2246
        %2301 = vst [vmem:[#allocation2 + $0x30] sm:$0xff] %v2287
        %2302 = vst [vmem:[#allocation2 + $0x38] sm:$0xff] %v2289
        %2303 = vst [vmem:[#allocation2 + $0xc0] sm:$0xff] %v2162
        %2304 = vst [vmem:[#allocation2 + $0xc8] sm:$0xff] %v2164
        %2305 = vst [vmem:[#allocation2 + $0xd0] sm:$0xff] %v2205
        %2306 = vst [vmem:[#allocation2 + $0xd8] sm:$0xff] %v2207
        %2307 = vst [vmem:[#allocation2 + $0xe0] sm:$0xff] %v2248
        %2308 = vst [vmem:[#allocation2 + $0xe8] sm:$0xff] %v2250
        %2309 = vst [vmem:[#allocation2 + $0xf0] sm:$0xff] %v2291
        %2310 = vst [vmem:[#allocation2 + $0xf8] sm:$0xff] %v2293
        %v2311 = vld [vmem:[%s429 + $0x10] sm:$0xff]
        %v2312 = vld [vmem:[%s429 + $0x2c] sm:$0xff]
        %v2315 = vunpack.c.l.b16 %v2311
        %v2316 = vunpack.c.h.b16 %v2311
        %v2317 = vunpack.c.l.b16 %v2312
        %v2318 = vunpack.c.h.b16 %v2312
        %v2319 = vpack.c.b16 %v2317, %v2315
        %v2320 = vpack.c.b16 %v2318, %v2316
        %2323 = vmatprep.subr.bf16.mxu0 %v1150
        %2324 = vmatpush1.bf16.msra.mxu0 %v1149
        %2325 = vmatprep.subr.bf16.mxu0 %v1142
        %2326 = vmatpush1.bf16.msra.mxu0 %v1141
        %2327 = vmatprep.subr.bf16.mxu0 %v1134
        %2328 = vmatpush1.bf16.msra.mxu0 %v1133
        %2329 = vmatprep.subr.bf16.mxu0 %v1126
        %2330 = vmatpush1.bf16.msra.mxu0 %v1125
        %2331 = vmatprep.subr.bf16.mxu0 %v1118
        %2332 = vmatpush1.bf16.msra.mxu0 %v1117
        %2333 = vmatprep.subr.bf16.mxu0 %v1110
        %2334 = vmatpush1.bf16.msra.mxu0 %v1109
        %2335 = vmatprep.subr.bf16.mxu0 %v1102
        %2336 = vmatpush1.bf16.msra.mxu0 %v1101
        %2337 = vmatprep.subr.bf16.mxu0 %v1094
        %2338 = vmatpush1.bf16.msra.mxu0 %v1093
        %2339 = vmatprep.subr.bf16.mxu0 %v1214
        %2340 = vmatpush2.bf16.msra.mxu0 %v1213
        %2341 = vmatprep.subr.bf16.mxu0 %v1206
        %2342 = vmatpush2.bf16.msra.mxu0 %v1205
        %2343 = vmatprep.subr.bf16.mxu0 %v1198
        %2344 = vmatpush2.bf16.msra.mxu0 %v1197
        %2345 = vmatprep.subr.bf16.mxu0 %v1190
        %2346 = vmatpush2.bf16.msra.mxu0 %v1189
        %2347 = vmatprep.subr.bf16.mxu0 %v1182
        %2348 = vmatpush2.bf16.msra.mxu0 %v1181
        %2349 = vmatprep.subr.bf16.mxu0 %v1174
        %2350 = vmatpush2.bf16.msra.mxu0 %v1173
        %2351 = vmatprep.subr.bf16.mxu0 %v1166
        %2352 = vmatpush2.bf16.msra.mxu0 %v1165
        %2353 = vmatprep.subr.bf16.mxu0 %v1158
        %2354 = vmatpush2.bf16.msra.mxu0 %v1157
        %2355 = vmatprep.mubr.bf16.mxu0 %v2320
        %2356 = vmatmul.mubr.bf16.gmra.mxu0 %v2319
        %v2357 = vpop.f32.mrf.mxu0
        %v2358 = vadd.f32 0.0, %v2357
        %v2359 = vpop.f32.mrf.mxu0
        %v2360 = vadd.f32 0.0, %v2359
        %v2361 = vpop.f32.mrf.mxu0
        %v2362 = vadd.f32 0.0, %v2361
        %v2363 = vpop.f32.mrf.mxu0
        %v2364 = vadd.f32 0.0, %v2363
        %2365 = vdwg.mxu0
        %2366 = vmatprep.subr.bf16.mxu0 %v1152
        %2367 = vmatpush1.bf16.msra.mxu0 %v1151
        %2368 = vmatprep.subr.bf16.mxu0 %v1144
        %2369 = vmatpush1.bf16.msra.mxu0 %v1143
        %2370 = vmatprep.subr.bf16.mxu0 %v1136
        %2371 = vmatpush1.bf16.msra.mxu0 %v1135
        %2372 = vmatprep.subr.bf16.mxu0 %v1128
        %2373 = vmatpush1.bf16.msra.mxu0 %v1127
        %2374 = vmatprep.subr.bf16.mxu0 %v1120
        %2375 = vmatpush1.bf16.msra.mxu0 %v1119
        %2376 = vmatprep.subr.bf16.mxu0 %v1112
        %2377 = vmatpush1.bf16.msra.mxu0 %v1111
        %2378 = vmatprep.subr.bf16.mxu0 %v1104
        %2379 = vmatpush1.bf16.msra.mxu0 %v1103
        %2380 = vmatprep.subr.bf16.mxu0 %v1096
        %2381 = vmatpush1.bf16.msra.mxu0 %v1095
        %2382 = vmatprep.subr.bf16.mxu0 %v1216
        %2383 = vmatpush2.bf16.msra.mxu0 %v1215
        %2384 = vmatprep.subr.bf16.mxu0 %v1208
        %2385 = vmatpush2.bf16.msra.mxu0 %v1207
        %2386 = vmatprep.subr.bf16.mxu0 %v1200
        %2387 = vmatpush2.bf16.msra.mxu0 %v1199
        %2388 = vmatprep.subr.bf16.mxu0 %v1192
        %2389 = vmatpush2.bf16.msra.mxu0 %v1191
        %2390 = vmatprep.subr.bf16.mxu0 %v1184
        %2391 = vmatpush2.bf16.msra.mxu0 %v1183
        %2392 = vmatprep.subr.bf16.mxu0 %v1176
        %2393 = vmatpush2.bf16.msra.mxu0 %v1175
        %2394 = vmatprep.subr.bf16.mxu0 %v1168
        %2395 = vmatpush2.bf16.msra.mxu0 %v1167
        %2396 = vmatprep.subr.bf16.mxu0 %v1160
        %2397 = vmatpush2.bf16.msra.mxu0 %v1159
        %2398 = vmatprep.mubr.bf16.mxu0 %v2320
        %2399 = vmatmul.mubr.bf16.gmra.mxu0 %v2319
        %v2400 = vpop.f32.mrf.mxu0
        %v2401 = vadd.f32 0.0, %v2400
        %v2402 = vpop.f32.mrf.mxu0
        %v2403 = vadd.f32 0.0, %v2402
        %v2404 = vpop.f32.mrf.mxu0
        %v2405 = vadd.f32 0.0, %v2404
        %v2406 = vpop.f32.mrf.mxu0
        %v2407 = vadd.f32 0.0, %v2406
        %2408 = vdwg.mxu0
        %2409 = vmatprep.subr.bf16.mxu0 %v1154
        %2410 = vmatpush1.bf16.msra.mxu0 %v1153
        %2411 = vmatprep.subr.bf16.mxu0 %v1146
        %2412 = vmatpush1.bf16.msra.mxu0 %v1145
        %2413 = vmatprep.subr.bf16.mxu0 %v1138
        %2414 = vmatpush1.bf16.msra.mxu0 %v1137
        %2415 = vmatprep.subr.bf16.mxu0 %v1130
        %2416 = vmatpush1.bf16.msra.mxu0 %v1129
        %2417 = vmatprep.subr.bf16.mxu0 %v1122
        %2418 = vmatpush1.bf16.msra.mxu0 %v1121
        %2419 = vmatprep.subr.bf16.mxu0 %v1114
        %2420 = vmatpush1.bf16.msra.mxu0 %v1113
        %2421 = vmatprep.subr.bf16.mxu0 %v1106
        %2422 = vmatpush1.bf16.msra.mxu0 %v1105
        %2423 = vmatprep.subr.bf16.mxu0 %v1098
        %2424 = vmatpush1.bf16.msra.mxu0 %v1097
        %2425 = vmatprep.subr.bf16.mxu0 %v1218
        %2426 = vmatpush2.bf16.msra.mxu0 %v1217
        %2427 = vmatprep.subr.bf16.mxu0 %v1210
        %2428 = vmatpush2.bf16.msra.mxu0 %v1209
        %2429 = vmatprep.subr.bf16.mxu0 %v1202
        %2430 = vmatpush2.bf16.msra.mxu0 %v1201
        %2431 = vmatprep.subr.bf16.mxu0 %v1194
        %2432 = vmatpush2.bf16.msra.mxu0 %v1193
        %2433 = vmatprep.subr.bf16.mxu0 %v1186
        %2434 = vmatpush2.bf16.msra.mxu0 %v1185
        %2435 = vmatprep.subr.bf16.mxu0 %v1178
        %2436 = vmatpush2.bf16.msra.mxu0 %v1177
        %2437 = vmatprep.subr.bf16.mxu0 %v1170
        %2438 = vmatpush2.bf16.msra.mxu0 %v1169
        %2439 = vmatprep.subr.bf16.mxu0 %v1162
        %2440 = vmatpush2.bf16.msra.mxu0 %v1161
        %2441 = vmatprep.mubr.bf16.mxu0 %v2320
        %2442 = vmatmul.mubr.bf16.gmra.mxu0 %v2319
        %v2443 = vpop.f32.mrf.mxu0
        %v2444 = vadd.f32 0.0, %v2443
        %v2445 = vpop.f32.mrf.mxu0
        %v2446 = vadd.f32 0.0, %v2445
        %v2447 = vpop.f32.mrf.mxu0
        %v2448 = vadd.f32 0.0, %v2447
        %v2449 = vpop.f32.mrf.mxu0
        %v2450 = vadd.f32 0.0, %v2449
        %2451 = vdwg.mxu0
        %2452 = vmatprep.subr.bf16.mxu0 %v1156
        %2453 = vmatpush1.bf16.msra.mxu0 %v1155
        %2454 = vmatprep.subr.bf16.mxu0 %v1148
        %2455 = vmatpush1.bf16.msra.mxu0 %v1147
        %2456 = vmatprep.subr.bf16.mxu0 %v1140
        %2457 = vmatpush1.bf16.msra.mxu0 %v1139
        %2458 = vmatprep.subr.bf16.mxu0 %v1132
        %2459 = vmatpush1.bf16.msra.mxu0 %v1131
        %2460 = vmatprep.subr.bf16.mxu0 %v1124
        %2461 = vmatpush1.bf16.msra.mxu0 %v1123
        %2462 = vmatprep.subr.bf16.mxu0 %v1116
        %2463 = vmatpush1.bf16.msra.mxu0 %v1115
        %2464 = vmatprep.subr.bf16.mxu0 %v1108
        %2465 = vmatpush1.bf16.msra.mxu0 %v1107
        %2466 = vmatprep.subr.bf16.mxu0 %v1100
        %2467 = vmatpush1.bf16.msra.mxu0 %v1099
        %2468 = vmatprep.subr.bf16.mxu0 %v1220
        %2469 = vmatpush2.bf16.msra.mxu0 %v1219
        %2470 = vmatprep.subr.bf16.mxu0 %v1212
        %2471 = vmatpush2.bf16.msra.mxu0 %v1211
        %2472 = vmatprep.subr.bf16.mxu0 %v1204
        %2473 = vmatpush2.bf16.msra.mxu0 %v1203
        %2474 = vmatprep.subr.bf16.mxu0 %v1196
        %2475 = vmatpush2.bf16.msra.mxu0 %v1195
        %2476 = vmatprep.subr.bf16.mxu0 %v1188
        %2477 = vmatpush2.bf16.msra.mxu0 %v1187
        %2478 = vmatprep.subr.bf16.mxu0 %v1180
        %2479 = vmatpush2.bf16.msra.mxu0 %v1179
        %2480 = vmatprep.subr.bf16.mxu0 %v1172
        %2481 = vmatpush2.bf16.msra.mxu0 %v1171
        %2482 = vmatprep.subr.bf16.mxu0 %v1164
        %2483 = vmatpush2.bf16.msra.mxu0 %v1163
        %2484 = vmatprep.mubr.bf16.mxu0 %v2320
        %2485 = vmatmul.mubr.bf16.gmra.mxu0 %v2319
        %v2486 = vpop.f32.mrf.mxu0
        %v2487 = vadd.f32 0.0, %v2486
        %v2488 = vpop.f32.mrf.mxu0
        %v2489 = vadd.f32 0.0, %v2488
        %v2490 = vpop.f32.mrf.mxu0
        %v2491 = vadd.f32 0.0, %v2490
        %v2492 = vpop.f32.mrf.mxu0
        %v2493 = vadd.f32 0.0, %v2492
        %2494 = vdwg.mxu0
        %2495 = vst [vmem:[#allocation2 + $0x40] sm:$0xff] %v2358
        %2496 = vst [vmem:[#allocation2 + $0x48] sm:$0xff] %v2360
        %2497 = vst [vmem:[#allocation2 + $0x50] sm:$0xff] %v2401
        %2498 = vst [vmem:[#allocation2 + $0x58] sm:$0xff] %v2403
        %2499 = vst [vmem:[#allocation2 + $0x60] sm:$0xff] %v2444
        %2500 = vst [vmem:[#allocation2 + $0x68] sm:$0xff] %v2446
        %2501 = vst [vmem:[#allocation2 + $0x70] sm:$0xff] %v2487
        %2502 = vst [vmem:[#allocation2 + $0x78] sm:$0xff] %v2489
        %2503 = vst [vmem:[#allocation2 + $0x100] sm:$0xff] %v2362
        %2504 = vst [vmem:[#allocation2 + $0x108] sm:$0xff] %v2364
        %2505 = vst [vmem:[#allocation2 + $0x110] sm:$0xff] %v2405
        %2506 = vst [vmem:[#allocation2 + $0x118] sm:$0xff] %v2407
        %2507 = vst [vmem:[#allocation2 + $0x120] sm:$0xff] %v2448
        %2508 = vst [vmem:[#allocation2 + $0x128] sm:$0xff] %v2450
        %2509 = vst [vmem:[#allocation2 + $0x130] sm:$0xff] %v2491
        %2510 = vst [vmem:[#allocation2 + $0x138] sm:$0xff] %v2493
        %v2511 = vld [vmem:[%s429 + $0x14] sm:$0xff]
        %v2512 = vld [vmem:[%s429 + $0x30] sm:$0xff]
        %v2515 = vunpack.c.l.b16 %v2511
        %v2516 = vunpack.c.h.b16 %v2511
        %v2517 = vunpack.c.l.b16 %v2512
        %v2518 = vunpack.c.h.b16 %v2512
        %v2519 = vpack.c.b16 %v2517, %v2515
        %v2520 = vpack.c.b16 %v2518, %v2516
        %2523 = vmatprep.subr.bf16.mxu0 %v1150
        %2524 = vmatpush1.bf16.msra.mxu0 %v1149
        %2525 = vmatprep.subr.bf16.mxu0 %v1142
        %2526 = vmatpush1.bf16.msra.mxu0 %v1141
        %2527 = vmatprep.subr.bf16.mxu0 %v1134
        %2528 = vmatpush1.bf16.msra.mxu0 %v1133
        %2529 = vmatprep.subr.bf16.mxu0 %v1126
        %2530 = vmatpush1.bf16.msra.mxu0 %v1125
        %2531 = vmatprep.subr.bf16.mxu0 %v1118
        %2532 = vmatpush1.bf16.msra.mxu0 %v1117
        %2533 = vmatprep.subr.bf16.mxu0 %v1110
        %2534 = vmatpush1.bf16.msra.mxu0 %v1109
        %2535 = vmatprep.subr.bf16.mxu0 %v1102
        %2536 = vmatpush1.bf16.msra.mxu0 %v1101
        %2537 = vmatprep.subr.bf16.mxu0 %v1094
        %2538 = vmatpush1.bf16.msra.mxu0 %v1093
        %2539 = vmatprep.subr.bf16.mxu0 %v1214
        %2540 = vmatpush2.bf16.msra.mxu0 %v1213
        %2541 = vmatprep.subr.bf16.mxu0 %v1206
        %2542 = vmatpush2.bf16.msra.mxu0 %v1205
        %2543 = vmatprep.subr.bf16.mxu0 %v1198
        %2544 = vmatpush2.bf16.msra.mxu0 %v1197
        %2545 = vmatprep.subr.bf16.mxu0 %v1190
        %2546 = vmatpush2.bf16.msra.mxu0 %v1189
        %2547 = vmatprep.subr.bf16.mxu0 %v1182
        %2548 = vmatpush2.bf16.msra.mxu0 %v1181
        %2549 = vmatprep.subr.bf16.mxu0 %v1174
        %2550 = vmatpush2.bf16.msra.mxu0 %v1173
        %2551 = vmatprep.subr.bf16.mxu0 %v1166
        %2552 = vmatpush2.bf16.msra.mxu0 %v1165
        %2553 = vmatprep.subr.bf16.mxu0 %v1158
        %2554 = vmatpush2.bf16.msra.mxu0 %v1157
        %2555 = vmatprep.mubr.bf16.mxu0 %v2520
        %2556 = vmatmul.mubr.bf16.gmra.mxu0 %v2519
        %v2557 = vpop.f32.mrf.mxu0
        %v2558 = vadd.f32 0.0, %v2557
        %v2559 = vpop.f32.mrf.mxu0
        %v2560 = vadd.f32 0.0, %v2559
        %v2561 = vpop.f32.mrf.mxu0
        %v2562 = vadd.f32 0.0, %v2561
        %v2563 = vpop.f32.mrf.mxu0
        %v2564 = vadd.f32 0.0, %v2563
        %2565 = vdwg.mxu0
        %2566 = vmatprep.subr.bf16.mxu0 %v1152
        %2567 = vmatpush1.bf16.msra.mxu0 %v1151
        %2568 = vmatprep.subr.bf16.mxu0 %v1144
        %2569 = vmatpush1.bf16.msra.mxu0 %v1143
        %2570 = vmatprep.subr.bf16.mxu0 %v1136
        %2571 = vmatpush1.bf16.msra.mxu0 %v1135
        %2572 = vmatprep.subr.bf16.mxu0 %v1128
        %2573 = vmatpush1.bf16.msra.mxu0 %v1127
        %2574 = vmatprep.subr.bf16.mxu0 %v1120
        %2575 = vmatpush1.bf16.msra.mxu0 %v1119
        %2576 = vmatprep.subr.bf16.mxu0 %v1112
        %2577 = vmatpush1.bf16.msra.mxu0 %v1111
        %2578 = vmatprep.subr.bf16.mxu0 %v1104
        %2579 = vmatpush1.bf16.msra.mxu0 %v1103
        %2580 = vmatprep.subr.bf16.mxu0 %v1096
        %2581 = vmatpush1.bf16.msra.mxu0 %v1095
        %2582 = vmatprep.subr.bf16.mxu0 %v1216
        %2583 = vmatpush2.bf16.msra.mxu0 %v1215
        %2584 = vmatprep.subr.bf16.mxu0 %v1208
        %2585 = vmatpush2.bf16.msra.mxu0 %v1207
        %2586 = vmatprep.subr.bf16.mxu0 %v1200
        %2587 = vmatpush2.bf16.msra.mxu0 %v1199
        %2588 = vmatprep.subr.bf16.mxu0 %v1192
        %2589 = vmatpush2.bf16.msra.mxu0 %v1191
        %2590 = vmatprep.subr.bf16.mxu0 %v1184
        %2591 = vmatpush2.bf16.msra.mxu0 %v1183
        %2592 = vmatprep.subr.bf16.mxu0 %v1176
        %2593 = vmatpush2.bf16.msra.mxu0 %v1175
        %2594 = vmatprep.subr.bf16.mxu0 %v1168
        %2595 = vmatpush2.bf16.msra.mxu0 %v1167
        %2596 = vmatprep.subr.bf16.mxu0 %v1160
        %2597 = vmatpush2.bf16.msra.mxu0 %v1159
        %2598 = vmatprep.mubr.bf16.mxu0 %v2520
        %2599 = vmatmul.mubr.bf16.gmra.mxu0 %v2519
        %v2600 = vpop.f32.mrf.mxu0
        %v2601 = vadd.f32 0.0, %v2600
        %v2602 = vpop.f32.mrf.mxu0
        %v2603 = vadd.f32 0.0, %v2602
        %v2604 = vpop.f32.mrf.mxu0
        %v2605 = vadd.f32 0.0, %v2604
        %v2606 = vpop.f32.mrf.mxu0
        %v2607 = vadd.f32 0.0, %v2606
        %2608 = vdwg.mxu0
        %2609 = vmatprep.subr.bf16.mxu0 %v1154
        %2610 = vmatpush1.bf16.msra.mxu0 %v1153
        %2611 = vmatprep.subr.bf16.mxu0 %v1146
        %2612 = vmatpush1.bf16.msra.mxu0 %v1145
        %2613 = vmatprep.subr.bf16.mxu0 %v1138
        %2614 = vmatpush1.bf16.msra.mxu0 %v1137
        %2615 = vmatprep.subr.bf16.mxu0 %v1130
        %2616 = vmatpush1.bf16.msra.mxu0 %v1129
        %2617 = vmatprep.subr.bf16.mxu0 %v1122
        %2618 = vmatpush1.bf16.msra.mxu0 %v1121
        %2619 = vmatprep.subr.bf16.mxu0 %v1114
        %2620 = vmatpush1.bf16.msra.mxu0 %v1113
        %2621 = vmatprep.subr.bf16.mxu0 %v1106
        %2622 = vmatpush1.bf16.msra.mxu0 %v1105
        %2623 = vmatprep.subr.bf16.mxu0 %v1098
        %2624 = vmatpush1.bf16.msra.mxu0 %v1097
        %2625 = vmatprep.subr.bf16.mxu0 %v1218
        %2626 = vmatpush2.bf16.msra.mxu0 %v1217
        %2627 = vmatprep.subr.bf16.mxu0 %v1210
        %2628 = vmatpush2.bf16.msra.mxu0 %v1209
        %2629 = vmatprep.subr.bf16.mxu0 %v1202
        %2630 = vmatpush2.bf16.msra.mxu0 %v1201
        %2631 = vmatprep.subr.bf16.mxu0 %v1194
        %2632 = vmatpush2.bf16.msra.mxu0 %v1193
        %2633 = vmatprep.subr.bf16.mxu0 %v1186
        %2634 = vmatpush2.bf16.msra.mxu0 %v1185
        %2635 = vmatprep.subr.bf16.mxu0 %v1178
        %2636 = vmatpush2.bf16.msra.mxu0 %v1177
        %2637 = vmatprep.subr.bf16.mxu0 %v1170
        %2638 = vmatpush2.bf16.msra.mxu0 %v1169
        %2639 = vmatprep.subr.bf16.mxu0 %v1162
        %2640 = vmatpush2.bf16.msra.mxu0 %v1161
        %2641 = vmatprep.mubr.bf16.mxu0 %v2520
        %2642 = vmatmul.mubr.bf16.gmra.mxu0 %v2519
        %v2643 = vpop.f32.mrf.mxu0
        %v2644 = vadd.f32 0.0, %v2643
        %v2645 = vpop.f32.mrf.mxu0
        %v2646 = vadd.f32 0.0, %v2645
        %v2647 = vpop.f32.mrf.mxu0
        %v2648 = vadd.f32 0.0, %v2647
        %v2649 = vpop.f32.mrf.mxu0
        %v2650 = vadd.f32 0.0, %v2649
        %2651 = vdwg.mxu0
        %2652 = vmatprep.subr.bf16.mxu0 %v1156
        %2653 = vmatpush1.bf16.msra.mxu0 %v1155
        %2654 = vmatprep.subr.bf16.mxu0 %v1148
        %2655 = vmatpush1.bf16.msra.mxu0 %v1147
        %2656 = vmatprep.subr.bf16.mxu0 %v1140
        %2657 = vmatpush1.bf16.msra.mxu0 %v1139
        %2658 = vmatprep.subr.bf16.mxu0 %v1132
        %2659 = vmatpush1.bf16.msra.mxu0 %v1131
        %2660 = vmatprep.subr.bf16.mxu0 %v1124
        %2661 = vmatpush1.bf16.msra.mxu0 %v1123
        %2662 = vmatprep.subr.bf16.mxu0 %v1116
        %2663 = vmatpush1.bf16.msra.mxu0 %v1115
        %2664 = vmatprep.subr.bf16.mxu0 %v1108
        %2665 = vmatpush1.bf16.msra.mxu0 %v1107
        %2666 = vmatprep.subr.bf16.mxu0 %v1100
        %2667 = vmatpush1.bf16.msra.mxu0 %v1099
        %2668 = vmatprep.subr.bf16.mxu0 %v1220
        %2669 = vmatpush2.bf16.msra.mxu0 %v1219
        %2670 = vmatprep.subr.bf16.mxu0 %v1212
        %2671 = vmatpush2.bf16.msra.mxu0 %v1211
        %2672 = vmatprep.subr.bf16.mxu0 %v1204
        %2673 = vmatpush2.bf16.msra.mxu0 %v1203
        %2674 = vmatprep.subr.bf16.mxu0 %v1196
        %2675 = vmatpush2.bf16.msra.mxu0 %v1195
        %2676 = vmatprep.subr.bf16.mxu0 %v1188
        %2677 = vmatpush2.bf16.msra.mxu0 %v1187
        %2678 = vmatprep.subr.bf16.mxu0 %v1180
        %2679 = vmatpush2.bf16.msra.mxu0 %v1179
        %2680 = vmatprep.subr.bf16.mxu0 %v1172
        %2681 = vmatpush2.bf16.msra.mxu0 %v1171
        %2682 = vmatprep.subr.bf16.mxu0 %v1164
        %2683 = vmatpush2.bf16.msra.mxu0 %v1163
        %2684 = vmatprep.mubr.bf16.mxu0 %v2520
        %2685 = vmatmul.mubr.bf16.gmra.mxu0 %v2519
        %v2686 = vpop.f32.mrf.mxu0
        %v2687 = vadd.f32 0.0, %v2686
        %v2688 = vpop.f32.mrf.mxu0
        %v2689 = vadd.f32 0.0, %v2688
        %v2690 = vpop.f32.mrf.mxu0
        %v2691 = vadd.f32 0.0, %v2690
        %v2692 = vpop.f32.mrf.mxu0
        %v2693 = vadd.f32 0.0, %v2692
        %2694 = vdwg.mxu0
        %2695 = vst [vmem:[#allocation2 + $0x80] sm:$0xff] %v2558
        %2696 = vst [vmem:[#allocation2 + $0x88] sm:$0xff] %v2560
        %2697 = vst [vmem:[#allocation2 + $0x90] sm:$0xff] %v2601
        %2698 = vst [vmem:[#allocation2 + $0x98] sm:$0xff] %v2603
        %2699 = vst [vmem:[#allocation2 + $0xa0] sm:$0xff] %v2644
        %2700 = vst [vmem:[#allocation2 + $0xa8] sm:$0xff] %v2646
        %2701 = vst [vmem:[#allocation2 + $0xb0] sm:$0xff] %v2687
        %2702 = vst [vmem:[#allocation2 + $0xb8] sm:$0xff] %v2689
        %2703 = vst [vmem:[#allocation2 + $0x140] sm:$0xff] %v2562
        %2704 = vst [vmem:[#allocation2 + $0x148] sm:$0xff] %v2564
        %2705 = vst [vmem:[#allocation2 + $0x150] sm:$0xff] %v2605
        %2706 = vst [vmem:[#allocation2 + $0x158] sm:$0xff] %v2607
        %2707 = vst [vmem:[#allocation2 + $0x160] sm:$0xff] %v2648
        %2708 = vst [vmem:[#allocation2 + $0x168] sm:$0xff] %v2650
        %2709 = vst [vmem:[#allocation2 + $0x170] sm:$0xff] %v2691
        %2710 = vst [vmem:[#allocation2 + $0x178] sm:$0xff] %v2693
        %v2711 = vld [vmem:[#allocation2] sm:$0xff]
        %v2712 = vld [vmem:[#allocation2 + $0xc0] sm:$0xff]
        %v2713 = vld [vmem:[#allocation2 + $0x8] sm:$0xff]
        %v2714 = vld [vmem:[#allocation2 + $0xc8] sm:$0xff]
        %v2715 = vmax.f32 %v2711, %v2713
        %v2716 = vmax.f32 %v2712, %v2714
        %v2717 = vld [vmem:[#allocation2 + $0x10] sm:$0xff]
        %v2718 = vld [vmem:[#allocation2 + $0xd0] sm:$0xff]
        %v2719 = vld [vmem:[#allocation2 + $0x18] sm:$0xff]
        %v2720 = vld [vmem:[#allocation2 + $0xd8] sm:$0xff]
        %v2721 = vmax.f32 %v2717, %v2719
        %v2722 = vmax.f32 %v2718, %v2720
        %v2723 = vmax.f32 %v2715, %v2721
        %v2724 = vmax.f32 %v2716, %v2722
        %v2725 = vadd.f32 %v2723, %v1955
        %v2726 = vadd.f32 %v2724, %v1955
        %v2727 = vmax.f32 %v2725, 0.0
        %v2728 = vmax.f32 %v2726, 0.0
        %v2729 = vpack.c.bf16 %v2728, %v2727
        %v2731 = vunpack.c.l.b16 %v2729
        %v2732 = vunpack.c.h.b16 %v2729
        %v2733 = vpack.c.b16 %v2731, %v2731
        %v2734 = vpack.c.b16 %v2732, %v2732
        %2737 = vst [vmem:[#allocation3 + $0x18] sm:$0xf] %v2733
        %2738 = vst [vmem:[#allocation3 + $0x48] sm:$0xf] %v2734
        %v2739 = vld [vmem:[#allocation2 + $0x20] sm:$0xff]
        %v2740 = vld [vmem:[#allocation2 + $0xe0] sm:$0xff]
        %v2741 = vld [vmem:[#allocation2 + $0x28] sm:$0xff]
        %v2742 = vld [vmem:[#allocation2 + $0xe8] sm:$0xff]
        %v2743 = vmax.f32 %v2739, %v2741
        %v2744 = vmax.f32 %v2740, %v2742
        %v2745 = vld [vmem:[#allocation2 + $0x30] sm:$0xff]
        %v2746 = vld [vmem:[#allocation2 + $0xf0] sm:$0xff]
        %v2747 = vld [vmem:[#allocation2 + $0x38] sm:$0xff]
        %v2748 = vld [vmem:[#allocation2 + $0xf8] sm:$0xff]
        %v2749 = vmax.f32 %v2745, %v2747
        %v2750 = vmax.f32 %v2746, %v2748
        %v2751 = vmax.f32 %v2743, %v2749
        %v2752 = vmax.f32 %v2744, %v2750
        %v2753 = vadd.f32 %v2751, %v1955
        %v2754 = vadd.f32 %v2752, %v1955
        %v2755 = vmax.f32 %v2753, 0.0
        %v2756 = vmax.f32 %v2754, 0.0
        %v2757 = vpack.c.bf16 %v2756, %v2755
        %v2759 = vunpack.c.l.b16 %v2757
        %v2760 = vunpack.c.h.b16 %v2757
        %v2761 = vpack.c.b16 %v2759, %v2759
        %v2762 = vpack.c.b16 %v2760, %v2760
        %2765 = vst [vmem:[#allocation3 + $0x1c] sm:$0xf] %v2761
        %2766 = vst [vmem:[#allocation3 + $0x4c] sm:$0xf] %v2762
        %v2767 = vld [vmem:[#allocation2 + $0x40] sm:$0xff]
        %v2768 = vld [vmem:[#allocation2 + $0x100] sm:$0xff]
        %v2769 = vld [vmem:[#allocation2 + $0x48] sm:$0xff]
        %v2770 = vld [vmem:[#allocation2 + $0x108] sm:$0xff]
        %v2771 = vmax.f32 %v2767, %v2769
        %v2772 = vmax.f32 %v2768, %v2770
        %v2773 = vld [vmem:[#allocation2 + $0x50] sm:$0xff]
        %v2774 = vld [vmem:[#allocation2 + $0x110] sm:$0xff]
        %v2775 = vld [vmem:[#allocation2 + $0x58] sm:$0xff]
        %v2776 = vld [vmem:[#allocation2 + $0x118] sm:$0xff]
        %v2777 = vmax.f32 %v2773, %v2775
        %v2778 = vmax.f32 %v2774, %v2776
        %v2779 = vmax.f32 %v2771, %v2777
        %v2780 = vmax.f32 %v2772, %v2778
        %v2781 = vadd.f32 %v2779, %v1955
        %v2782 = vadd.f32 %v2780, %v1955
        %v2783 = vmax.f32 %v2781, 0.0
        %v2784 = vmax.f32 %v2782, 0.0
        %v2785 = vpack.c.bf16 %v2784, %v2783
        %v2787 = vunpack.c.l.b16 %v2785
        %v2788 = vunpack.c.h.b16 %v2785
        %v2789 = vpack.c.b16 %v2787, %v2787
        %v2790 = vpack.c.b16 %v2788, %v2788
        %2793 = vst [vmem:[#allocation3 + $0x20] sm:$0xf] %v2789
        %2794 = vst [vmem:[#allocation3 + $0x50] sm:$0xf] %v2790
        %v2795 = vld [vmem:[#allocation2 + $0x60] sm:$0xff]
        %v2796 = vld [vmem:[#allocation2 + $0x120] sm:$0xff]
        %v2797 = vld [vmem:[#allocation2 + $0x68] sm:$0xff]
        %v2798 = vld [vmem:[#allocation2 + $0x128] sm:$0xff]
        %v2799 = vmax.f32 %v2795, %v2797
        %v2800 = vmax.f32 %v2796, %v2798
        %v2801 = vld [vmem:[#allocation2 + $0x70] sm:$0xff]
        %v2802 = vld [vmem:[#allocation2 + $0x130] sm:$0xff]
        %v2803 = vld [vmem:[#allocation2 + $0x78] sm:$0xff]
        %v2804 = vld [vmem:[#allocation2 + $0x138] sm:$0xff]
        %v2805 = vmax.f32 %v2801, %v2803
        %v2806 = vmax.f32 %v2802, %v2804
        %v2807 = vmax.f32 %v2799, %v2805
        %v2808 = vmax.f32 %v2800, %v2806
        %v2809 = vadd.f32 %v2807, %v1955
        %v2810 = vadd.f32 %v2808, %v1955
        %v2811 = vmax.f32 %v2809, 0.0
        %v2812 = vmax.f32 %v2810, 0.0
        %v2813 = vpack.c.bf16 %v2812, %v2811
        %v2815 = vunpack.c.l.b16 %v2813
        %v2816 = vunpack.c.h.b16 %v2813
        %v2817 = vpack.c.b16 %v2815, %v2815
        %v2818 = vpack.c.b16 %v2816, %v2816
        %2821 = vst [vmem:[#allocation3 + $0x24] sm:$0xf] %v2817
        %2822 = vst [vmem:[#allocation3 + $0x54] sm:$0xf] %v2818
        %v2823 = vld [vmem:[#allocation2 + $0x80] sm:$0xff]
        %v2824 = vld [vmem:[#allocation2 + $0x140] sm:$0xff]
        %v2825 = vld [vmem:[#allocation2 + $0x88] sm:$0xff]
        %v2826 = vld [vmem:[#allocation2 + $0x148] sm:$0xff]
        %v2827 = vmax.f32 %v2823, %v2825
        %v2828 = vmax.f32 %v2824, %v2826
        %v2829 = vld [vmem:[#allocation2 + $0x90] sm:$0xff]
        %v2830 = vld [vmem:[#allocation2 + $0x150] sm:$0xff]
        %v2831 = vld [vmem:[#allocation2 + $0x98] sm:$0xff]
        %v2832 = vld [vmem:[#allocation2 + $0x158] sm:$0xff]
        %v2833 = vmax.f32 %v2829, %v2831
        %v2834 = vmax.f32 %v2830, %v2832
        %v2835 = vmax.f32 %v2827, %v2833
        %v2836 = vmax.f32 %v2828, %v2834
        %v2837 = vadd.f32 %v2835, %v1955
        %v2838 = vadd.f32 %v2836, %v1955
        %v2839 = vmax.f32 %v2837, 0.0
        %v2840 = vmax.f32 %v2838, 0.0
        %v2841 = vpack.c.bf16 %v2840, %v2839
        %v2843 = vunpack.c.l.b16 %v2841
        %v2844 = vunpack.c.h.b16 %v2841
        %v2845 = vpack.c.b16 %v2843, %v2843
        %v2846 = vpack.c.b16 %v2844, %v2844
        %2849 = vst [vmem:[#allocation3 + $0x28] sm:$0xf] %v2845
        %2850 = vst [vmem:[#allocation3 + $0x58] sm:$0xf] %v2846
        %v2851 = vld [vmem:[#allocation2 + $0xa0] sm:$0xff]
        %v2852 = vld [vmem:[#allocation2 + $0x160] sm:$0xff]
        %v2853 = vld [vmem:[#allocation2 + $0xa8] sm:$0xff]
        %v2854 = vld [vmem:[#allocation2 + $0x168] sm:$0xff]
        %v2855 = vmax.f32 %v2851, %v2853
        %v2856 = vmax.f32 %v2852, %v2854
        %v2857 = vld [vmem:[#allocation2 + $0xb0] sm:$0xff]
        %v2858 = vld [vmem:[#allocation2 + $0x170] sm:$0xff]
        %v2859 = vld [vmem:[#allocation2 + $0xb8] sm:$0xff]
        %v2860 = vld [vmem:[#allocation2 + $0x178] sm:$0xff]
        %v2861 = vmax.f32 %v2857, %v2859
        %v2862 = vmax.f32 %v2858, %v2860
        %v2863 = vmax.f32 %v2855, %v2861
        %v2864 = vmax.f32 %v2856, %v2862
        %v2865 = vadd.f32 %v2863, %v1955
        %v2866 = vadd.f32 %v2864, %v1955
        %v2867 = vmax.f32 %v2865, 0.0
        %v2868 = vmax.f32 %v2866, 0.0
        %v2869 = vpack.c.bf16 %v2868, %v2867
        %v2871 = vunpack.c.l.b16 %v2869
        %v2872 = vunpack.c.h.b16 %v2869
        %v2873 = vpack.c.b16 %v2871, %v2871
        %v2874 = vpack.c.b16 %v2872, %v2872
        %2877 = vst [vmem:[#allocation3 + $0x2c] sm:$0xf] %v2873
        %2878 = vst [vmem:[#allocation3 + $0x5c] sm:$0xf] %v2874
        %v2879 = vld [vmem:[#allocation3] sm:$0xff]
        %v2880 = vld [vmem:[#allocation3 + $0x8] sm:$0xff]
        %v2881 = vld [vmem:[#allocation3 + $0x10] sm:$0xf]
        %v2882 = vld [vmem:[#allocation3 + $0x30] sm:$0xff]
        %v2883 = vld [vmem:[#allocation3 + $0x38] sm:$0xff]
        %v2884 = vld [vmem:[#allocation3 + $0x40] sm:$0xf]
        %v2891 = vunpack.c.l.b16 %v2879
        %v2892 = vunpack.c.h.b16 %v2879
        %v2893 = vunpack.c.l.b16 %v2880
        %v2894 = vunpack.c.h.b16 %v2880
        %v2895 = vunpack.c.l.b16 %v2881
        %v2896 = vunpack.c.l.b16 %v2882
        %v2897 = vunpack.c.h.b16 %v2882
        %v2898 = vunpack.c.l.b16 %v2883
        %v2899 = vunpack.c.h.b16 %v2883
        %v2900 = vunpack.c.l.b16 %v2884
        %v2901 = vpack.c.b16 %v2896, %v2891
        %v2902 = vpack.c.b16 %v2897, %v2892
        %v2903 = vpack.c.b16 %v2898, %v2893
        %v2904 = vpack.c.b16 %v2899, %v2894
        %v2905 = vpack.c.b16 %v2900, %v2895
        %v2991 = vunpack.c.l.b16 %v566
        %v2992 = vunpack.c.h.b16 %v566
        %v2993 = vunpack.c.l.b16 %v567
        %v2994 = vunpack.c.h.b16 %v567
        %v2995 = vunpack.c.l.b16 %v568
        %v2996 = vunpack.c.h.b16 %v568
        %v2997 = vunpack.c.l.b16 %v569
        %v2998 = vunpack.c.h.b16 %v569
        %v2999 = vunpack.c.l.b16 %v570
        %v3000 = vunpack.c.h.b16 %v570
        %v3001 = vunpack.c.l.b16 %v571
        %v3002 = vunpack.c.h.b16 %v571
        %v3003 = vunpack.c.l.b16 %v572
        %v3004 = vunpack.c.h.b16 %v572
        %v3005 = vunpack.c.l.b16 %v573
        %v3006 = vunpack.c.h.b16 %v573
        %v3007 = vunpack.c.l.b16 %v574
        %v3008 = vunpack.c.h.b16 %v574
        %v3009 = vunpack.c.l.b16 %v575
        %v3010 = vunpack.c.h.b16 %v575
        %v3011 = vunpack.c.l.b16 %v576
        %v3012 = vunpack.c.h.b16 %v576
        %v3013 = vunpack.c.l.b16 %v577
        %v3014 = vunpack.c.h.b16 %v577
        %v3015 = vunpack.c.l.b16 %v578
        %v3016 = vunpack.c.h.b16 %v578
        %v3017 = vunpack.c.l.b16 %v579
        %v3018 = vunpack.c.h.b16 %v579
        %v3019 = vunpack.c.l.b16 %v580
        %v3020 = vunpack.c.h.b16 %v580
        %v3021 = vunpack.c.l.b16 %v581
        %v3022 = vunpack.c.h.b16 %v581
        %v3023 = vunpack.c.l.b16 %v582
        %v3024 = vunpack.c.h.b16 %v582
        %v3025 = vunpack.c.l.b16 %v583
        %v3026 = vunpack.c.h.b16 %v583
        %v3027 = vunpack.c.l.b16 %v584
        %v3028 = vunpack.c.h.b16 %v584
        %v3029 = vunpack.c.l.b16 %v585
        %v3030 = vunpack.c.h.b16 %v585
        %v3031 = vunpack.c.l.b16 %v586
        %v3032 = vunpack.c.h.b16 %v586
        %v3033 = vunpack.c.l.b16 %v587
        %v3034 = vunpack.c.h.b16 %v587
        %v3035 = vunpack.c.l.b16 %v588
        %v3036 = vunpack.c.h.b16 %v588
        %v3037 = vunpack.c.l.b16 %v589
        %v3038 = vunpack.c.h.b16 %v589
        %v3039 = vunpack.c.l.b16 %v590
        %v3040 = vunpack.c.h.b16 %v590
        %v3041 = vunpack.c.l.b16 %v591
        %v3042 = vunpack.c.h.b16 %v591
        %v3043 = vunpack.c.l.b16 %v592
        %v3044 = vunpack.c.h.b16 %v592
        %v3045 = vunpack.c.l.b16 %v593
        %v3046 = vunpack.c.h.b16 %v593
        %v3047 = vunpack.c.l.b16 %v594
        %v3048 = vunpack.c.h.b16 %v594
        %v3049 = vunpack.c.l.b16 %v595
        %v3050 = vunpack.c.h.b16 %v595
        %v3051 = vunpack.c.l.b16 %v596
        %v3052 = vunpack.c.h.b16 %v596
        %v3053 = vunpack.c.l.b16 %v597
        %v3054 = vunpack.c.h.b16 %v597
        %v3055 = vunpack.c.l.b16 %v598
        %v3056 = vunpack.c.h.b16 %v598
        %v3057 = vunpack.c.l.b16 %v599
        %v3058 = vunpack.c.h.b16 %v599
        %v3059 = vunpack.c.l.b16 %v600
        %v3060 = vunpack.c.h.b16 %v600
        %v3061 = vunpack.c.l.b16 %v601
        %v3062 = vunpack.c.h.b16 %v601
        %v3063 = vunpack.c.l.b16 %v602
        %v3064 = vunpack.c.h.b16 %v602
        %v3065 = vunpack.c.l.b16 %v603
        %v3066 = vunpack.c.h.b16 %v603
        %v3067 = vunpack.c.l.b16 %v604
        %v3068 = vunpack.c.h.b16 %v604
        %v3069 = vunpack.c.l.b16 %v605
        %v3070 = vunpack.c.h.b16 %v605
        %v3071 = vunpack.c.l.b16 %v606
        %v3072 = vunpack.c.h.b16 %v606
        %v3073 = vunpack.c.l.b16 %v607
        %v3074 = vunpack.c.h.b16 %v607
        %v3075 = vunpack.c.l.b16 %v608
        %v3076 = vunpack.c.h.b16 %v608
        %v3077 = vunpack.c.l.b16 %v609
        %v3078 = vunpack.c.h.b16 %v609
        %v3079 = vunpack.c.l.b16 %v610
        %v3080 = vunpack.c.h.b16 %v610
        %v3081 = vunpack.c.l.b16 %v611
        %v3082 = vunpack.c.h.b16 %v611
        %v3083 = vunpack.c.l.b16 %v612
        %v3084 = vunpack.c.h.b16 %v612
        %v3085 = vunpack.c.l.b16 %v613
        %v3086 = vunpack.c.h.b16 %v613
        %v3087 = vunpack.c.l.b16 %v614
        %v3088 = vunpack.c.h.b16 %v614
        %v3089 = vunpack.c.l.b16 %v615
        %v3090 = vunpack.c.h.b16 %v615
        %v3091 = vunpack.c.l.b16 %v616
        %v3092 = vunpack.c.h.b16 %v616
        %v3093 = vunpack.c.l.b16 %v617
        %v3094 = vunpack.c.h.b16 %v617
        %v3095 = vunpack.c.l.b16 %v618
        %v3096 = vunpack.c.h.b16 %v618
        %v3097 = vunpack.c.l.b16 %v619
        %v3098 = vunpack.c.h.b16 %v619
        %v3099 = vunpack.c.l.b16 %v620
        %v3100 = vunpack.c.h.b16 %v620
        %v3101 = vunpack.c.l.b16 %v621
        %v3102 = vunpack.c.h.b16 %v621
        %v3103 = vunpack.c.l.b16 %v622
        %v3104 = vunpack.c.h.b16 %v622
        %v3105 = vunpack.c.l.b16 %v623
        %v3106 = vunpack.c.h.b16 %v623
        %v3107 = vunpack.c.l.b16 %v624
        %v3108 = vunpack.c.h.b16 %v624
        %v3109 = vunpack.c.l.b16 %v625
        %v3110 = vunpack.c.h.b16 %v625
        %v3111 = vunpack.c.l.b16 %v626
        %v3112 = vunpack.c.h.b16 %v626
        %v3113 = vunpack.c.l.b16 %v627
        %v3114 = vunpack.c.h.b16 %v627
        %v3115 = vunpack.c.l.b16 %v628
        %v3116 = vunpack.c.h.b16 %v628
        %v3117 = vunpack.c.l.b16 %v629
        %v3118 = vunpack.c.h.b16 %v629
        %v3119 = vunpack.c.l.b16 %v630
        %v3120 = vunpack.c.h.b16 %v630
        %v3121 = vunpack.c.l.b16 %v631
        %v3122 = vunpack.c.h.b16 %v631
        %v3123 = vunpack.c.l.b16 %v632
        %v3124 = vunpack.c.h.b16 %v632
        %v3125 = vunpack.c.l.b16 %v633
        %v3126 = vunpack.c.h.b16 %v633
        %v3127 = vunpack.c.l.b16 %v634
        %v3128 = vunpack.c.h.b16 %v634
        %v3129 = vunpack.c.l.b16 %v635
        %v3130 = vunpack.c.h.b16 %v635
        %v3131 = vunpack.c.l.b16 %v636
        %v3132 = vunpack.c.h.b16 %v636
        %v3133 = vunpack.c.l.b16 %v637
        %v3134 = vunpack.c.h.b16 %v637
        %v3135 = vunpack.c.l.b16 %v638
        %v3136 = vunpack.c.h.b16 %v638
        %v3137 = vunpack.c.l.b16 %v639
        %v3138 = vunpack.c.h.b16 %v639
        %v3139 = vunpack.c.l.b16 %v640
        %v3140 = vunpack.c.h.b16 %v640
        %v3141 = vunpack.c.l.b16 %v641
        %v3142 = vunpack.c.h.b16 %v641
        %v3143 = vunpack.c.l.b16 %v642
        %v3144 = vunpack.c.h.b16 %v642
        %v3145 = vunpack.c.l.b16 %v643
        %v3146 = vunpack.c.h.b16 %v643
        %v3147 = vunpack.c.l.b16 %v644
        %v3148 = vunpack.c.h.b16 %v644
        %v3149 = vunpack.c.l.b16 %v645
        %v3150 = vunpack.c.h.b16 %v645
        %v3151 = vpack.c.b16 %v2993, %v2991
        %v3152 = vpack.c.b16 %v2994, %v2992
        %v3153 = vpack.c.b16 %v2997, %v2995
        %v3154 = vpack.c.b16 %v2998, %v2996
        %v3155 = vpack.c.b16 %v3001, %v2999
        %v3156 = vpack.c.b16 %v3002, %v3000
        %v3157 = vpack.c.b16 %v3005, %v3003
        %v3158 = vpack.c.b16 %v3006, %v3004
        %v3159 = vpack.c.b16 %v3009, %v3007
        %v3160 = vpack.c.b16 %v3010, %v3008
        %v3161 = vpack.c.b16 %v3013, %v3011
        %v3162 = vpack.c.b16 %v3014, %v3012
        %v3163 = vpack.c.b16 %v3017, %v3015
        %v3164 = vpack.c.b16 %v3018, %v3016
        %v3165 = vpack.c.b16 %v3021, %v3019
        %v3166 = vpack.c.b16 %v3022, %v3020
        %v3167 = vpack.c.b16 %v3025, %v3023
        %v3168 = vpack.c.b16 %v3026, %v3024
        %v3169 = vpack.c.b16 %v3029, %v3027
        %v3170 = vpack.c.b16 %v3030, %v3028
        %v3171 = vpack.c.b16 %v3033, %v3031
        %v3172 = vpack.c.b16 %v3034, %v3032
        %v3173 = vpack.c.b16 %v3037, %v3035
        %v3174 = vpack.c.b16 %v3038, %v3036
        %v3175 = vpack.c.b16 %v3041, %v3039
        %v3176 = vpack.c.b16 %v3042, %v3040
        %v3177 = vpack.c.b16 %v3045, %v3043
        %v3178 = vpack.c.b16 %v3046, %v3044
        %v3179 = vpack.c.b16 %v3049, %v3047
        %v3180 = vpack.c.b16 %v3050, %v3048
        %v3181 = vpack.c.b16 %v3053, %v3051
        %v3182 = vpack.c.b16 %v3054, %v3052
        %v3183 = vpack.c.b16 %v3057, %v3055
        %v3184 = vpack.c.b16 %v3058, %v3056
        %v3185 = vpack.c.b16 %v3061, %v3059
        %v3186 = vpack.c.b16 %v3062, %v3060
        %v3187 = vpack.c.b16 %v3065, %v3063
        %v3188 = vpack.c.b16 %v3066, %v3064
        %v3189 = vpack.c.b16 %v3069, %v3067
        %v3190 = vpack.c.b16 %v3070, %v3068
        %v3191 = vpack.c.b16 %v3073, %v3071
        %v3192 = vpack.c.b16 %v3074, %v3072
        %v3193 = vpack.c.b16 %v3077, %v3075
        %v3194 = vpack.c.b16 %v3078, %v3076
        %v3195 = vpack.c.b16 %v3081, %v3079
        %v3196 = vpack.c.b16 %v3082, %v3080
        %v3197 = vpack.c.b16 %v3085, %v3083
        %v3198 = vpack.c.b16 %v3086, %v3084
        %v3199 = vpack.c.b16 %v3089, %v3087
        %v3200 = vpack.c.b16 %v3090, %v3088
        %v3201 = vpack.c.b16 %v3093, %v3091
        %v3202 = vpack.c.b16 %v3094, %v3092
        %v3203 = vpack.c.b16 %v3097, %v3095
        %v3204 = vpack.c.b16 %v3098, %v3096
        %v3205 = vpack.c.b16 %v3101, %v3099
        %v3206 = vpack.c.b16 %v3102, %v3100
        %v3207 = vpack.c.b16 %v3105, %v3103
        %v3208 = vpack.c.b16 %v3106, %v3104
        %v3209 = vpack.c.b16 %v3109, %v3107
        %v3210 = vpack.c.b16 %v3110, %v3108
        %v3211 = vpack.c.b16 %v3113, %v3111
        %v3212 = vpack.c.b16 %v3114, %v3112
        %v3213 = vpack.c.b16 %v3117, %v3115
        %v3214 = vpack.c.b16 %v3118, %v3116
        %v3215 = vpack.c.b16 %v3121, %v3119
        %v3216 = vpack.c.b16 %v3122, %v3120
        %v3217 = vpack.c.b16 %v3125, %v3123
        %v3218 = vpack.c.b16 %v3126, %v3124
        %v3219 = vpack.c.b16 %v3129, %v3127
        %v3220 = vpack.c.b16 %v3130, %v3128
        %v3221 = vpack.c.b16 %v3133, %v3131
        %v3222 = vpack.c.b16 %v3134, %v3132
        %v3223 = vpack.c.b16 %v3137, %v3135
        %v3224 = vpack.c.b16 %v3138, %v3136
        %v3225 = vpack.c.b16 %v3141, %v3139
        %v3226 = vpack.c.b16 %v3142, %v3140
        %v3227 = vpack.c.b16 %v3145, %v3143
        %v3228 = vpack.c.b16 %v3146, %v3144
        %v3229 = vpack.c.b16 %v3149, %v3147
        %v3230 = vpack.c.b16 %v3150, %v3148
        %3311 = vmatprep.subr.bf16.mxu0 %v3166
        %3312 = vmatpush1.bf16.msra.mxu0 %v3165
        %3313 = vmatprep.subr.bf16.mxu0 %v3164
        %3314 = vmatpush1.bf16.msra.mxu0 %v3163
        %3315 = vmatprep.subr.bf16.mxu0 %v3162
        %3316 = vmatpush1.bf16.msra.mxu0 %v3161
        %3317 = vmatprep.subr.bf16.mxu0 %v3160
        %3318 = vmatpush1.bf16.msra.mxu0 %v3159
        %3319 = vmatprep.subr.bf16.mxu0 %v3158
        %3320 = vmatpush1.bf16.msra.mxu0 %v3157
        %3321 = vmatprep.subr.bf16.mxu0 %v3156
        %3322 = vmatpush1.bf16.msra.mxu0 %v3155
        %3323 = vmatprep.subr.bf16.mxu0 %v3154
        %3324 = vmatpush1.bf16.msra.mxu0 %v3153
        %3325 = vmatprep.subr.bf16.mxu0 %v3152
        %3326 = vmatpush1.bf16.msra.mxu0 %v3151
        %3327 = vmatprep.subr.bf16.mxu0 %v3182
        %3328 = vmatpush2.bf16.msra.mxu0 %v3181
        %3329 = vmatprep.subr.bf16.mxu0 %v3180
        %3330 = vmatpush2.bf16.msra.mxu0 %v3179
        %3331 = vmatprep.subr.bf16.mxu0 %v3178
        %3332 = vmatpush2.bf16.msra.mxu0 %v3177
        %3333 = vmatprep.subr.bf16.mxu0 %v3176
        %3334 = vmatpush2.bf16.msra.mxu0 %v3175
        %3335 = vmatprep.subr.bf16.mxu0 %v3174
        %3336 = vmatpush2.bf16.msra.mxu0 %v3173
        %3337 = vmatprep.subr.bf16.mxu0 %v3172
        %3338 = vmatpush2.bf16.msra.mxu0 %v3171
        %3339 = vmatprep.subr.bf16.mxu0 %v3170
        %3340 = vmatpush2.bf16.msra.mxu0 %v3169
        %3341 = vmatprep.subr.bf16.mxu0 %v3168
        %3342 = vmatpush2.bf16.msra.mxu0 %v3167
        %3343 = vmatprep.mubr.bf16.mxu0 %v2902
        %3344 = vmatmul.mubr.bf16.gmra.mxu0 %v2901
        %v3345 = vpop.f32.mrf.mxu0
        %v3346 = vadd.f32 0.0, %v3345
        %v3347 = vpop.f32.mrf.mxu0
        %v3348 = vadd.f32 0.0, %v3347
        %v3349 = vpop.f32.mrf.mxu0
        %v3350 = vadd.f32 0.0, %v3349
        %v3351 = vpop.f32.mrf.mxu0
        %v3352 = vadd.f32 0.0, %v3351
        %3353 = vdwg.mxu0
        %3354 = vmatprep.subr.bf16.mxu0 %v3198
        %3355 = vmatpush1.bf16.msra.mxu0 %v3197
        %3356 = vmatprep.subr.bf16.mxu0 %v3196
        %3357 = vmatpush1.bf16.msra.mxu0 %v3195
        %3358 = vmatprep.subr.bf16.mxu0 %v3194
        %3359 = vmatpush1.bf16.msra.mxu0 %v3193
        %3360 = vmatprep.subr.bf16.mxu0 %v3192
        %3361 = vmatpush1.bf16.msra.mxu0 %v3191
        %3362 = vmatprep.subr.bf16.mxu0 %v3190
        %3363 = vmatpush1.bf16.msra.mxu0 %v3189
        %3364 = vmatprep.subr.bf16.mxu0 %v3188
        %3365 = vmatpush1.bf16.msra.mxu0 %v3187
        %3366 = vmatprep.subr.bf16.mxu0 %v3186
        %3367 = vmatpush1.bf16.msra.mxu0 %v3185
        %3368 = vmatprep.subr.bf16.mxu0 %v3184
        %3369 = vmatpush1.bf16.msra.mxu0 %v3183
        %3370 = vmatprep.subr.bf16.mxu0 %v3214
        %3371 = vmatpush2.bf16.msra.mxu0 %v3213
        %3372 = vmatprep.subr.bf16.mxu0 %v3212
        %3373 = vmatpush2.bf16.msra.mxu0 %v3211
        %3374 = vmatprep.subr.bf16.mxu0 %v3210
        %3375 = vmatpush2.bf16.msra.mxu0 %v3209
        %3376 = vmatprep.subr.bf16.mxu0 %v3208
        %3377 = vmatpush2.bf16.msra.mxu0 %v3207
        %3378 = vmatprep.subr.bf16.mxu0 %v3206
        %3379 = vmatpush2.bf16.msra.mxu0 %v3205
        %3380 = vmatprep.subr.bf16.mxu0 %v3204
        %3381 = vmatpush2.bf16.msra.mxu0 %v3203
        %3382 = vmatprep.subr.bf16.mxu0 %v3202
        %3383 = vmatpush2.bf16.msra.mxu0 %v3201
        %3384 = vmatprep.subr.bf16.mxu0 %v3200
        %3385 = vmatpush2.bf16.msra.mxu0 %v3199
        %3386 = vmatprep.mubr.bf16.mxu0 %v2904
        %3387 = vmatmul.mubr.bf16.gmra.mxu0 %v2903
        %v3388 = vpop.f32.mrf.mxu0
        %v3389 = vadd.f32 %v3346, %v3388
        %v3390 = vpop.f32.mrf.mxu0
        %v3391 = vadd.f32 %v3348, %v3390
        %v3392 = vpop.f32.mrf.mxu0
        %v3393 = vadd.f32 %v3350, %v3392
        %v3394 = vpop.f32.mrf.mxu0
        %v3395 = vadd.f32 %v3352, %v3394
        %3396 = vdwg.mxu0
        %3397 = vmatprep.subr.bf16.mxu0 %v3230
        %3398 = vmatpush1.bf16.msra.mxu0 %v3229
        %3399 = vmatprep.subr.bf16.mxu0 %v3228
        %3400 = vmatpush1.bf16.msra.mxu0 %v3227
        %3401 = vmatprep.subr.bf16.mxu0 %v3226
        %3402 = vmatpush1.bf16.msra.mxu0 %v3225
        %3403 = vmatprep.subr.bf16.mxu0 %v3224
        %3404 = vmatpush1.bf16.msra.mxu0 %v3223
        %3405 = vmatprep.subr.bf16.mxu0 %v3222
        %3406 = vmatpush1.bf16.msra.mxu0 %v3221
        %3407 = vmatprep.subr.bf16.mxu0 %v3220
        %3408 = vmatpush1.bf16.msra.mxu0 %v3219
        %3409 = vmatprep.subr.bf16.mxu0 %v3218
        %3410 = vmatpush1.bf16.msra.mxu0 %v3217
        %3411 = vmatprep.subr.bf16.mxu0 %v3216
        %3412 = vmatpush1.bf16.msra.mxu0 %v3215
        %3413 = vmatprep.subr.bf16.mxu0 0
        %3414 = vmatpush2.bf16.msra.mxu0 0
        %3415 = vmatprep.subr.bf16.mxu0 0
        %3416 = vmatpush2.bf16.msra.mxu0 0
        %3417 = vmatprep.subr.bf16.mxu0 0
        %3418 = vmatpush2.bf16.msra.mxu0 0
        %3419 = vmatprep.subr.bf16.mxu0 0
        %3420 = vmatpush2.bf16.msra.mxu0 0
        %3421 = vmatprep.subr.bf16.mxu0 0
        %3422 = vmatpush2.bf16.msra.mxu0 0
        %3423 = vmatprep.subr.bf16.mxu0 0
        %3424 = vmatpush2.bf16.msra.mxu0 0
        %3425 = vmatprep.subr.bf16.mxu0 0
        %3426 = vmatpush2.bf16.msra.mxu0 0
        %3427 = vmatprep.subr.bf16.mxu0 0
        %3428 = vmatpush2.bf16.msra.mxu0 0
        %3429 = vmatprep.mubr.bf16.mxu0 0
        %3430 = vmatmul.mubr.bf16.gmra.mxu0 %v2905
        %v3431 = vpop.f32.mrf.mxu0
        %v3432 = vadd.f32 %v3389, %v3431
        %v3433 = vpop.f32.mrf.mxu0
        %v3434 = vadd.f32 %v3391, %v3433
        %v3435 = vpop.f32.mrf.mxu0
        %v3436 = vadd.f32 %v3393, %v3435
        %v3437 = vpop.f32.mrf.mxu0
        %v3438 = vadd.f32 %v3395, %v3437
        %3439 = vdwg.mxu0
        %3440 = vst [vmem:[#allocation2] sm:$0xff] %v3432
        %3441 = vst [vmem:[#allocation2 + $0x8] sm:$0xff] %v3434
        %3442 = vst [vmem:[#allocation2 + $0xc0] sm:$0xff] %v3436
        %3443 = vst [vmem:[#allocation2 + $0xc8] sm:$0xff] %v3438
        %v3444 = vld [vmem:[#allocation3 + $0x4] sm:$0xff]
        %v3445 = vld [vmem:[#allocation3 + $0xc] sm:$0xff]
        %v3446 = vld [vmem:[#allocation3 + $0x14] sm:$0xf]
        %v3447 = vld [vmem:[#allocation3 + $0x34] sm:$0xff]
        %v3448 = vld [vmem:[#allocation3 + $0x3c] sm:$0xff]
        %v3449 = vld [vmem:[#allocation3 + $0x44] sm:$0xf]
        %v3456 = vunpack.c.l.b16 %v3444
        %v3457 = vunpack.c.h.b16 %v3444
        %v3458 = vunpack.c.l.b16 %v3445
        %v3459 = vunpack.c.h.b16 %v3445
        %v3460 = vunpack.c.l.b16 %v3446
        %v3461 = vunpack.c.l.b16 %v3447
        %v3462 = vunpack.c.h.b16 %v3447
        %v3463 = vunpack.c.l.b16 %v3448
        %v3464 = vunpack.c.h.b16 %v3448
        %v3465 = vunpack.c.l.b16 %v3449
        %v3466 = vpack.c.b16 %v3461, %v3456
        %v3467 = vpack.c.b16 %v3462, %v3457
        %v3468 = vpack.c.b16 %v3463, %v3458
        %v3469 = vpack.c.b16 %v3464, %v3459
        %v3470 = vpack.c.b16 %v3465, %v3460
        %3476 = vmatprep.subr.bf16.mxu0 %v3166
        %3477 = vmatpush1.bf16.msra.mxu0 %v3165
        %3478 = vmatprep.subr.bf16.mxu0 %v3164
        %3479 = vmatpush1.bf16.msra.mxu0 %v3163
        %3480 = vmatprep.subr.bf16.mxu0 %v3162
        %3481 = vmatpush1.bf16.msra.mxu0 %v3161
        %3482 = vmatprep.subr.bf16.mxu0 %v3160
        %3483 = vmatpush1.bf16.msra.mxu0 %v3159
        %3484 = vmatprep.subr.bf16.mxu0 %v3158
        %3485 = vmatpush1.bf16.msra.mxu0 %v3157
        %3486 = vmatprep.subr.bf16.mxu0 %v3156
        %3487 = vmatpush1.bf16.msra.mxu0 %v3155
        %3488 = vmatprep.subr.bf16.mxu0 %v3154
        %3489 = vmatpush1.bf16.msra.mxu0 %v3153
        %3490 = vmatprep.subr.bf16.mxu0 %v3152
        %3491 = vmatpush1.bf16.msra.mxu0 %v3151
        %3492 = vmatprep.subr.bf16.mxu0 %v3182
        %3493 = vmatpush2.bf16.msra.mxu0 %v3181
        %3494 = vmatprep.subr.bf16.mxu0 %v3180
        %3495 = vmatpush2.bf16.msra.mxu0 %v3179
        %3496 = vmatprep.subr.bf16.mxu0 %v3178
        %3497 = vmatpush2.bf16.msra.mxu0 %v3177
        %3498 = vmatprep.subr.bf16.mxu0 %v3176
        %3499 = vmatpush2.bf16.msra.mxu0 %v3175
        %3500 = vmatprep.subr.bf16.mxu0 %v3174
        %3501 = vmatpush2.bf16.msra.mxu0 %v3173
        %3502 = vmatprep.subr.bf16.mxu0 %v3172
        %3503 = vmatpush2.bf16.msra.mxu0 %v3171
        %3504 = vmatprep.subr.bf16.mxu0 %v3170
        %3505 = vmatpush2.bf16.msra.mxu0 %v3169
        %3506 = vmatprep.subr.bf16.mxu0 %v3168
        %3507 = vmatpush2.bf16.msra.mxu0 %v3167
        %3508 = vmatprep.mubr.bf16.mxu0 %v3467
        %3509 = vmatmul.mubr.bf16.gmra.mxu0 %v3466
        %v3510 = vpop.f32.mrf.mxu0
        %v3511 = vadd.f32 0.0, %v3510
        %v3512 = vpop.f32.mrf.mxu0
        %v3513 = vadd.f32 0.0, %v3512
        %v3514 = vpop.f32.mrf.mxu0
        %v3515 = vadd.f32 0.0, %v3514
        %v3516 = vpop.f32.mrf.mxu0
        %v3517 = vadd.f32 0.0, %v3516
        %3518 = vdwg.mxu0
        %3519 = vmatprep.subr.bf16.mxu0 %v3198
        %3520 = vmatpush1.bf16.msra.mxu0 %v3197
        %3521 = vmatprep.subr.bf16.mxu0 %v3196
        %3522 = vmatpush1.bf16.msra.mxu0 %v3195
        %3523 = vmatprep.subr.bf16.mxu0 %v3194
        %3524 = vmatpush1.bf16.msra.mxu0 %v3193
        %3525 = vmatprep.subr.bf16.mxu0 %v3192
        %3526 = vmatpush1.bf16.msra.mxu0 %v3191
        %3527 = vmatprep.subr.bf16.mxu0 %v3190
        %3528 = vmatpush1.bf16.msra.mxu0 %v3189
        %3529 = vmatprep.subr.bf16.mxu0 %v3188
        %3530 = vmatpush1.bf16.msra.mxu0 %v3187
        %3531 = vmatprep.subr.bf16.mxu0 %v3186
        %3532 = vmatpush1.bf16.msra.mxu0 %v3185
        %3533 = vmatprep.subr.bf16.mxu0 %v3184
        %3534 = vmatpush1.bf16.msra.mxu0 %v3183
        %3535 = vmatprep.subr.bf16.mxu0 %v3214
        %3536 = vmatpush2.bf16.msra.mxu0 %v3213
        %3537 = vmatprep.subr.bf16.mxu0 %v3212
        %3538 = vmatpush2.bf16.msra.mxu0 %v3211
        %3539 = vmatprep.subr.bf16.mxu0 %v3210
        %3540 = vmatpush2.bf16.msra.mxu0 %v3209
        %3541 = vmatprep.subr.bf16.mxu0 %v3208
        %3542 = vmatpush2.bf16.msra.mxu0 %v3207
        %3543 = vmatprep.subr.bf16.mxu0 %v3206
        %3544 = vmatpush2.bf16.msra.mxu0 %v3205
        %3545 = vmatprep.subr.bf16.mxu0 %v3204
        %3546 = vmatpush2.bf16.msra.mxu0 %v3203
        %3547 = vmatprep.subr.bf16.mxu0 %v3202
        %3548 = vmatpush2.bf16.msra.mxu0 %v3201
        %3549 = vmatprep.subr.bf16.mxu0 %v3200
        %3550 = vmatpush2.bf16.msra.mxu0 %v3199
        %3551 = vmatprep.mubr.bf16.mxu0 %v3469
        %3552 = vmatmul.mubr.bf16.gmra.mxu0 %v3468
        %v3553 = vpop.f32.mrf.mxu0
        %v3554 = vadd.f32 %v3511, %v3553
        %v3555 = vpop.f32.mrf.mxu0
        %v3556 = vadd.f32 %v3513, %v3555
        %v3557 = vpop.f32.mrf.mxu0
        %v3558 = vadd.f32 %v3515, %v3557
        %v3559 = vpop.f32.mrf.mxu0
        %v3560 = vadd.f32 %v3517, %v3559
        %3561 = vdwg.mxu0
        %3562 = vmatprep.subr.bf16.mxu0 %v3230
        %3563 = vmatpush1.bf16.msra.mxu0 %v3229
        %3564 = vmatprep.subr.bf16.mxu0 %v3228
        %3565 = vmatpush1.bf16.msra.mxu0 %v3227
        %3566 = vmatprep.subr.bf16.mxu0 %v3226
        %3567 = vmatpush1.bf16.msra.mxu0 %v3225
        %3568 = vmatprep.subr.bf16.mxu0 %v3224
        %3569 = vmatpush1.bf16.msra.mxu0 %v3223
        %3570 = vmatprep.subr.bf16.mxu0 %v3222
        %3571 = vmatpush1.bf16.msra.mxu0 %v3221
        %3572 = vmatprep.subr.bf16.mxu0 %v3220
        %3573 = vmatpush1.bf16.msra.mxu0 %v3219
        %3574 = vmatprep.subr.bf16.mxu0 %v3218
        %3575 = vmatpush1.bf16.msra.mxu0 %v3217
        %3576 = vmatprep.subr.bf16.mxu0 %v3216
        %3577 = vmatpush1.bf16.msra.mxu0 %v3215
        %3578 = vmatprep.subr.bf16.mxu0 0
        %3579 = vmatpush2.bf16.msra.mxu0 0
        %3580 = vmatprep.subr.bf16.mxu0 0
        %3581 = vmatpush2.bf16.msra.mxu0 0
        %3582 = vmatprep.subr.bf16.mxu0 0
        %3583 = vmatpush2.bf16.msra.mxu0 0
        %3584 = vmatprep.subr.bf16.mxu0 0
        %3585 = vmatpush2.bf16.msra.mxu0 0
        %3586 = vmatprep.subr.bf16.mxu0 0
        %3587 = vmatpush2.bf16.msra.mxu0 0
        %3588 = vmatprep.subr.bf16.mxu0 0
        %3589 = vmatpush2.bf16.msra.mxu0 0
        %3590 = vmatprep.subr.bf16.mxu0 0
        %3591 = vmatpush2.bf16.msra.mxu0 0
        %3592 = vmatprep.subr.bf16.mxu0 0
        %3593 = vmatpush2.bf16.msra.mxu0 0
        %3594 = vmatprep.mubr.bf16.mxu0 0
        %3595 = vmatmul.mubr.bf16.gmra.mxu0 %v3470
        %v3596 = vpop.f32.mrf.mxu0
        %v3597 = vadd.f32 %v3554, %v3596
        %v3598 = vpop.f32.mrf.mxu0
        %v3599 = vadd.f32 %v3556, %v3598
        %v3600 = vpop.f32.mrf.mxu0
        %v3601 = vadd.f32 %v3558, %v3600
        %v3602 = vpop.f32.mrf.mxu0
        %v3603 = vadd.f32 %v3560, %v3602
        %3604 = vdwg.mxu0
        %3605 = vst [vmem:[#allocation2 + $0x10] sm:$0xff] %v3597
        %3606 = vst [vmem:[#allocation2 + $0x18] sm:$0xff] %v3599
        %3607 = vst [vmem:[#allocation2 + $0xd0] sm:$0xff] %v3601
        %3608 = vst [vmem:[#allocation2 + $0xd8] sm:$0xff] %v3603
        %v3609 = vld [vmem:[#allocation3 + $0x8] sm:$0xff]
        %v3610 = vld [vmem:[#allocation3 + $0x10] sm:$0xff]
        %v3611 = vld [vmem:[#allocation3 + $0x18] sm:$0xf]
        %v3612 = vld [vmem:[#allocation3 + $0x38] sm:$0xff]
        %v3613 = vld [vmem:[#allocation3 + $0x40] sm:$0xff]
        %v3614 = vld [vmem:[#allocation3 + $0x48] sm:$0xf]
        %v3621 = vunpack.c.l.b16 %v3609
        %v3622 = vunpack.c.h.b16 %v3609
        %v3623 = vunpack.c.l.b16 %v3610
        %v3624 = vunpack.c.h.b16 %v3610
        %v3625 = vunpack.c.l.b16 %v3611
        %v3626 = vunpack.c.l.b16 %v3612
        %v3627 = vunpack.c.h.b16 %v3612
        %v3628 = vunpack.c.l.b16 %v3613
        %v3629 = vunpack.c.h.b16 %v3613
        %v3630 = vunpack.c.l.b16 %v3614
        %v3631 = vpack.c.b16 %v3626, %v3621
        %v3632 = vpack.c.b16 %v3627, %v3622
        %v3633 = vpack.c.b16 %v3628, %v3623
        %v3634 = vpack.c.b16 %v3629, %v3624
        %v3635 = vpack.c.b16 %v3630, %v3625
        %3641 = vmatprep.subr.bf16.mxu0 %v3166
        %3642 = vmatpush1.bf16.msra.mxu0 %v3165
        %3643 = vmatprep.subr.bf16.mxu0 %v3164
        %3644 = vmatpush1.bf16.msra.mxu0 %v3163
        %3645 = vmatprep.subr.bf16.mxu0 %v3162
        %3646 = vmatpush1.bf16.msra.mxu0 %v3161
        %3647 = vmatprep.subr.bf16.mxu0 %v3160
        %3648 = vmatpush1.bf16.msra.mxu0 %v3159
        %3649 = vmatprep.subr.bf16.mxu0 %v3158
        %3650 = vmatpush1.bf16.msra.mxu0 %v3157
        %3651 = vmatprep.subr.bf16.mxu0 %v3156
        %3652 = vmatpush1.bf16.msra.mxu0 %v3155
        %3653 = vmatprep.subr.bf16.mxu0 %v3154
        %3654 = vmatpush1.bf16.msra.mxu0 %v3153
        %3655 = vmatprep.subr.bf16.mxu0 %v3152
        %3656 = vmatpush1.bf16.msra.mxu0 %v3151
        %3657 = vmatprep.subr.bf16.mxu0 %v3182
        %3658 = vmatpush2.bf16.msra.mxu0 %v3181
        %3659 = vmatprep.subr.bf16.mxu0 %v3180
        %3660 = vmatpush2.bf16.msra.mxu0 %v3179
        %3661 = vmatprep.subr.bf16.mxu0 %v3178
        %3662 = vmatpush2.bf16.msra.mxu0 %v3177
        %3663 = vmatprep.subr.bf16.mxu0 %v3176
        %3664 = vmatpush2.bf16.msra.mxu0 %v3175
        %3665 = vmatprep.subr.bf16.mxu0 %v3174
        %3666 = vmatpush2.bf16.msra.mxu0 %v3173
        %3667 = vmatprep.subr.bf16.mxu0 %v3172
        %3668 = vmatpush2.bf16.msra.mxu0 %v3171
        %3669 = vmatprep.subr.bf16.mxu0 %v3170
        %3670 = vmatpush2.bf16.msra.mxu0 %v3169
        %3671 = vmatprep.subr.bf16.mxu0 %v3168
        %3672 = vmatpush2.bf16.msra.mxu0 %v3167
        %3673 = vmatprep.mubr.bf16.mxu0 %v3632
        %3674 = vmatmul.mubr.bf16.gmra.mxu0 %v3631
        %v3675 = vpop.f32.mrf.mxu0
        %v3676 = vadd.f32 0.0, %v3675
        %v3677 = vpop.f32.mrf.mxu0
        %v3678 = vadd.f32 0.0, %v3677
        %v3679 = vpop.f32.mrf.mxu0
        %v3680 = vadd.f32 0.0, %v3679
        %v3681 = vpop.f32.mrf.mxu0
        %v3682 = vadd.f32 0.0, %v3681
        %3683 = vdwg.mxu0
        %3684 = vmatprep.subr.bf16.mxu0 %v3198
        %3685 = vmatpush1.bf16.msra.mxu0 %v3197
        %3686 = vmatprep.subr.bf16.mxu0 %v3196
        %3687 = vmatpush1.bf16.msra.mxu0 %v3195
        %3688 = vmatprep.subr.bf16.mxu0 %v3194
        %3689 = vmatpush1.bf16.msra.mxu0 %v3193
        %3690 = vmatprep.subr.bf16.mxu0 %v3192
        %3691 = vmatpush1.bf16.msra.mxu0 %v3191
        %3692 = vmatprep.subr.bf16.mxu0 %v3190
        %3693 = vmatpush1.bf16.msra.mxu0 %v3189
        %3694 = vmatprep.subr.bf16.mxu0 %v3188
        %3695 = vmatpush1.bf16.msra.mxu0 %v3187
        %3696 = vmatprep.subr.bf16.mxu0 %v3186
        %3697 = vmatpush1.bf16.msra.mxu0 %v3185
        %3698 = vmatprep.subr.bf16.mxu0 %v3184
        %3699 = vmatpush1.bf16.msra.mxu0 %v3183
        %3700 = vmatprep.subr.bf16.mxu0 %v3214
        %3701 = vmatpush2.bf16.msra.mxu0 %v3213
        %3702 = vmatprep.subr.bf16.mxu0 %v3212
        %3703 = vmatpush2.bf16.msra.mxu0 %v3211
        %3704 = vmatprep.subr.bf16.mxu0 %v3210
        %3705 = vmatpush2.bf16.msra.mxu0 %v3209
        %3706 = vmatprep.subr.bf16.mxu0 %v3208
        %3707 = vmatpush2.bf16.msra.mxu0 %v3207
        %3708 = vmatprep.subr.bf16.mxu0 %v3206
        %3709 = vmatpush2.bf16.msra.mxu0 %v3205
        %3710 = vmatprep.subr.bf16.mxu0 %v3204
        %3711 = vmatpush2.bf16.msra.mxu0 %v3203
        %3712 = vmatprep.subr.bf16.mxu0 %v3202
        %3713 = vmatpush2.bf16.msra.mxu0 %v3201
        %3714 = vmatprep.subr.bf16.mxu0 %v3200
        %3715 = vmatpush2.bf16.msra.mxu0 %v3199
        %3716 = vmatprep.mubr.bf16.mxu0 %v3634
        %3717 = vmatmul.mubr.bf16.gmra.mxu0 %v3633
        %v3718 = vpop.f32.mrf.mxu0
        %v3719 = vadd.f32 %v3676, %v3718
        %v3720 = vpop.f32.mrf.mxu0
        %v3721 = vadd.f32 %v3678, %v3720
        %v3722 = vpop.f32.mrf.mxu0
        %v3723 = vadd.f32 %v3680, %v3722
        %v3724 = vpop.f32.mrf.mxu0
        %v3725 = vadd.f32 %v3682, %v3724
        %3726 = vdwg.mxu0
        %3727 = vmatprep.subr.bf16.mxu0 %v3230
        %3728 = vmatpush1.bf16.msra.mxu0 %v3229
        %3729 = vmatprep.subr.bf16.mxu0 %v3228
        %3730 = vmatpush1.bf16.msra.mxu0 %v3227
        %3731 = vmatprep.subr.bf16.mxu0 %v3226
        %3732 = vmatpush1.bf16.msra.mxu0 %v3225
        %3733 = vmatprep.subr.bf16.mxu0 %v3224
        %3734 = vmatpush1.bf16.msra.mxu0 %v3223
        %3735 = vmatprep.subr.bf16.mxu0 %v3222
        %3736 = vmatpush1.bf16.msra.mxu0 %v3221
        %3737 = vmatprep.subr.bf16.mxu0 %v3220
        %3738 = vmatpush1.bf16.msra.mxu0 %v3219
        %3739 = vmatprep.subr.bf16.mxu0 %v3218
        %3740 = vmatpush1.bf16.msra.mxu0 %v3217
        %3741 = vmatprep.subr.bf16.mxu0 %v3216
        %3742 = vmatpush1.bf16.msra.mxu0 %v3215
        %3743 = vmatprep.subr.bf16.mxu0 0
        %3744 = vmatpush2.bf16.msra.mxu0 0
        %3745 = vmatprep.subr.bf16.mxu0 0
        %3746 = vmatpush2.bf16.msra.mxu0 0
        %3747 = vmatprep.subr.bf16.mxu0 0
        %3748 = vmatpush2.bf16.msra.mxu0 0
        %3749 = vmatprep.subr.bf16.mxu0 0
        %3750 = vmatpush2.bf16.msra.mxu0 0
        %3751 = vmatprep.subr.bf16.mxu0 0
        %3752 = vmatpush2.bf16.msra.mxu0 0
        %3753 = vmatprep.subr.bf16.mxu0 0
        %3754 = vmatpush2.bf16.msra.mxu0 0
        %3755 = vmatprep.subr.bf16.mxu0 0
        %3756 = vmatpush2.bf16.msra.mxu0 0
        %3757 = vmatprep.subr.bf16.mxu0 0
        %3758 = vmatpush2.bf16.msra.mxu0 0
        %3759 = vmatprep.mubr.bf16.mxu0 0
        %3760 = vmatmul.mubr.bf16.gmra.mxu0 %v3635
        %v3761 = vpop.f32.mrf.mxu0
        %v3762 = vadd.f32 %v3719, %v3761
        %v3763 = vpop.f32.mrf.mxu0
        %v3764 = vadd.f32 %v3721, %v3763
        %v3765 = vpop.f32.mrf.mxu0
        %v3766 = vadd.f32 %v3723, %v3765
        %v3767 = vpop.f32.mrf.mxu0
        %v3768 = vadd.f32 %v3725, %v3767
        %3769 = vdwg.mxu0
        %3770 = vst [vmem:[#allocation2 + $0x20] sm:$0xff] %v3762
        %3771 = vst [vmem:[#allocation2 + $0x28] sm:$0xff] %v3764
        %3772 = vst [vmem:[#allocation2 + $0xe0] sm:$0xff] %v3766
        %3773 = vst [vmem:[#allocation2 + $0xe8] sm:$0xff] %v3768
        %v3774 = vld [vmem:[#allocation3 + $0xc] sm:$0xff]
        %v3775 = vld [vmem:[#allocation3 + $0x14] sm:$0xff]
        %v3776 = vld [vmem:[#allocation3 + $0x1c] sm:$0xf]
        %v3777 = vld [vmem:[#allocation3 + $0x3c] sm:$0xff]
        %v3778 = vld [vmem:[#allocation3 + $0x44] sm:$0xff]
        %v3779 = vld [vmem:[#allocation3 + $0x4c] sm:$0xf]
        %v3786 = vunpack.c.l.b16 %v3774
        %v3787 = vunpack.c.h.b16 %v3774
        %v3788 = vunpack.c.l.b16 %v3775
        %v3789 = vunpack.c.h.b16 %v3775
        %v3790 = vunpack.c.l.b16 %v3776
        %v3791 = vunpack.c.l.b16 %v3777
        %v3792 = vunpack.c.h.b16 %v3777
        %v3793 = vunpack.c.l.b16 %v3778
        %v3794 = vunpack.c.h.b16 %v3778
        %v3795 = vunpack.c.l.b16 %v3779
        %v3796 = vpack.c.b16 %v3791, %v3786
        %v3797 = vpack.c.b16 %v3792, %v3787
        %v3798 = vpack.c.b16 %v3793, %v3788
        %v3799 = vpack.c.b16 %v3794, %v3789
        %v3800 = vpack.c.b16 %v3795, %v3790
        %3806 = vmatprep.subr.bf16.mxu0 %v3166
        %3807 = vmatpush1.bf16.msra.mxu0 %v3165
        %3808 = vmatprep.subr.bf16.mxu0 %v3164
        %3809 = vmatpush1.bf16.msra.mxu0 %v3163
        %3810 = vmatprep.subr.bf16.mxu0 %v3162
        %3811 = vmatpush1.bf16.msra.mxu0 %v3161
        %3812 = vmatprep.subr.bf16.mxu0 %v3160
        %3813 = vmatpush1.bf16.msra.mxu0 %v3159
        %3814 = vmatprep.subr.bf16.mxu0 %v3158
        %3815 = vmatpush1.bf16.msra.mxu0 %v3157
        %3816 = vmatprep.subr.bf16.mxu0 %v3156
        %3817 = vmatpush1.bf16.msra.mxu0 %v3155
        %3818 = vmatprep.subr.bf16.mxu0 %v3154
        %3819 = vmatpush1.bf16.msra.mxu0 %v3153
        %3820 = vmatprep.subr.bf16.mxu0 %v3152
        %3821 = vmatpush1.bf16.msra.mxu0 %v3151
        %3822 = vmatprep.subr.bf16.mxu0 %v3182
        %3823 = vmatpush2.bf16.msra.mxu0 %v3181
        %3824 = vmatprep.subr.bf16.mxu0 %v3180
        %3825 = vmatpush2.bf16.msra.mxu0 %v3179
        %3826 = vmatprep.subr.bf16.mxu0 %v3178
        %3827 = vmatpush2.bf16.msra.mxu0 %v3177
        %3828 = vmatprep.subr.bf16.mxu0 %v3176
        %3829 = vmatpush2.bf16.msra.mxu0 %v3175
        %3830 = vmatprep.subr.bf16.mxu0 %v3174
        %3831 = vmatpush2.bf16.msra.mxu0 %v3173
        %3832 = vmatprep.subr.bf16.mxu0 %v3172
        %3833 = vmatpush2.bf16.msra.mxu0 %v3171
        %3834 = vmatprep.subr.bf16.mxu0 %v3170
        %3835 = vmatpush2.bf16.msra.mxu0 %v3169
        %3836 = vmatprep.subr.bf16.mxu0 %v3168
        %3837 = vmatpush2.bf16.msra.mxu0 %v3167
        %3838 = vmatprep.mubr.bf16.mxu0 %v3797
        %3839 = vmatmul.mubr.bf16.gmra.mxu0 %v3796
        %v3840 = vpop.f32.mrf.mxu0
        %v3841 = vadd.f32 0.0, %v3840
        %v3842 = vpop.f32.mrf.mxu0
        %v3843 = vadd.f32 0.0, %v3842
        %v3844 = vpop.f32.mrf.mxu0
        %v3845 = vadd.f32 0.0, %v3844
        %v3846 = vpop.f32.mrf.mxu0
        %v3847 = vadd.f32 0.0, %v3846
        %3848 = vdwg.mxu0
        %3849 = vmatprep.subr.bf16.mxu0 %v3198
        %3850 = vmatpush1.bf16.msra.mxu0 %v3197
        %3851 = vmatprep.subr.bf16.mxu0 %v3196
        %3852 = vmatpush1.bf16.msra.mxu0 %v3195
        %3853 = vmatprep.subr.bf16.mxu0 %v3194
        %3854 = vmatpush1.bf16.msra.mxu0 %v3193
        %3855 = vmatprep.subr.bf16.mxu0 %v3192
        %3856 = vmatpush1.bf16.msra.mxu0 %v3191
        %3857 = vmatprep.subr.bf16.mxu0 %v3190
        %3858 = vmatpush1.bf16.msra.mxu0 %v3189
        %3859 = vmatprep.subr.bf16.mxu0 %v3188
        %3860 = vmatpush1.bf16.msra.mxu0 %v3187
        %3861 = vmatprep.subr.bf16.mxu0 %v3186
        %3862 = vmatpush1.bf16.msra.mxu0 %v3185
        %3863 = vmatprep.subr.bf16.mxu0 %v3184
        %3864 = vmatpush1.bf16.msra.mxu0 %v3183
        %3865 = vmatprep.subr.bf16.mxu0 %v3214
        %3866 = vmatpush2.bf16.msra.mxu0 %v3213
        %3867 = vmatprep.subr.bf16.mxu0 %v3212
        %3868 = vmatpush2.bf16.msra.mxu0 %v3211
        %3869 = vmatprep.subr.bf16.mxu0 %v3210
        %3870 = vmatpush2.bf16.msra.mxu0 %v3209
        %3871 = vmatprep.subr.bf16.mxu0 %v3208
        %3872 = vmatpush2.bf16.msra.mxu0 %v3207
        %3873 = vmatprep.subr.bf16.mxu0 %v3206
        %3874 = vmatpush2.bf16.msra.mxu0 %v3205
        %3875 = vmatprep.subr.bf16.mxu0 %v3204
        %3876 = vmatpush2.bf16.msra.mxu0 %v3203
        %3877 = vmatprep.subr.bf16.mxu0 %v3202
        %3878 = vmatpush2.bf16.msra.mxu0 %v3201
        %3879 = vmatprep.subr.bf16.mxu0 %v3200
        %3880 = vmatpush2.bf16.msra.mxu0 %v3199
        %3881 = vmatprep.mubr.bf16.mxu0 %v3799
        %3882 = vmatmul.mubr.bf16.gmra.mxu0 %v3798
        %v3883 = vpop.f32.mrf.mxu0
        %v3884 = vadd.f32 %v3841, %v3883
        %v3885 = vpop.f32.mrf.mxu0
        %v3886 = vadd.f32 %v3843, %v3885
        %v3887 = vpop.f32.mrf.mxu0
        %v3888 = vadd.f32 %v3845, %v3887
        %v3889 = vpop.f32.mrf.mxu0
        %v3890 = vadd.f32 %v3847, %v3889
        %3891 = vdwg.mxu0
        %3892 = vmatprep.subr.bf16.mxu0 %v3230
        %3893 = vmatpush1.bf16.msra.mxu0 %v3229
        %3894 = vmatprep.subr.bf16.mxu0 %v3228
        %3895 = vmatpush1.bf16.msra.mxu0 %v3227
        %3896 = vmatprep.subr.bf16.mxu0 %v3226
        %3897 = vmatpush1.bf16.msra.mxu0 %v3225
        %3898 = vmatprep.subr.bf16.mxu0 %v3224
        %3899 = vmatpush1.bf16.msra.mxu0 %v3223
        %3900 = vmatprep.subr.bf16.mxu0 %v3222
        %3901 = vmatpush1.bf16.msra.mxu0 %v3221
        %3902 = vmatprep.subr.bf16.mxu0 %v3220
        %3903 = vmatpush1.bf16.msra.mxu0 %v3219
        %3904 = vmatprep.subr.bf16.mxu0 %v3218
        %3905 = vmatpush1.bf16.msra.mxu0 %v3217
        %3906 = vmatprep.subr.bf16.mxu0 %v3216
        %3907 = vmatpush1.bf16.msra.mxu0 %v3215
        %3908 = vmatprep.subr.bf16.mxu0 0
        %3909 = vmatpush2.bf16.msra.mxu0 0
        %3910 = vmatprep.subr.bf16.mxu0 0
        %3911 = vmatpush2.bf16.msra.mxu0 0
        %3912 = vmatprep.subr.bf16.mxu0 0
        %3913 = vmatpush2.bf16.msra.mxu0 0
        %3914 = vmatprep.subr.bf16.mxu0 0
        %3915 = vmatpush2.bf16.msra.mxu0 0
        %3916 = vmatprep.subr.bf16.mxu0 0
        %3917 = vmatpush2.bf16.msra.mxu0 0
        %3918 = vmatprep.subr.bf16.mxu0 0
        %3919 = vmatpush2.bf16.msra.mxu0 0
        %3920 = vmatprep.subr.bf16.mxu0 0
        %3921 = vmatpush2.bf16.msra.mxu0 0
        %3922 = vmatprep.subr.bf16.mxu0 0
        %3923 = vmatpush2.bf16.msra.mxu0 0
        %3924 = vmatprep.mubr.bf16.mxu0 0
        %3925 = vmatmul.mubr.bf16.gmra.mxu0 %v3800
        %v3926 = vpop.f32.mrf.mxu0
        %v3927 = vadd.f32 %v3884, %v3926
        %v3928 = vpop.f32.mrf.mxu0
        %v3929 = vadd.f32 %v3886, %v3928
        %v3930 = vpop.f32.mrf.mxu0
        %v3931 = vadd.f32 %v3888, %v3930
        %v3932 = vpop.f32.mrf.mxu0
        %v3933 = vadd.f32 %v3890, %v3932
        %3934 = vdwg.mxu0
        %3935 = vst [vmem:[#allocation2 + $0x30] sm:$0xff] %v3927
        %3936 = vst [vmem:[#allocation2 + $0x38] sm:$0xff] %v3929
        %3937 = vst [vmem:[#allocation2 + $0xf0] sm:$0xff] %v3931
        %3938 = vst [vmem:[#allocation2 + $0xf8] sm:$0xff] %v3933
        %v3939 = vld [vmem:[#allocation3 + $0x10] sm:$0xff]
        %v3940 = vld [vmem:[#allocation3 + $0x18] sm:$0xff]
        %v3941 = vld [vmem:[#allocation3 + $0x20] sm:$0xf]
        %v3942 = vld [vmem:[#allocation3 + $0x40] sm:$0xff]
        %v3943 = vld [vmem:[#allocation3 + $0x48] sm:$0xff]
        %v3944 = vld [vmem:[#allocation3 + $0x50] sm:$0xf]
        %v3951 = vunpack.c.l.b16 %v3939
        %v3952 = vunpack.c.h.b16 %v3939
        %v3953 = vunpack.c.l.b16 %v3940
        %v3954 = vunpack.c.h.b16 %v3940
        %v3955 = vunpack.c.l.b16 %v3941
        %v3956 = vunpack.c.l.b16 %v3942
        %v3957 = vunpack.c.h.b16 %v3942
        %v3958 = vunpack.c.l.b16 %v3943
        %v3959 = vunpack.c.h.b16 %v3943
        %v3960 = vunpack.c.l.b16 %v3944
        %v3961 = vpack.c.b16 %v3956, %v3951
        %v3962 = vpack.c.b16 %v3957, %v3952
        %v3963 = vpack.c.b16 %v3958, %v3953
        %v3964 = vpack.c.b16 %v3959, %v3954
        %v3965 = vpack.c.b16 %v3960, %v3955
        %3971 = vmatprep.subr.bf16.mxu0 %v3166
        %3972 = vmatpush1.bf16.msra.mxu0 %v3165
        %3973 = vmatprep.subr.bf16.mxu0 %v3164
        %3974 = vmatpush1.bf16.msra.mxu0 %v3163
        %3975 = vmatprep.subr.bf16.mxu0 %v3162
        %3976 = vmatpush1.bf16.msra.mxu0 %v3161
        %3977 = vmatprep.subr.bf16.mxu0 %v3160
        %3978 = vmatpush1.bf16.msra.mxu0 %v3159
        %3979 = vmatprep.subr.bf16.mxu0 %v3158
        %3980 = vmatpush1.bf16.msra.mxu0 %v3157
        %3981 = vmatprep.subr.bf16.mxu0 %v3156
        %3982 = vmatpush1.bf16.msra.mxu0 %v3155
        %3983 = vmatprep.subr.bf16.mxu0 %v3154
        %3984 = vmatpush1.bf16.msra.mxu0 %v3153
        %3985 = vmatprep.subr.bf16.mxu0 %v3152
        %3986 = vmatpush1.bf16.msra.mxu0 %v3151
        %3987 = vmatprep.subr.bf16.mxu0 %v3182
        %3988 = vmatpush2.bf16.msra.mxu0 %v3181
        %3989 = vmatprep.subr.bf16.mxu0 %v3180
        %3990 = vmatpush2.bf16.msra.mxu0 %v3179
        %3991 = vmatprep.subr.bf16.mxu0 %v3178
        %3992 = vmatpush2.bf16.msra.mxu0 %v3177
        %3993 = vmatprep.subr.bf16.mxu0 %v3176
        %3994 = vmatpush2.bf16.msra.mxu0 %v3175
        %3995 = vmatprep.subr.bf16.mxu0 %v3174
        %3996 = vmatpush2.bf16.msra.mxu0 %v3173
        %3997 = vmatprep.subr.bf16.mxu0 %v3172
        %3998 = vmatpush2.bf16.msra.mxu0 %v3171
        %3999 = vmatprep.subr.bf16.mxu0 %v3170
        %4000 = vmatpush2.bf16.msra.mxu0 %v3169
        %4001 = vmatprep.subr.bf16.mxu0 %v3168
        %4002 = vmatpush2.bf16.msra.mxu0 %v3167
        %4003 = vmatprep.mubr.bf16.mxu0 %v3962
        %4004 = vmatmul.mubr.bf16.gmra.mxu0 %v3961
        %v4005 = vpop.f32.mrf.mxu0
        %v4006 = vadd.f32 0.0, %v4005
        %v4007 = vpop.f32.mrf.mxu0
        %v4008 = vadd.f32 0.0, %v4007
        %v4009 = vpop.f32.mrf.mxu0
        %v4010 = vadd.f32 0.0, %v4009
        %v4011 = vpop.f32.mrf.mxu0
        %v4012 = vadd.f32 0.0, %v4011
        %4013 = vdwg.mxu0
        %4014 = vmatprep.subr.bf16.mxu0 %v3198
        %4015 = vmatpush1.bf16.msra.mxu0 %v3197
        %4016 = vmatprep.subr.bf16.mxu0 %v3196
        %4017 = vmatpush1.bf16.msra.mxu0 %v3195
        %4018 = vmatprep.subr.bf16.mxu0 %v3194
        %4019 = vmatpush1.bf16.msra.mxu0 %v3193
        %4020 = vmatprep.subr.bf16.mxu0 %v3192
        %4021 = vmatpush1.bf16.msra.mxu0 %v3191
        %4022 = vmatprep.subr.bf16.mxu0 %v3190
        %4023 = vmatpush1.bf16.msra.mxu0 %v3189
        %4024 = vmatprep.subr.bf16.mxu0 %v3188
        %4025 = vmatpush1.bf16.msra.mxu0 %v3187
        %4026 = vmatprep.subr.bf16.mxu0 %v3186
        %4027 = vmatpush1.bf16.msra.mxu0 %v3185
        %4028 = vmatprep.subr.bf16.mxu0 %v3184
        %4029 = vmatpush1.bf16.msra.mxu0 %v3183
        %4030 = vmatprep.subr.bf16.mxu0 %v3214
        %4031 = vmatpush2.bf16.msra.mxu0 %v3213
        %4032 = vmatprep.subr.bf16.mxu0 %v3212
        %4033 = vmatpush2.bf16.msra.mxu0 %v3211
        %4034 = vmatprep.subr.bf16.mxu0 %v3210
        %4035 = vmatpush2.bf16.msra.mxu0 %v3209
        %4036 = vmatprep.subr.bf16.mxu0 %v3208
        %4037 = vmatpush2.bf16.msra.mxu0 %v3207
        %4038 = vmatprep.subr.bf16.mxu0 %v3206
        %4039 = vmatpush2.bf16.msra.mxu0 %v3205
        %4040 = vmatprep.subr.bf16.mxu0 %v3204
        %4041 = vmatpush2.bf16.msra.mxu0 %v3203
        %4042 = vmatprep.subr.bf16.mxu0 %v3202
        %4043 = vmatpush2.bf16.msra.mxu0 %v3201
        %4044 = vmatprep.subr.bf16.mxu0 %v3200
        %4045 = vmatpush2.bf16.msra.mxu0 %v3199
        %4046 = vmatprep.mubr.bf16.mxu0 %v3964
        %4047 = vmatmul.mubr.bf16.gmra.mxu0 %v3963
        %v4048 = vpop.f32.mrf.mxu0
        %v4049 = vadd.f32 %v4006, %v4048
        %v4050 = vpop.f32.mrf.mxu0
        %v4051 = vadd.f32 %v4008, %v4050
        %v4052 = vpop.f32.mrf.mxu0
        %v4053 = vadd.f32 %v4010, %v4052
        %v4054 = vpop.f32.mrf.mxu0
        %v4055 = vadd.f32 %v4012, %v4054
        %4056 = vdwg.mxu0
        %4057 = vmatprep.subr.bf16.mxu0 %v3230
        %4058 = vmatpush1.bf16.msra.mxu0 %v3229
        %4059 = vmatprep.subr.bf16.mxu0 %v3228
        %4060 = vmatpush1.bf16.msra.mxu0 %v3227
        %4061 = vmatprep.subr.bf16.mxu0 %v3226
        %4062 = vmatpush1.bf16.msra.mxu0 %v3225
        %4063 = vmatprep.subr.bf16.mxu0 %v3224
        %4064 = vmatpush1.bf16.msra.mxu0 %v3223
        %4065 = vmatprep.subr.bf16.mxu0 %v3222
        %4066 = vmatpush1.bf16.msra.mxu0 %v3221
        %4067 = vmatprep.subr.bf16.mxu0 %v3220
        %4068 = vmatpush1.bf16.msra.mxu0 %v3219
        %4069 = vmatprep.subr.bf16.mxu0 %v3218
        %4070 = vmatpush1.bf16.msra.mxu0 %v3217
        %4071 = vmatprep.subr.bf16.mxu0 %v3216
        %4072 = vmatpush1.bf16.msra.mxu0 %v3215
        %4073 = vmatprep.subr.bf16.mxu0 0
        %4074 = vmatpush2.bf16.msra.mxu0 0
        %4075 = vmatprep.subr.bf16.mxu0 0
        %4076 = vmatpush2.bf16.msra.mxu0 0
        %4077 = vmatprep.subr.bf16.mxu0 0
        %4078 = vmatpush2.bf16.msra.mxu0 0
        %4079 = vmatprep.subr.bf16.mxu0 0
        %4080 = vmatpush2.bf16.msra.mxu0 0
        %4081 = vmatprep.subr.bf16.mxu0 0
        %4082 = vmatpush2.bf16.msra.mxu0 0
        %4083 = vmatprep.subr.bf16.mxu0 0
        %4084 = vmatpush2.bf16.msra.mxu0 0
        %4085 = vmatprep.subr.bf16.mxu0 0
        %4086 = vmatpush2.bf16.msra.mxu0 0
        %4087 = vmatprep.subr.bf16.mxu0 0
        %4088 = vmatpush2.bf16.msra.mxu0 0
        %4089 = vmatprep.mubr.bf16.mxu0 0
        %4090 = vmatmul.mubr.bf16.gmra.mxu0 %v3965
        %v4091 = vpop.f32.mrf.mxu0
        %v4092 = vadd.f32 %v4049, %v4091
        %v4093 = vpop.f32.mrf.mxu0
        %v4094 = vadd.f32 %v4051, %v4093
        %v4095 = vpop.f32.mrf.mxu0
        %v4096 = vadd.f32 %v4053, %v4095
        %v4097 = vpop.f32.mrf.mxu0
        %v4098 = vadd.f32 %v4055, %v4097
        %4099 = vdwg.mxu0
        %4100 = vst [vmem:[#allocation2 + $0x40] sm:$0xff] %v4092
        %4101 = vst [vmem:[#allocation2 + $0x48] sm:$0xff] %v4094
        %4102 = vst [vmem:[#allocation2 + $0x100] sm:$0xff] %v4096
        %4103 = vst [vmem:[#allocation2 + $0x108] sm:$0xff] %v4098
        %v4104 = vld [vmem:[#allocation3 + $0x14] sm:$0xff]
        %v4105 = vld [vmem:[#allocation3 + $0x1c] sm:$0xff]
        %v4106 = vld [vmem:[#allocation3 + $0x24] sm:$0xf]
        %v4107 = vld [vmem:[#allocation3 + $0x44] sm:$0xff]
        %v4108 = vld [vmem:[#allocation3 + $0x4c] sm:$0xff]
        %v4109 = vld [vmem:[#allocation3 + $0x54] sm:$0xf]
        %v4116 = vunpack.c.l.b16 %v4104
        %v4117 = vunpack.c.h.b16 %v4104
        %v4118 = vunpack.c.l.b16 %v4105
        %v4119 = vunpack.c.h.b16 %v4105
        %v4120 = vunpack.c.l.b16 %v4106
        %v4121 = vunpack.c.l.b16 %v4107
        %v4122 = vunpack.c.h.b16 %v4107
        %v4123 = vunpack.c.l.b16 %v4108
        %v4124 = vunpack.c.h.b16 %v4108
        %v4125 = vunpack.c.l.b16 %v4109
        %v4126 = vpack.c.b16 %v4121, %v4116
        %v4127 = vpack.c.b16 %v4122, %v4117
        %v4128 = vpack.c.b16 %v4123, %v4118
        %v4129 = vpack.c.b16 %v4124, %v4119
        %v4130 = vpack.c.b16 %v4125, %v4120
        %4136 = vmatprep.subr.bf16.mxu0 %v3166
        %4137 = vmatpush1.bf16.msra.mxu0 %v3165
        %4138 = vmatprep.subr.bf16.mxu0 %v3164
        %4139 = vmatpush1.bf16.msra.mxu0 %v3163
        %4140 = vmatprep.subr.bf16.mxu0 %v3162
        %4141 = vmatpush1.bf16.msra.mxu0 %v3161
        %4142 = vmatprep.subr.bf16.mxu0 %v3160
        %4143 = vmatpush1.bf16.msra.mxu0 %v3159
        %4144 = vmatprep.subr.bf16.mxu0 %v3158
        %4145 = vmatpush1.bf16.msra.mxu0 %v3157
        %4146 = vmatprep.subr.bf16.mxu0 %v3156
        %4147 = vmatpush1.bf16.msra.mxu0 %v3155
        %4148 = vmatprep.subr.bf16.mxu0 %v3154
        %4149 = vmatpush1.bf16.msra.mxu0 %v3153
        %4150 = vmatprep.subr.bf16.mxu0 %v3152
        %4151 = vmatpush1.bf16.msra.mxu0 %v3151
        %4152 = vmatprep.subr.bf16.mxu0 %v3182
        %4153 = vmatpush2.bf16.msra.mxu0 %v3181
        %4154 = vmatprep.subr.bf16.mxu0 %v3180
        %4155 = vmatpush2.bf16.msra.mxu0 %v3179
        %4156 = vmatprep.subr.bf16.mxu0 %v3178
        %4157 = vmatpush2.bf16.msra.mxu0 %v3177
        %4158 = vmatprep.subr.bf16.mxu0 %v3176
        %4159 = vmatpush2.bf16.msra.mxu0 %v3175
        %4160 = vmatprep.subr.bf16.mxu0 %v3174
        %4161 = vmatpush2.bf16.msra.mxu0 %v3173
        %4162 = vmatprep.subr.bf16.mxu0 %v3172
        %4163 = vmatpush2.bf16.msra.mxu0 %v3171
        %4164 = vmatprep.subr.bf16.mxu0 %v3170
        %4165 = vmatpush2.bf16.msra.mxu0 %v3169
        %4166 = vmatprep.subr.bf16.mxu0 %v3168
        %4167 = vmatpush2.bf16.msra.mxu0 %v3167
        %4168 = vmatprep.mubr.bf16.mxu0 %v4127
        %4169 = vmatmul.mubr.bf16.gmra.mxu0 %v4126
        %v4170 = vpop.f32.mrf.mxu0
        %v4171 = vadd.f32 0.0, %v4170
        %v4172 = vpop.f32.mrf.mxu0
        %v4173 = vadd.f32 0.0, %v4172
        %v4174 = vpop.f32.mrf.mxu0
        %v4175 = vadd.f32 0.0, %v4174
        %v4176 = vpop.f32.mrf.mxu0
        %v4177 = vadd.f32 0.0, %v4176
        %4178 = vdwg.mxu0
        %4179 = vmatprep.subr.bf16.mxu0 %v3198
        %4180 = vmatpush1.bf16.msra.mxu0 %v3197
        %4181 = vmatprep.subr.bf16.mxu0 %v3196
        %4182 = vmatpush1.bf16.msra.mxu0 %v3195
        %4183 = vmatprep.subr.bf16.mxu0 %v3194
        %4184 = vmatpush1.bf16.msra.mxu0 %v3193
        %4185 = vmatprep.subr.bf16.mxu0 %v3192
        %4186 = vmatpush1.bf16.msra.mxu0 %v3191
        %4187 = vmatprep.subr.bf16.mxu0 %v3190
        %4188 = vmatpush1.bf16.msra.mxu0 %v3189
        %4189 = vmatprep.subr.bf16.mxu0 %v3188
        %4190 = vmatpush1.bf16.msra.mxu0 %v3187
        %4191 = vmatprep.subr.bf16.mxu0 %v3186
        %4192 = vmatpush1.bf16.msra.mxu0 %v3185
        %4193 = vmatprep.subr.bf16.mxu0 %v3184
        %4194 = vmatpush1.bf16.msra.mxu0 %v3183
        %4195 = vmatprep.subr.bf16.mxu0 %v3214
        %4196 = vmatpush2.bf16.msra.mxu0 %v3213
        %4197 = vmatprep.subr.bf16.mxu0 %v3212
        %4198 = vmatpush2.bf16.msra.mxu0 %v3211
        %4199 = vmatprep.subr.bf16.mxu0 %v3210
        %4200 = vmatpush2.bf16.msra.mxu0 %v3209
        %4201 = vmatprep.subr.bf16.mxu0 %v3208
        %4202 = vmatpush2.bf16.msra.mxu0 %v3207
        %4203 = vmatprep.subr.bf16.mxu0 %v3206
        %4204 = vmatpush2.bf16.msra.mxu0 %v3205
        %4205 = vmatprep.subr.bf16.mxu0 %v3204
        %4206 = vmatpush2.bf16.msra.mxu0 %v3203
        %4207 = vmatprep.subr.bf16.mxu0 %v3202
        %4208 = vmatpush2.bf16.msra.mxu0 %v3201
        %4209 = vmatprep.subr.bf16.mxu0 %v3200
        %4210 = vmatpush2.bf16.msra.mxu0 %v3199
        %4211 = vmatprep.mubr.bf16.mxu0 %v4129
        %4212 = vmatmul.mubr.bf16.gmra.mxu0 %v4128
        %v4213 = vpop.f32.mrf.mxu0
        %v4214 = vadd.f32 %v4171, %v4213
        %v4215 = vpop.f32.mrf.mxu0
        %v4216 = vadd.f32 %v4173, %v4215
        %v4217 = vpop.f32.mrf.mxu0
        %v4218 = vadd.f32 %v4175, %v4217
        %v4219 = vpop.f32.mrf.mxu0
        %v4220 = vadd.f32 %v4177, %v4219
        %4221 = vdwg.mxu0
        %4222 = vmatprep.subr.bf16.mxu0 %v3230
        %4223 = vmatpush1.bf16.msra.mxu0 %v3229
        %4224 = vmatprep.subr.bf16.mxu0 %v3228
        %4225 = vmatpush1.bf16.msra.mxu0 %v3227
        %4226 = vmatprep.subr.bf16.mxu0 %v3226
        %4227 = vmatpush1.bf16.msra.mxu0 %v3225
        %4228 = vmatprep.subr.bf16.mxu0 %v3224
        %4229 = vmatpush1.bf16.msra.mxu0 %v3223
        %4230 = vmatprep.subr.bf16.mxu0 %v3222
        %4231 = vmatpush1.bf16.msra.mxu0 %v3221
        %4232 = vmatprep.subr.bf16.mxu0 %v3220
        %4233 = vmatpush1.bf16.msra.mxu0 %v3219
        %4234 = vmatprep.subr.bf16.mxu0 %v3218
        %4235 = vmatpush1.bf16.msra.mxu0 %v3217
        %4236 = vmatprep.subr.bf16.mxu0 %v3216
        %4237 = vmatpush1.bf16.msra.mxu0 %v3215
        %4238 = vmatprep.subr.bf16.mxu0 0
        %4239 = vmatpush2.bf16.msra.mxu0 0
        %4240 = vmatprep.subr.bf16.mxu0 0
        %4241 = vmatpush2.bf16.msra.mxu0 0
        %4242 = vmatprep.subr.bf16.mxu0 0
        %4243 = vmatpush2.bf16.msra.mxu0 0
        %4244 = vmatprep.subr.bf16.mxu0 0
        %4245 = vmatpush2.bf16.msra.mxu0 0
        %4246 = vmatprep.subr.bf16.mxu0 0
        %4247 = vmatpush2.bf16.msra.mxu0 0
        %4248 = vmatprep.subr.bf16.mxu0 0
        %4249 = vmatpush2.bf16.msra.mxu0 0
        %4250 = vmatprep.subr.bf16.mxu0 0
        %4251 = vmatpush2.bf16.msra.mxu0 0
        %4252 = vmatprep.subr.bf16.mxu0 0
        %4253 = vmatpush2.bf16.msra.mxu0 0
        %4254 = vmatprep.mubr.bf16.mxu0 0
        %4255 = vmatmul.mubr.bf16.gmra.mxu0 %v4130
        %v4256 = vpop.f32.mrf.mxu0
        %v4257 = vadd.f32 %v4214, %v4256
        %v4258 = vpop.f32.mrf.mxu0
        %v4259 = vadd.f32 %v4216, %v4258
        %v4260 = vpop.f32.mrf.mxu0
        %v4261 = vadd.f32 %v4218, %v4260
        %v4262 = vpop.f32.mrf.mxu0
        %v4263 = vadd.f32 %v4220, %v4262
        %4264 = vdwg.mxu0
        %4265 = vst [vmem:[#allocation2 + $0x50] sm:$0xff] %v4257
        %4266 = vst [vmem:[#allocation2 + $0x58] sm:$0xff] %v4259
        %4267 = vst [vmem:[#allocation2 + $0x110] sm:$0xff] %v4261
        %4268 = vst [vmem:[#allocation2 + $0x118] sm:$0xff] %v4263
        %v4269 = vld [vmem:[#allocation3 + $0x18] sm:$0xff]
        %v4270 = vld [vmem:[#allocation3 + $0x20] sm:$0xff]
        %v4271 = vld [vmem:[#allocation3 + $0x28] sm:$0xf]
        %v4272 = vld [vmem:[#allocation3 + $0x48] sm:$0xff]
        %v4273 = vld [vmem:[#allocation3 + $0x50] sm:$0xff]
        %v4274 = vld [vmem:[#allocation3 + $0x58] sm:$0xf]
        %v4281 = vunpack.c.l.b16 %v4269
        %v4282 = vunpack.c.h.b16 %v4269
        %v4283 = vunpack.c.l.b16 %v4270
        %v4284 = vunpack.c.h.b16 %v4270
        %v4285 = vunpack.c.l.b16 %v4271
        %v4286 = vunpack.c.l.b16 %v4272
        %v4287 = vunpack.c.h.b16 %v4272
        %v4288 = vunpack.c.l.b16 %v4273
        %v4289 = vunpack.c.h.b16 %v4273
        %v4290 = vunpack.c.l.b16 %v4274
        %v4291 = vpack.c.b16 %v4286, %v4281
        %v4292 = vpack.c.b16 %v4287, %v4282
        %v4293 = vpack.c.b16 %v4288, %v4283
        %v4294 = vpack.c.b16 %v4289, %v4284
        %v4295 = vpack.c.b16 %v4290, %v4285
        %4301 = vmatprep.subr.bf16.mxu0 %v3166
        %4302 = vmatpush1.bf16.msra.mxu0 %v3165
        %4303 = vmatprep.subr.bf16.mxu0 %v3164
        %4304 = vmatpush1.bf16.msra.mxu0 %v3163
        %4305 = vmatprep.subr.bf16.mxu0 %v3162
        %4306 = vmatpush1.bf16.msra.mxu0 %v3161
        %4307 = vmatprep.subr.bf16.mxu0 %v3160
        %4308 = vmatpush1.bf16.msra.mxu0 %v3159
        %4309 = vmatprep.subr.bf16.mxu0 %v3158
        %4310 = vmatpush1.bf16.msra.mxu0 %v3157
        %4311 = vmatprep.subr.bf16.mxu0 %v3156
        %4312 = vmatpush1.bf16.msra.mxu0 %v3155
        %4313 = vmatprep.subr.bf16.mxu0 %v3154
        %4314 = vmatpush1.bf16.msra.mxu0 %v3153
        %4315 = vmatprep.subr.bf16.mxu0 %v3152
        %4316 = vmatpush1.bf16.msra.mxu0 %v3151
        %4317 = vmatprep.subr.bf16.mxu0 %v3182
        %4318 = vmatpush2.bf16.msra.mxu0 %v3181
        %4319 = vmatprep.subr.bf16.mxu0 %v3180
        %4320 = vmatpush2.bf16.msra.mxu0 %v3179
        %4321 = vmatprep.subr.bf16.mxu0 %v3178
        %4322 = vmatpush2.bf16.msra.mxu0 %v3177
        %4323 = vmatprep.subr.bf16.mxu0 %v3176
        %4324 = vmatpush2.bf16.msra.mxu0 %v3175
        %4325 = vmatprep.subr.bf16.mxu0 %v3174
        %4326 = vmatpush2.bf16.msra.mxu0 %v3173
        %4327 = vmatprep.subr.bf16.mxu0 %v3172
        %4328 = vmatpush2.bf16.msra.mxu0 %v3171
        %4329 = vmatprep.subr.bf16.mxu0 %v3170
        %4330 = vmatpush2.bf16.msra.mxu0 %v3169
        %4331 = vmatprep.subr.bf16.mxu0 %v3168
        %4332 = vmatpush2.bf16.msra.mxu0 %v3167
        %4333 = vmatprep.mubr.bf16.mxu0 %v4292
        %4334 = vmatmul.mubr.bf16.gmra.mxu0 %v4291
        %v4335 = vpop.f32.mrf.mxu0
        %v4336 = vadd.f32 0.0, %v4335
        %v4337 = vpop.f32.mrf.mxu0
        %v4338 = vadd.f32 0.0, %v4337
        %v4339 = vpop.f32.mrf.mxu0
        %v4340 = vadd.f32 0.0, %v4339
        %v4341 = vpop.f32.mrf.mxu0
        %v4342 = vadd.f32 0.0, %v4341
        %4343 = vdwg.mxu0
        %4344 = vmatprep.subr.bf16.mxu0 %v3198
        %4345 = vmatpush1.bf16.msra.mxu0 %v3197
        %4346 = vmatprep.subr.bf16.mxu0 %v3196
        %4347 = vmatpush1.bf16.msra.mxu0 %v3195
        %4348 = vmatprep.subr.bf16.mxu0 %v3194
        %4349 = vmatpush1.bf16.msra.mxu0 %v3193
        %4350 = vmatprep.subr.bf16.mxu0 %v3192
        %4351 = vmatpush1.bf16.msra.mxu0 %v3191
        %4352 = vmatprep.subr.bf16.mxu0 %v3190
        %4353 = vmatpush1.bf16.msra.mxu0 %v3189
        %4354 = vmatprep.subr.bf16.mxu0 %v3188
        %4355 = vmatpush1.bf16.msra.mxu0 %v3187
        %4356 = vmatprep.subr.bf16.mxu0 %v3186
        %4357 = vmatpush1.bf16.msra.mxu0 %v3185
        %4358 = vmatprep.subr.bf16.mxu0 %v3184
        %4359 = vmatpush1.bf16.msra.mxu0 %v3183
        %4360 = vmatprep.subr.bf16.mxu0 %v3214
        %4361 = vmatpush2.bf16.msra.mxu0 %v3213
        %4362 = vmatprep.subr.bf16.mxu0 %v3212
        %4363 = vmatpush2.bf16.msra.mxu0 %v3211
        %4364 = vmatprep.subr.bf16.mxu0 %v3210
        %4365 = vmatpush2.bf16.msra.mxu0 %v3209
        %4366 = vmatprep.subr.bf16.mxu0 %v3208
        %4367 = vmatpush2.bf16.msra.mxu0 %v3207
        %4368 = vmatprep.subr.bf16.mxu0 %v3206
        %4369 = vmatpush2.bf16.msra.mxu0 %v3205
        %4370 = vmatprep.subr.bf16.mxu0 %v3204
        %4371 = vmatpush2.bf16.msra.mxu0 %v3203
        %4372 = vmatprep.subr.bf16.mxu0 %v3202
        %4373 = vmatpush2.bf16.msra.mxu0 %v3201
        %4374 = vmatprep.subr.bf16.mxu0 %v3200
        %4375 = vmatpush2.bf16.msra.mxu0 %v3199
        %4376 = vmatprep.mubr.bf16.mxu0 %v4294
        %4377 = vmatmul.mubr.bf16.gmra.mxu0 %v4293
        %v4378 = vpop.f32.mrf.mxu0
        %v4379 = vadd.f32 %v4336, %v4378
        %v4380 = vpop.f32.mrf.mxu0
        %v4381 = vadd.f32 %v4338, %v4380
        %v4382 = vpop.f32.mrf.mxu0
        %v4383 = vadd.f32 %v4340, %v4382
        %v4384 = vpop.f32.mrf.mxu0
        %v4385 = vadd.f32 %v4342, %v4384
        %4386 = vdwg.mxu0
        %4387 = vmatprep.subr.bf16.mxu0 %v3230
        %4388 = vmatpush1.bf16.msra.mxu0 %v3229
        %4389 = vmatprep.subr.bf16.mxu0 %v3228
        %4390 = vmatpush1.bf16.msra.mxu0 %v3227
        %4391 = vmatprep.subr.bf16.mxu0 %v3226
        %4392 = vmatpush1.bf16.msra.mxu0 %v3225
        %4393 = vmatprep.subr.bf16.mxu0 %v3224
        %4394 = vmatpush1.bf16.msra.mxu0 %v3223
        %4395 = vmatprep.subr.bf16.mxu0 %v3222
        %4396 = vmatpush1.bf16.msra.mxu0 %v3221
        %4397 = vmatprep.subr.bf16.mxu0 %v3220
        %4398 = vmatpush1.bf16.msra.mxu0 %v3219
        %4399 = vmatprep.subr.bf16.mxu0 %v3218
        %4400 = vmatpush1.bf16.msra.mxu0 %v3217
        %4401 = vmatprep.subr.bf16.mxu0 %v3216
        %4402 = vmatpush1.bf16.msra.mxu0 %v3215
        %4403 = vmatprep.subr.bf16.mxu0 0
        %4404 = vmatpush2.bf16.msra.mxu0 0
        %4405 = vmatprep.subr.bf16.mxu0 0
        %4406 = vmatpush2.bf16.msra.mxu0 0
        %4407 = vmatprep.subr.bf16.mxu0 0
        %4408 = vmatpush2.bf16.msra.mxu0 0
        %4409 = vmatprep.subr.bf16.mxu0 0
        %4410 = vmatpush2.bf16.msra.mxu0 0
        %4411 = vmatprep.subr.bf16.mxu0 0
        %4412 = vmatpush2.bf16.msra.mxu0 0
        %4413 = vmatprep.subr.bf16.mxu0 0
        %4414 = vmatpush2.bf16.msra.mxu0 0
        %4415 = vmatprep.subr.bf16.mxu0 0
        %4416 = vmatpush2.bf16.msra.mxu0 0
        %4417 = vmatprep.subr.bf16.mxu0 0
        %4418 = vmatpush2.bf16.msra.mxu0 0
        %4419 = vmatprep.mubr.bf16.mxu0 0
        %4420 = vmatmul.mubr.bf16.gmra.mxu0 %v4295
        %v4421 = vpop.f32.mrf.mxu0
        %v4422 = vadd.f32 %v4379, %v4421
        %v4423 = vpop.f32.mrf.mxu0
        %v4424 = vadd.f32 %v4381, %v4423
        %v4425 = vpop.f32.mrf.mxu0
        %v4426 = vadd.f32 %v4383, %v4425
        %v4427 = vpop.f32.mrf.mxu0
        %v4428 = vadd.f32 %v4385, %v4427
        %4429 = vdwg.mxu0
        %4430 = vst [vmem:[#allocation2 + $0x60] sm:$0xff] %v4422
        %4431 = vst [vmem:[#allocation2 + $0x68] sm:$0xff] %v4424
        %4432 = vst [vmem:[#allocation2 + $0x120] sm:$0xff] %v4426
        %4433 = vst [vmem:[#allocation2 + $0x128] sm:$0xff] %v4428
        %v4434 = vld [vmem:[#allocation3 + $0x1c] sm:$0xff]
        %v4435 = vld [vmem:[#allocation3 + $0x24] sm:$0xff]
        %v4436 = vld [vmem:[#allocation3 + $0x2c] sm:$0xf]
        %v4437 = vld [vmem:[#allocation3 + $0x4c] sm:$0xff]
        %v4438 = vld [vmem:[#allocation3 + $0x54] sm:$0xff]
        %v4439 = vld [vmem:[#allocation3 + $0x5c] sm:$0xf]
        %v4446 = vunpack.c.l.b16 %v4434
        %v4447 = vunpack.c.h.b16 %v4434
        %v4448 = vunpack.c.l.b16 %v4435
        %v4449 = vunpack.c.h.b16 %v4435
        %v4450 = vunpack.c.l.b16 %v4436
        %v4451 = vunpack.c.l.b16 %v4437
        %v4452 = vunpack.c.h.b16 %v4437
        %v4453 = vunpack.c.l.b16 %v4438
        %v4454 = vunpack.c.h.b16 %v4438
        %v4455 = vunpack.c.l.b16 %v4439
        %v4456 = vpack.c.b16 %v4451, %v4446
        %v4457 = vpack.c.b16 %v4452, %v4447
        %v4458 = vpack.c.b16 %v4453, %v4448
        %v4459 = vpack.c.b16 %v4454, %v4449
        %v4460 = vpack.c.b16 %v4455, %v4450
        %4466 = vmatprep.subr.bf16.mxu0 %v3166
        %4467 = vmatpush1.bf16.msra.mxu0 %v3165
        %4468 = vmatprep.subr.bf16.mxu0 %v3164
        %4469 = vmatpush1.bf16.msra.mxu0 %v3163
        %4470 = vmatprep.subr.bf16.mxu0 %v3162
        %4471 = vmatpush1.bf16.msra.mxu0 %v3161
        %4472 = vmatprep.subr.bf16.mxu0 %v3160
        %4473 = vmatpush1.bf16.msra.mxu0 %v3159
        %4474 = vmatprep.subr.bf16.mxu0 %v3158
        %4475 = vmatpush1.bf16.msra.mxu0 %v3157
        %4476 = vmatprep.subr.bf16.mxu0 %v3156
        %4477 = vmatpush1.bf16.msra.mxu0 %v3155
        %4478 = vmatprep.subr.bf16.mxu0 %v3154
        %4479 = vmatpush1.bf16.msra.mxu0 %v3153
        %4480 = vmatprep.subr.bf16.mxu0 %v3152
        %4481 = vmatpush1.bf16.msra.mxu0 %v3151
        %4482 = vmatprep.subr.bf16.mxu0 %v3182
        %4483 = vmatpush2.bf16.msra.mxu0 %v3181
        %4484 = vmatprep.subr.bf16.mxu0 %v3180
        %4485 = vmatpush2.bf16.msra.mxu0 %v3179
        %4486 = vmatprep.subr.bf16.mxu0 %v3178
        %4487 = vmatpush2.bf16.msra.mxu0 %v3177
        %4488 = vmatprep.subr.bf16.mxu0 %v3176
        %4489 = vmatpush2.bf16.msra.mxu0 %v3175
        %4490 = vmatprep.subr.bf16.mxu0 %v3174
        %4491 = vmatpush2.bf16.msra.mxu0 %v3173
        %4492 = vmatprep.subr.bf16.mxu0 %v3172
        %4493 = vmatpush2.bf16.msra.mxu0 %v3171
        %4494 = vmatprep.subr.bf16.mxu0 %v3170
        %4495 = vmatpush2.bf16.msra.mxu0 %v3169
        %4496 = vmatprep.subr.bf16.mxu0 %v3168
        %4497 = vmatpush2.bf16.msra.mxu0 %v3167
        %4498 = vmatprep.mubr.bf16.mxu0 %v4457
        %4499 = vmatmul.mubr.bf16.gmra.mxu0 %v4456
        %v4500 = vpop.f32.mrf.mxu0
        %v4501 = vadd.f32 0.0, %v4500
        %v4502 = vpop.f32.mrf.mxu0
        %v4503 = vadd.f32 0.0, %v4502
        %v4504 = vpop.f32.mrf.mxu0
        %v4505 = vadd.f32 0.0, %v4504
        %v4506 = vpop.f32.mrf.mxu0
        %v4507 = vadd.f32 0.0, %v4506
        %4508 = vdwg.mxu0
        %4509 = vmatprep.subr.bf16.mxu0 %v3198
        %4510 = vmatpush1.bf16.msra.mxu0 %v3197
        %4511 = vmatprep.subr.bf16.mxu0 %v3196
        %4512 = vmatpush1.bf16.msra.mxu0 %v3195
        %4513 = vmatprep.subr.bf16.mxu0 %v3194
        %4514 = vmatpush1.bf16.msra.mxu0 %v3193
        %4515 = vmatprep.subr.bf16.mxu0 %v3192
        %4516 = vmatpush1.bf16.msra.mxu0 %v3191
        %4517 = vmatprep.subr.bf16.mxu0 %v3190
        %4518 = vmatpush1.bf16.msra.mxu0 %v3189
        %4519 = vmatprep.subr.bf16.mxu0 %v3188
        %4520 = vmatpush1.bf16.msra.mxu0 %v3187
        %4521 = vmatprep.subr.bf16.mxu0 %v3186
        %4522 = vmatpush1.bf16.msra.mxu0 %v3185
        %4523 = vmatprep.subr.bf16.mxu0 %v3184
        %4524 = vmatpush1.bf16.msra.mxu0 %v3183
        %4525 = vmatprep.subr.bf16.mxu0 %v3214
        %4526 = vmatpush2.bf16.msra.mxu0 %v3213
        %4527 = vmatprep.subr.bf16.mxu0 %v3212
        %4528 = vmatpush2.bf16.msra.mxu0 %v3211
        %4529 = vmatprep.subr.bf16.mxu0 %v3210
        %4530 = vmatpush2.bf16.msra.mxu0 %v3209
        %4531 = vmatprep.subr.bf16.mxu0 %v3208
        %4532 = vmatpush2.bf16.msra.mxu0 %v3207
        %4533 = vmatprep.subr.bf16.mxu0 %v3206
        %4534 = vmatpush2.bf16.msra.mxu0 %v3205
        %4535 = vmatprep.subr.bf16.mxu0 %v3204
        %4536 = vmatpush2.bf16.msra.mxu0 %v3203
        %4537 = vmatprep.subr.bf16.mxu0 %v3202
        %4538 = vmatpush2.bf16.msra.mxu0 %v3201
        %4539 = vmatprep.subr.bf16.mxu0 %v3200
        %4540 = vmatpush2.bf16.msra.mxu0 %v3199
        %4541 = vmatprep.mubr.bf16.mxu0 %v4459
        %4542 = vmatmul.mubr.bf16.gmra.mxu0 %v4458
        %v4543 = vpop.f32.mrf.mxu0
        %v4544 = vadd.f32 %v4501, %v4543
        %v4545 = vpop.f32.mrf.mxu0
        %v4546 = vadd.f32 %v4503, %v4545
        %v4547 = vpop.f32.mrf.mxu0
        %v4548 = vadd.f32 %v4505, %v4547
        %v4549 = vpop.f32.mrf.mxu0
        %v4550 = vadd.f32 %v4507, %v4549
        %4551 = vdwg.mxu0
        %4552 = vmatprep.subr.bf16.mxu0 %v3230
        %4553 = vmatpush1.bf16.msra.mxu0 %v3229
        %4554 = vmatprep.subr.bf16.mxu0 %v3228
        %4555 = vmatpush1.bf16.msra.mxu0 %v3227
        %4556 = vmatprep.subr.bf16.mxu0 %v3226
        %4557 = vmatpush1.bf16.msra.mxu0 %v3225
        %4558 = vmatprep.subr.bf16.mxu0 %v3224
        %4559 = vmatpush1.bf16.msra.mxu0 %v3223
        %4560 = vmatprep.subr.bf16.mxu0 %v3222
        %4561 = vmatpush1.bf16.msra.mxu0 %v3221
        %4562 = vmatprep.subr.bf16.mxu0 %v3220
        %4563 = vmatpush1.bf16.msra.mxu0 %v3219
        %4564 = vmatprep.subr.bf16.mxu0 %v3218
        %4565 = vmatpush1.bf16.msra.mxu0 %v3217
        %4566 = vmatprep.subr.bf16.mxu0 %v3216
        %4567 = vmatpush1.bf16.msra.mxu0 %v3215
        %4568 = vmatprep.subr.bf16.mxu0 0
        %4569 = vmatpush2.bf16.msra.mxu0 0
        %4570 = vmatprep.subr.bf16.mxu0 0
        %4571 = vmatpush2.bf16.msra.mxu0 0
        %4572 = vmatprep.subr.bf16.mxu0 0
        %4573 = vmatpush2.bf16.msra.mxu0 0
        %4574 = vmatprep.subr.bf16.mxu0 0
        %4575 = vmatpush2.bf16.msra.mxu0 0
        %4576 = vmatprep.subr.bf16.mxu0 0
        %4577 = vmatpush2.bf16.msra.mxu0 0
        %4578 = vmatprep.subr.bf16.mxu0 0
        %4579 = vmatpush2.bf16.msra.mxu0 0
        %4580 = vmatprep.subr.bf16.mxu0 0
        %4581 = vmatpush2.bf16.msra.mxu0 0
        %4582 = vmatprep.subr.bf16.mxu0 0
        %4583 = vmatpush2.bf16.msra.mxu0 0
        %4584 = vmatprep.mubr.bf16.mxu0 0
        %4585 = vmatmul.mubr.bf16.gmra.mxu0 %v4460
        %v4586 = vpop.f32.mrf.mxu0
        %v4587 = vadd.f32 %v4544, %v4586
        %v4588 = vpop.f32.mrf.mxu0
        %v4589 = vadd.f32 %v4546, %v4588
        %v4590 = vpop.f32.mrf.mxu0
        %v4591 = vadd.f32 %v4548, %v4590
        %v4592 = vpop.f32.mrf.mxu0
        %v4593 = vadd.f32 %v4550, %v4592
        %4594 = vdwg.mxu0
        %4595 = vst [vmem:[#allocation2 + $0x70] sm:$0xff] %v4587
        %4596 = vst [vmem:[#allocation2 + $0x78] sm:$0xff] %v4589
        %4597 = vst [vmem:[#allocation2 + $0x130] sm:$0xff] %v4591
        %4598 = vst [vmem:[#allocation2 + $0x138] sm:$0xff] %v4593
        %v4599 = vld [vmem:[#allocation2] sm:$0xff]
        %v4600 = vld [vmem:[#allocation2 + $0xc0] sm:$0xff]
        %v4601 = vld [vmem:[#allocation2 + $0x8] sm:$0xff]
        %v4602 = vld [vmem:[#allocation2 + $0xc8] sm:$0xff]
        %v4603 = vmax.f32 %v4599, %v4601
        %v4604 = vmax.f32 %v4600, %v4602
        %v4605 = vld [vmem:[#allocation2 + $0x10] sm:$0xff]
        %v4606 = vld [vmem:[#allocation2 + $0xd0] sm:$0xff]
        %v4607 = vld [vmem:[#allocation2 + $0x18] sm:$0xff]
        %v4608 = vld [vmem:[#allocation2 + $0xd8] sm:$0xff]
        %v4609 = vmax.f32 %v4605, %v4607
        %v4610 = vmax.f32 %v4606, %v4608
        %v4611 = vmax.f32 %v4603, %v4609
        %v4612 = vmax.f32 %v4604, %v4610
        %v4614 = vlaneseq
        %v4615 = vshrl.u32 %v4614, 7
        %v4616 = vsub.s32 0, %v4615
        %v4617 = vrot.slane %v695, %v4616
        %v4619 = vadd.f32 %v4611, %v4617
        %v4620 = vadd.f32 %v4612, %v4617
        %v4621 = vmax.f32 %v4619, 0.0
        %v4622 = vmax.f32 %v4620, 0.0
        %v4623 = vpack.c.bf16 %v4622, %v4621
        %v4625 = vunpack.c.l.b16 %v4623
        %v4626 = vunpack.c.h.b16 %v4623
        %v4627 = vpack.c.b16 %v4625, %v4625
        %v4628 = vpack.c.b16 %v4626, %v4626
        %4631 = vst [vmem:[#allocation4] sm:$0xf] %v4627
        %4632 = vst [vmem:[#allocation4 + $0x10] sm:$0xf] %v4628
        %v4633 = vld [vmem:[#allocation2 + $0x20] sm:$0xff]
        %v4634 = vld [vmem:[#allocation2 + $0xe0] sm:$0xff]
        %v4635 = vld [vmem:[#allocation2 + $0x28] sm:$0xff]
        %v4636 = vld [vmem:[#allocation2 + $0xe8] sm:$0xff]
        %v4637 = vmax.f32 %v4633, %v4635
        %v4638 = vmax.f32 %v4634, %v4636
        %v4639 = vld [vmem:[#allocation2 + $0x30] sm:$0xff]
        %v4640 = vld [vmem:[#allocation2 + $0xf0] sm:$0xff]
        %v4641 = vld [vmem:[#allocation2 + $0x38] sm:$0xff]
        %v4642 = vld [vmem:[#allocation2 + $0xf8] sm:$0xff]
        %v4643 = vmax.f32 %v4639, %v4641
        %v4644 = vmax.f32 %v4640, %v4642
        %v4645 = vmax.f32 %v4637, %v4643
        %v4646 = vmax.f32 %v4638, %v4644
        %v4647 = vadd.f32 %v4645, %v4617
        %v4648 = vadd.f32 %v4646, %v4617
        %v4649 = vmax.f32 %v4647, 0.0
        %v4650 = vmax.f32 %v4648, 0.0
        %v4651 = vpack.c.bf16 %v4650, %v4649
        %v4653 = vunpack.c.l.b16 %v4651
        %v4654 = vunpack.c.h.b16 %v4651
        %v4655 = vpack.c.b16 %v4653, %v4653
        %v4656 = vpack.c.b16 %v4654, %v4654
        %4659 = vst [vmem:[#allocation4 + $0x4] sm:$0xf] %v4655
        %4660 = vst [vmem:[#allocation4 + $0x14] sm:$0xf] %v4656
        %v4661 = vld [vmem:[#allocation2 + $0x40] sm:$0xff]
        %v4662 = vld [vmem:[#allocation2 + $0x100] sm:$0xff]
        %v4663 = vld [vmem:[#allocation2 + $0x48] sm:$0xff]
        %v4664 = vld [vmem:[#allocation2 + $0x108] sm:$0xff]
        %v4665 = vmax.f32 %v4661, %v4663
        %v4666 = vmax.f32 %v4662, %v4664
        %v4667 = vld [vmem:[#allocation2 + $0x50] sm:$0xff]
        %v4668 = vld [vmem:[#allocation2 + $0x110] sm:$0xff]
        %v4669 = vld [vmem:[#allocation2 + $0x58] sm:$0xff]
        %v4670 = vld [vmem:[#allocation2 + $0x118] sm:$0xff]
        %v4671 = vmax.f32 %v4667, %v4669
        %v4672 = vmax.f32 %v4668, %v4670
        %v4673 = vmax.f32 %v4665, %v4671
        %v4674 = vmax.f32 %v4666, %v4672
        %v4675 = vadd.f32 %v4673, %v4617
        %v4676 = vadd.f32 %v4674, %v4617
        %v4677 = vmax.f32 %v4675, 0.0
        %v4678 = vmax.f32 %v4676, 0.0
        %v4679 = vpack.c.bf16 %v4678, %v4677
        %v4681 = vunpack.c.l.b16 %v4679
        %v4682 = vunpack.c.h.b16 %v4679
        %v4683 = vpack.c.b16 %v4681, %v4681
        %v4684 = vpack.c.b16 %v4682, %v4682
        %4687 = vst [vmem:[#allocation4 + $0x8] sm:$0xf] %v4683
        %4688 = vst [vmem:[#allocation4 + $0x18] sm:$0xf] %v4684
        %v4689 = vld [vmem:[#allocation2 + $0x60] sm:$0xff]
        %v4690 = vld [vmem:[#allocation2 + $0x120] sm:$0xff]
        %v4691 = vld [vmem:[#allocation2 + $0x68] sm:$0xff]
        %v4692 = vld [vmem:[#allocation2 + $0x128] sm:$0xff]
        %v4693 = vmax.f32 %v4689, %v4691
        %v4694 = vmax.f32 %v4690, %v4692
        %v4695 = vld [vmem:[#allocation2 + $0x70] sm:$0xff]
        %v4696 = vld [vmem:[#allocation2 + $0x130] sm:$0xff]
        %v4697 = vld [vmem:[#allocation2 + $0x78] sm:$0xff]
        %v4698 = vld [vmem:[#allocation2 + $0x138] sm:$0xff]
        %v4699 = vmax.f32 %v4695, %v4697
        %v4700 = vmax.f32 %v4696, %v4698
        %v4701 = vmax.f32 %v4693, %v4699
        %v4702 = vmax.f32 %v4694, %v4700
        %v4703 = vadd.f32 %v4701, %v4617
        %v4704 = vadd.f32 %v4702, %v4617
        %v4705 = vmax.f32 %v4703, 0.0
        %v4706 = vmax.f32 %v4704, 0.0
        %v4707 = vpack.c.bf16 %v4706, %v4705
        %v4709 = vunpack.c.l.b16 %v4707
        %v4710 = vunpack.c.h.b16 %v4707
        %v4711 = vpack.c.b16 %v4709, %v4709
        %v4712 = vpack.c.b16 %v4710, %v4710
        %4715 = vst [vmem:[#allocation4 + $0xc] sm:$0xf] %v4711
        %4716 = vst [vmem:[#allocation4 + $0x1c] sm:$0xf] %v4712
        %v4717 = vld [vmem:[#allocation4] sm:$0xff]
        %v4718 = vld [vmem:[#allocation4 + $0x8] sm:$0xf]
        %v4719 = vld [vmem:[#allocation4 + $0x10] sm:$0xff]
        %v4720 = vld [vmem:[#allocation4 + $0x18] sm:$0xf]
        %v4721 = vld [vmem:[#allocation4 + $0x4] sm:$0xff]
        %v4722 = vld [vmem:[#allocation4 + $0xc] sm:$0xf]
        %v4723 = vld [vmem:[#allocation4 + $0x14] sm:$0xff]
        %v4724 = vld [vmem:[#allocation4 + $0x1c] sm:$0xf]
        %v4726 = vlaneseq
        %v4727 = vshrl.u32 %v4726, 7
        %v4728 = vsub.s32 0, %v4727
        %v4729 = vrot.slane %v696, %v4728
        %v4735 = vunpack.c.l.b16 %v4717
        %v4736 = vunpack.c.h.b16 %v4717
        %v4737 = vunpack.c.l.b16 %v4718
        %v4738 = vunpack.c.l.b16 %v4719
        %v4739 = vunpack.c.h.b16 %v4719
        %v4740 = vunpack.c.l.b16 %v4720
        %v4741 = vpack.c.b16 %v4738, %v4735
        %v4742 = vpack.c.b16 %v4739, %v4736
        %v4743 = vpack.c.b16 %v4740, %v4737
        %v4795 = vunpack.c.l.b16 %v646
        %v4796 = vunpack.c.l.b16 %v647
        %v4797 = vunpack.c.l.b16 %v648
        %v4798 = vunpack.c.l.b16 %v649
        %v4799 = vunpack.c.l.b16 %v650
        %v4800 = vunpack.c.l.b16 %v651
        %v4801 = vunpack.c.l.b16 %v652
        %v4802 = vunpack.c.l.b16 %v653
        %v4803 = vunpack.c.l.b16 %v654
        %v4804 = vunpack.c.l.b16 %v655
        %v4805 = vunpack.c.l.b16 %v656
        %v4806 = vunpack.c.l.b16 %v657
        %v4807 = vunpack.c.l.b16 %v658
        %v4808 = vunpack.c.l.b16 %v659
        %v4809 = vunpack.c.l.b16 %v660
        %v4810 = vunpack.c.l.b16 %v661
        %v4811 = vunpack.c.l.b16 %v662
        %v4812 = vunpack.c.l.b16 %v663
        %v4813 = vunpack.c.l.b16 %v664
        %v4814 = vunpack.c.l.b16 %v665
        %v4815 = vunpack.c.l.b16 %v666
        %v4816 = vunpack.c.l.b16 %v667
        %v4817 = vunpack.c.l.b16 %v668
        %v4818 = vunpack.c.l.b16 %v669
        %v4819 = vunpack.c.l.b16 %v670
        %v4820 = vunpack.c.l.b16 %v671
        %v4821 = vunpack.c.l.b16 %v672
        %v4822 = vunpack.c.l.b16 %v673
        %v4823 = vunpack.c.l.b16 %v674
        %v4824 = vunpack.c.l.b16 %v675
        %v4825 = vunpack.c.l.b16 %v676
        %v4826 = vunpack.c.l.b16 %v677
        %v4827 = vunpack.c.l.b16 %v678
        %v4828 = vunpack.c.l.b16 %v679
        %v4829 = vunpack.c.l.b16 %v680
        %v4830 = vunpack.c.l.b16 %v681
        %v4831 = vunpack.c.l.b16 %v682
        %v4832 = vunpack.c.l.b16 %v683
        %v4833 = vunpack.c.l.b16 %v684
        %v4834 = vunpack.c.l.b16 %v685
        %v4835 = vunpack.c.l.b16 %v686
        %v4836 = vunpack.c.l.b16 %v687
        %v4837 = vunpack.c.l.b16 %v688
        %v4838 = vunpack.c.l.b16 %v689
        %v4839 = vunpack.c.l.b16 %v690
        %v4840 = vunpack.c.l.b16 %v691
        %v4841 = vunpack.c.l.b16 %v692
        %v4842 = vunpack.c.l.b16 %v693
        %v4843 = vpack.c.b16 %v4796, %v4795
        %v4844 = vpack.c.b16 %v4798, %v4797
        %v4845 = vpack.c.b16 %v4800, %v4799
        %v4846 = vpack.c.b16 %v4802, %v4801
        %v4847 = vpack.c.b16 %v4804, %v4803
        %v4848 = vpack.c.b16 %v4806, %v4805
        %v4849 = vpack.c.b16 %v4808, %v4807
        %v4850 = vpack.c.b16 %v4810, %v4809
        %v4851 = vpack.c.b16 %v4812, %v4811
        %v4852 = vpack.c.b16 %v4814, %v4813
        %v4853 = vpack.c.b16 %v4816, %v4815
        %v4854 = vpack.c.b16 %v4818, %v4817
        %v4855 = vpack.c.b16 %v4820, %v4819
        %v4856 = vpack.c.b16 %v4822, %v4821
        %v4857 = vpack.c.b16 %v4824, %v4823
        %v4858 = vpack.c.b16 %v4826, %v4825
        %v4859 = vpack.c.b16 %v4828, %v4827
        %v4860 = vpack.c.b16 %v4830, %v4829
        %v4861 = vpack.c.b16 %v4832, %v4831
        %v4862 = vpack.c.b16 %v4834, %v4833
        %v4863 = vpack.c.b16 %v4836, %v4835
        %v4864 = vpack.c.b16 %v4838, %v4837
        %v4865 = vpack.c.b16 %v4840, %v4839
        %v4866 = vpack.c.b16 %v4842, %v4841
        %4891 = vmatprep.subr.bf16.mxu0 0
        %4892 = vmatpush1.bf16.msra.mxu0 %v4850
        %4893 = vmatprep.subr.bf16.mxu0 0
        %4894 = vmatpush1.bf16.msra.mxu0 %v4849
        %4895 = vmatprep.subr.bf16.mxu0 0
        %4896 = vmatpush1.bf16.msra.mxu0 %v4848
        %4897 = vmatprep.subr.bf16.mxu0 0
        %4898 = vmatpush1.bf16.msra.mxu0 %v4847
        %4899 = vmatprep.subr.bf16.mxu0 0
        %4900 = vmatpush1.bf16.msra.mxu0 %v4846
        %4901 = vmatprep.subr.bf16.mxu0 0
        %4902 = vmatpush1.bf16.msra.mxu0 %v4845
        %4903 = vmatprep.subr.bf16.mxu0 0
        %4904 = vmatpush1.bf16.msra.mxu0 %v4844
        %4905 = vmatprep.subr.bf16.mxu0 0
        %4906 = vmatpush1.bf16.msra.mxu0 %v4843
        %4907 = vmatprep.subr.bf16.mxu0 0
        %4908 = vmatpush2.bf16.msra.mxu0 %v4858
        %4909 = vmatprep.subr.bf16.mxu0 0
        %4910 = vmatpush2.bf16.msra.mxu0 %v4857
        %4911 = vmatprep.subr.bf16.mxu0 0
        %4912 = vmatpush2.bf16.msra.mxu0 %v4856
        %4913 = vmatprep.subr.bf16.mxu0 0
        %4914 = vmatpush2.bf16.msra.mxu0 %v4855
        %4915 = vmatprep.subr.bf16.mxu0 0
        %4916 = vmatpush2.bf16.msra.mxu0 %v4854
        %4917 = vmatprep.subr.bf16.mxu0 0
        %4918 = vmatpush2.bf16.msra.mxu0 %v4853
        %4919 = vmatprep.subr.bf16.mxu0 0
        %4920 = vmatpush2.bf16.msra.mxu0 %v4852
        %4921 = vmatprep.subr.bf16.mxu0 0
        %4922 = vmatpush2.bf16.msra.mxu0 %v4851
        %4923 = vmatprep.mubr.bf16.mxu0 %v4742
        %4924 = vmatmul.mubr.bf16.gmra.mxu0 %v4741
        %v4925 = vpop.f32.mrf.mxu0
        %v4926 = vadd.f32 %v4729, %v4925
        %v4927 = vpop.f32.mrf.mxu0
        %v4928 = vpop.f32.mrf.mxu0
        %v4929 = vadd.f32 %v4729, %v4928
        %v4930 = vpop.f32.mrf.mxu0
        %4931 = vdwg.mxu0
        %4932 = vmatprep.subr.bf16.mxu0 0
        %4933 = vmatpush1.bf16.msra.mxu0 %v4866
        %4934 = vmatprep.subr.bf16.mxu0 0
        %4935 = vmatpush1.bf16.msra.mxu0 %v4865
        %4936 = vmatprep.subr.bf16.mxu0 0
        %4937 = vmatpush1.bf16.msra.mxu0 %v4864
        %4938 = vmatprep.subr.bf16.mxu0 0
        %4939 = vmatpush1.bf16.msra.mxu0 %v4863
        %4940 = vmatprep.subr.bf16.mxu0 0
        %4941 = vmatpush1.bf16.msra.mxu0 %v4862
        %4942 = vmatprep.subr.bf16.mxu0 0
        %4943 = vmatpush1.bf16.msra.mxu0 %v4861
        %4944 = vmatprep.subr.bf16.mxu0 0
        %4945 = vmatpush1.bf16.msra.mxu0 %v4860
        %4946 = vmatprep.subr.bf16.mxu0 0
        %4947 = vmatpush1.bf16.msra.mxu0 %v4859
        %4948 = vmatprep.subr.bf16.mxu0 0
        %4949 = vmatpush2.bf16.msra.mxu0 0
        %4950 = vmatprep.subr.bf16.mxu0 0
        %4951 = vmatpush2.bf16.msra.mxu0 0
        %4952 = vmatprep.subr.bf16.mxu0 0
        %4953 = vmatpush2.bf16.msra.mxu0 0
        %4954 = vmatprep.subr.bf16.mxu0 0
        %4955 = vmatpush2.bf16.msra.mxu0 0
        %4956 = vmatprep.subr.bf16.mxu0 0
        %4957 = vmatpush2.bf16.msra.mxu0 0
        %4958 = vmatprep.subr.bf16.mxu0 0
        %4959 = vmatpush2.bf16.msra.mxu0 0
        %4960 = vmatprep.subr.bf16.mxu0 0
        %4961 = vmatpush2.bf16.msra.mxu0 0
        %4962 = vmatprep.subr.bf16.mxu0 0
        %4963 = vmatpush2.bf16.msra.mxu0 0
        %4964 = vmatprep.mubr.bf16.mxu0 0
        %4965 = vmatmul.mubr.bf16.gmra.mxu0 %v4743
        %v4966 = vpop.f32.mrf.mxu0
        %v4967 = vadd.f32 %v4926, %v4966
        %v4968 = vpop.f32.mrf.mxu0
        %v4969 = vpop.f32.mrf.mxu0
        %v4970 = vadd.f32 %v4929, %v4969
        %v4971 = vpop.f32.mrf.mxu0
        %4972 = vdwg.mxu0
        %v4973 = vmax.f32 %v4967, 0.0
        %v4974 = vmax.f32 %v4970, 0.0
        %v4979 = vunpack.c.l.b16 %v4721
        %v4980 = vunpack.c.h.b16 %v4721
        %v4981 = vunpack.c.l.b16 %v4722
        %v4982 = vunpack.c.l.b16 %v4723
        %v4983 = vunpack.c.h.b16 %v4723
        %v4984 = vunpack.c.l.b16 %v4724
        %v4985 = vpack.c.b16 %v4982, %v4979
        %v4986 = vpack.c.b16 %v4983, %v4980
        %v4987 = vpack.c.b16 %v4984, %v4981
        %4991 = vmatprep.subr.bf16.mxu0 0
        %4992 = vmatpush1.bf16.msra.mxu0 %v4850
        %4993 = vmatprep.subr.bf16.mxu0 0
        %4994 = vmatpush1.bf16.msra.mxu0 %v4849
        %4995 = vmatprep.subr.bf16.mxu0 0
        %4996 = vmatpush1.bf16.msra.mxu0 %v4848
        %4997 = vmatprep.subr.bf16.mxu0 0
        %4998 = vmatpush1.bf16.msra.mxu0 %v4847
        %4999 = vmatprep.subr.bf16.mxu0 0
        %5000 = vmatpush1.bf16.msra.mxu0 %v4846
        %5001 = vmatprep.subr.bf16.mxu0 0
        %5002 = vmatpush1.bf16.msra.mxu0 %v4845
        %5003 = vmatprep.subr.bf16.mxu0 0
        %5004 = vmatpush1.bf16.msra.mxu0 %v4844
        %5005 = vmatprep.subr.bf16.mxu0 0
        %5006 = vmatpush1.bf16.msra.mxu0 %v4843
        %5007 = vmatprep.subr.bf16.mxu0 0
        %5008 = vmatpush2.bf16.msra.mxu0 %v4858
        %5009 = vmatprep.subr.bf16.mxu0 0
        %5010 = vmatpush2.bf16.msra.mxu0 %v4857
        %5011 = vmatprep.subr.bf16.mxu0 0
        %5012 = vmatpush2.bf16.msra.mxu0 %v4856
        %5013 = vmatprep.subr.bf16.mxu0 0
        %5014 = vmatpush2.bf16.msra.mxu0 %v4855
        %5015 = vmatprep.subr.bf16.mxu0 0
        %5016 = vmatpush2.bf16.msra.mxu0 %v4854
        %5017 = vmatprep.subr.bf16.mxu0 0
        %5018 = vmatpush2.bf16.msra.mxu0 %v4853
        %5019 = vmatprep.subr.bf16.mxu0 0
        %5020 = vmatpush2.bf16.msra.mxu0 %v4852
        %5021 = vmatprep.subr.bf16.mxu0 0
        %5022 = vmatpush2.bf16.msra.mxu0 %v4851
        %5023 = vmatprep.mubr.bf16.mxu0 %v4986
        %5024 = vmatmul.mubr.bf16.gmra.mxu0 %v4985
        %v5025 = vpop.f32.mrf.mxu0
        %v5026 = vadd.f32 %v4729, %v5025
        %v5027 = vpop.f32.mrf.mxu0
        %v5028 = vpop.f32.mrf.mxu0
        %v5029 = vadd.f32 %v4729, %v5028
        %v5030 = vpop.f32.mrf.mxu0
        %5031 = vdwg.mxu0
        %5032 = vmatprep.subr.bf16.mxu0 0
        %5033 = vmatpush1.bf16.msra.mxu0 %v4866
        %5034 = vmatprep.subr.bf16.mxu0 0
        %5035 = vmatpush1.bf16.msra.mxu0 %v4865
        %5036 = vmatprep.subr.bf16.mxu0 0
        %5037 = vmatpush1.bf16.msra.mxu0 %v4864
        %5038 = vmatprep.subr.bf16.mxu0 0
        %5039 = vmatpush1.bf16.msra.mxu0 %v4863
        %5040 = vmatprep.subr.bf16.mxu0 0
        %5041 = vmatpush1.bf16.msra.mxu0 %v4862
        %5042 = vmatprep.subr.bf16.mxu0 0
        %5043 = vmatpush1.bf16.msra.mxu0 %v4861
        %5044 = vmatprep.subr.bf16.mxu0 0
        %5045 = vmatpush1.bf16.msra.mxu0 %v4860
        %5046 = vmatprep.subr.bf16.mxu0 0
        %5047 = vmatpush1.bf16.msra.mxu0 %v4859
        %5048 = vmatprep.subr.bf16.mxu0 0
        %5049 = vmatpush2.bf16.msra.mxu0 0
        %5050 = vmatprep.subr.bf16.mxu0 0
        %5051 = vmatpush2.bf16.msra.mxu0 0
        %5052 = vmatprep.subr.bf16.mxu0 0
        %5053 = vmatpush2.bf16.msra.mxu0 0
        %5054 = vmatprep.subr.bf16.mxu0 0
        %5055 = vmatpush2.bf16.msra.mxu0 0
        %5056 = vmatprep.subr.bf16.mxu0 0
        %5057 = vmatpush2.bf16.msra.mxu0 0
        %5058 = vmatprep.subr.bf16.mxu0 0
        %5059 = vmatpush2.bf16.msra.mxu0 0
        %5060 = vmatprep.subr.bf16.mxu0 0
        %5061 = vmatpush2.bf16.msra.mxu0 0
        %5062 = vmatprep.subr.bf16.mxu0 0
        %5063 = vmatpush2.bf16.msra.mxu0 0
        %5064 = vmatprep.mubr.bf16.mxu0 0
        %5065 = vmatmul.mubr.bf16.gmra.mxu0 %v4987
        %v5066 = vpop.f32.mrf.mxu0
        %v5067 = vadd.f32 %v5026, %v5066
        %v5068 = vpop.f32.mrf.mxu0
        %v5069 = vpop.f32.mrf.mxu0
        %v5070 = vadd.f32 %v5029, %v5069
        %v5071 = vpop.f32.mrf.mxu0
        %5072 = vdwg.mxu0
        %v5073 = vmax.f32 %v5067, 0.0
        %v5074 = vmax.f32 %v5070, 0.0
        %v5075 = vpack.c.bf16 %v4974, %v4973
        %v5076 = vpack.c.bf16 %v5074, %v5073
        %v5077 = vld [vmem:[%s7] sm:$0xf]
        %v5078 = vld [vmem:[%s7 + $0x4] sm:$0xf]
        %v5079 = vld [vmem:[%s7 + $0x8] sm:$0xf]
        %v5080 = vld [vmem:[%s7 + $0xc] sm:$0xf]
        %v5081 = vld [vmem:[%s7 + $0x10] sm:$0xf]
        %v5082 = vld [vmem:[%s7 + $0x14] sm:$0xf]
        %v5083 = vld [vmem:[%s7 + $0x18] sm:$0xf]
        %v5084 = vld [vmem:[%s7 + $0x1c] sm:$0xf]
        %v5085 = vld [vmem:[%s7 + $0x20] sm:$0xf]
        %v5086 = vld [vmem:[%s7 + $0x24] sm:$0xf]
        %v5087 = vld [vmem:[%s7 + $0x28] sm:$0xf]
        %v5088 = vld [vmem:[%s7 + $0x2c] sm:$0xf]
        %v5089 = vld [vmem:[%s7 + $0x30] sm:$0xf]
        %v5090 = vld [vmem:[%s7 + $0x34] sm:$0xf]
        %v5091 = vld [vmem:[%s7 + $0x38] sm:$0xf]
        %v5092 = vld [vmem:[%s7 + $0x3c] sm:$0xf]
        %v5093 = vld [vmem:[%s7 + $0x40] sm:$0xf]
        %v5094 = vld [vmem:[%s7 + $0x44] sm:$0xf]
        %v5095 = vld [vmem:[%s7 + $0x48] sm:$0xf]
        %v5096 = vld [vmem:[%s7 + $0x4c] sm:$0xf]
        %v5097 = vld [vmem:[%s7 + $0x50] sm:$0xf]
        %v5098 = vld [vmem:[%s7 + $0x54] sm:$0xf]
        %v5099 = vld [vmem:[%s7 + $0x58] sm:$0xf]
        %v5100 = vld [vmem:[%s7 + $0x5c] sm:$0xf]
        %v5101 = vld [vmem:[%s7 + $0x60] sm:$0xf]
        %v5102 = vld [vmem:[%s7 + $0x64] sm:$0xf]
        %v5103 = vld [vmem:[%s7 + $0x68] sm:$0xf]
        %v5104 = vld [vmem:[%s7 + $0x6c] sm:$0xf]
        %v5105 = vld [vmem:[%s7 + $0x70] sm:$0xf]
        %v5106 = vld [vmem:[%s7 + $0x74] sm:$0xf]
        %v5107 = vld [vmem:[%s7 + $0x78] sm:$0xf]
        %v5108 = vld [vmem:[%s7 + $0x7c] sm:$0xf]
        %v5109 = vld [vmem:[%s8] sm:$0x1]
        %v5111 = vlaneseq
        %v5112 = vshrl.u32 %v5111, 7
        %v5113 = vsub.s32 0, %v5112
        %v5114 = vrot.slane %v5109, %v5113
        %v5148 = vunpack.c.l.b16 %v5077
        %v5149 = vunpack.c.l.b16 %v5078
        %v5150 = vunpack.c.l.b16 %v5079
        %v5151 = vunpack.c.l.b16 %v5080
        %v5152 = vunpack.c.l.b16 %v5081
        %v5153 = vunpack.c.l.b16 %v5082
        %v5154 = vunpack.c.l.b16 %v5083
        %v5155 = vunpack.c.l.b16 %v5084
        %v5156 = vunpack.c.l.b16 %v5085
        %v5157 = vunpack.c.l.b16 %v5086
        %v5158 = vunpack.c.l.b16 %v5087
        %v5159 = vunpack.c.l.b16 %v5088
        %v5160 = vunpack.c.l.b16 %v5089
        %v5161 = vunpack.c.l.b16 %v5090
        %v5162 = vunpack.c.l.b16 %v5091
        %v5163 = vunpack.c.l.b16 %v5092
        %v5164 = vunpack.c.l.b16 %v5093
        %v5165 = vunpack.c.l.b16 %v5094
        %v5166 = vunpack.c.l.b16 %v5095
        %v5167 = vunpack.c.l.b16 %v5096
        %v5168 = vunpack.c.l.b16 %v5097
        %v5169 = vunpack.c.l.b16 %v5098
        %v5170 = vunpack.c.l.b16 %v5099
        %v5171 = vunpack.c.l.b16 %v5100
        %v5172 = vunpack.c.l.b16 %v5101
        %v5173 = vunpack.c.l.b16 %v5102
        %v5174 = vunpack.c.l.b16 %v5103
        %v5175 = vunpack.c.l.b16 %v5104
        %v5176 = vunpack.c.l.b16 %v5105
        %v5177 = vunpack.c.l.b16 %v5106
        %v5178 = vunpack.c.l.b16 %v5107
        %v5179 = vunpack.c.l.b16 %v5108
        %v5180 = vpack.c.b16 %v5149, %v5148
        %v5181 = vpack.c.b16 %v5151, %v5150
        %v5182 = vpack.c.b16 %v5153, %v5152
        %v5183 = vpack.c.b16 %v5155, %v5154
        %v5184 = vpack.c.b16 %v5157, %v5156
        %v5185 = vpack.c.b16 %v5159, %v5158
        %v5186 = vpack.c.b16 %v5161, %v5160
        %v5187 = vpack.c.b16 %v5163, %v5162
        %v5188 = vpack.c.b16 %v5165, %v5164
        %v5189 = vpack.c.b16 %v5167, %v5166
        %v5190 = vpack.c.b16 %v5169, %v5168
        %v5191 = vpack.c.b16 %v5171, %v5170
        %v5192 = vpack.c.b16 %v5173, %v5172
        %v5193 = vpack.c.b16 %v5175, %v5174
        %v5194 = vpack.c.b16 %v5177, %v5176
        %v5195 = vpack.c.b16 %v5179, %v5178
        %5212 = vmatprep.subr.bf16.mxu0 0
        %5213 = vmatpush1.bf16.msra.mxu0 %v5187
        %5214 = vmatprep.subr.bf16.mxu0 0
        %5215 = vmatpush1.bf16.msra.mxu0 %v5186
        %5216 = vmatprep.subr.bf16.mxu0 0
        %5217 = vmatpush1.bf16.msra.mxu0 %v5185
        %5218 = vmatprep.subr.bf16.mxu0 0
        %5219 = vmatpush1.bf16.msra.mxu0 %v5184
        %5220 = vmatprep.subr.bf16.mxu0 0
        %5221 = vmatpush1.bf16.msra.mxu0 %v5183
        %5222 = vmatprep.subr.bf16.mxu0 0
        %5223 = vmatpush1.bf16.msra.mxu0 %v5182
        %5224 = vmatprep.subr.bf16.mxu0 0
        %5225 = vmatpush1.bf16.msra.mxu0 %v5181
        %5226 = vmatprep.subr.bf16.mxu0 0
        %5227 = vmatpush1.bf16.msra.mxu0 %v5180
        %5228 = vmatprep.subr.bf16.mxu0 0
        %5229 = vmatpush2.bf16.msra.mxu0 %v5195
        %5230 = vmatprep.subr.bf16.mxu0 0
        %5231 = vmatpush2.bf16.msra.mxu0 %v5194
        %5232 = vmatprep.subr.bf16.mxu0 0
        %5233 = vmatpush2.bf16.msra.mxu0 %v5193
        %5234 = vmatprep.subr.bf16.mxu0 0
        %5235 = vmatpush2.bf16.msra.mxu0 %v5192
        %5236 = vmatprep.subr.bf16.mxu0 0
        %5237 = vmatpush2.bf16.msra.mxu0 %v5191
        %5238 = vmatprep.subr.bf16.mxu0 0
        %5239 = vmatpush2.bf16.msra.mxu0 %v5190
        %5240 = vmatprep.subr.bf16.mxu0 0
        %5241 = vmatpush2.bf16.msra.mxu0 %v5189
        %5242 = vmatprep.subr.bf16.mxu0 0
        %5243 = vmatpush2.bf16.msra.mxu0 %v5188
        %5244 = vmatprep.mubr.bf16.mxu0 %v5076
        %5245 = vmatmul.mubr.bf16.gmra.mxu0 %v5075
        %v5246 = vpop.f32.mrf.mxu0
        %v5247 = vadd.f32 %v5114, %v5246
        %v5248 = vpop.f32.mrf.mxu0
        %v5249 = vpop.f32.mrf.mxu0
        %v5250 = vadd.f32 %v5114, %v5249
        %v5251 = vpop.f32.mrf.mxu0
        %5252 = vdwg.mxu0
        %v5253 = vmax.f32 %v5247, 0.0
        %v5254 = vmax.f32 %v5250, 0.0
        %v5255 = vpack.c.bf16 %v5254, %v5253
        %v5256 = vld [vmem:[#allocation9] sm:$0xf]
        %v5257 = vld [vmem:[#allocation9 + $0x4] sm:$0xf]
        %v5258 = vld [vmem:[#allocation9 + $0x8] sm:$0xf]
        %v5259 = vld [vmem:[#allocation9 + $0xc] sm:$0xf]
        %v5260 = vld [vmem:[#allocation9 + $0x10] sm:$0xf]
        %v5261 = vld [vmem:[#allocation9 + $0x14] sm:$0xf]
        %v5262 = vld [vmem:[#allocation9 + $0x18] sm:$0xf]
        %v5263 = vld [vmem:[#allocation9 + $0x1c] sm:$0xf]
        %v5264 = vld [vmem:[#allocation9 + $0x20] sm:$0xf]
        %v5265 = vld [vmem:[#allocation9 + $0x24] sm:$0xf]
        %v5266 = vld [vmem:[#allocation9 + $0x28] sm:$0xf]
        %v5267 = vld [vmem:[#allocation9 + $0x2c] sm:$0xf]
        %v5268 = vld [vmem:[#allocation9 + $0x30] sm:$0xf]
        %v5269 = vld [vmem:[#allocation9 + $0x34] sm:$0xf]
        %v5270 = vld [vmem:[#allocation9 + $0x38] sm:$0xf]
        %v5271 = vld [vmem:[#allocation9 + $0x3c] sm:$0xf]
        %v5272 = vld [vmem:[%s10] sm:$0x1]
        %v5274 = vlaneseq
        %v5275 = vshrl.u32 %v5274, 7
        %v5276 = vsub.s32 0, %v5275
        %v5277 = vrot.slane %v5272, %v5276
        %v5295 = vunpack.c.l.b16 %v5256
        %v5296 = vunpack.c.l.b16 %v5257
        %v5297 = vunpack.c.l.b16 %v5258
        %v5298 = vunpack.c.l.b16 %v5259
        %v5299 = vunpack.c.l.b16 %v5260
        %v5300 = vunpack.c.l.b16 %v5261
        %v5301 = vunpack.c.l.b16 %v5262
        %v5302 = vunpack.c.l.b16 %v5263
        %v5303 = vunpack.c.l.b16 %v5264
        %v5304 = vunpack.c.l.b16 %v5265
        %v5305 = vunpack.c.l.b16 %v5266
        %v5306 = vunpack.c.l.b16 %v5267
        %v5307 = vunpack.c.l.b16 %v5268
        %v5308 = vunpack.c.l.b16 %v5269
        %v5309 = vunpack.c.l.b16 %v5270
        %v5310 = vunpack.c.l.b16 %v5271
        %v5311 = vpack.c.b16 %v5296, %v5295
        %v5312 = vpack.c.b16 %v5298, %v5297
        %v5313 = vpack.c.b16 %v5300, %v5299
        %v5314 = vpack.c.b16 %v5302, %v5301
        %v5315 = vpack.c.b16 %v5304, %v5303
        %v5316 = vpack.c.b16 %v5306, %v5305
        %v5317 = vpack.c.b16 %v5308, %v5307
        %v5318 = vpack.c.b16 %v5310, %v5309
        %5327 = vmatprep.subr.bf16.mxu0 0
        %5328 = vmatpush1.bf16.msra.mxu0 %v5318
        %5329 = vmatprep.subr.bf16.mxu0 0
        %5330 = vmatpush1.bf16.msra.mxu0 %v5317
        %5331 = vmatprep.subr.bf16.mxu0 0
        %5332 = vmatpush1.bf16.msra.mxu0 %v5316
        %5333 = vmatprep.subr.bf16.mxu0 0
        %5334 = vmatpush1.bf16.msra.mxu0 %v5315
        %5335 = vmatprep.subr.bf16.mxu0 0
        %5336 = vmatpush1.bf16.msra.mxu0 %v5314
        %5337 = vmatprep.subr.bf16.mxu0 0
        %5338 = vmatpush1.bf16.msra.mxu0 %v5313
        %5339 = vmatprep.subr.bf16.mxu0 0
        %5340 = vmatpush1.bf16.msra.mxu0 %v5312
        %5341 = vmatprep.subr.bf16.mxu0 0
        %5342 = vmatpush1.bf16.msra.mxu0 %v5311
        %5343 = vmatprep.subr.bf16.mxu0 0
        %5344 = vmatpush2.bf16.msra.mxu0 0
        %5345 = vmatprep.subr.bf16.mxu0 0
        %5346 = vmatpush2.bf16.msra.mxu0 0
        %5347 = vmatprep.subr.bf16.mxu0 0
        %5348 = vmatpush2.bf16.msra.mxu0 0
        %5349 = vmatprep.subr.bf16.mxu0 0
        %5350 = vmatpush2.bf16.msra.mxu0 0
        %5351 = vmatprep.subr.bf16.mxu0 0
        %5352 = vmatpush2.bf16.msra.mxu0 0
        %5353 = vmatprep.subr.bf16.mxu0 0
        %5354 = vmatpush2.bf16.msra.mxu0 0
        %5355 = vmatprep.subr.bf16.mxu0 0
        %5356 = vmatpush2.bf16.msra.mxu0 0
        %5357 = vmatprep.subr.bf16.mxu0 0
        %5358 = vmatpush2.bf16.msra.mxu0 0
        %5359 = vmatprep.mubr.bf16.mxu0 0
        %5360 = vmatmul.mubr.bf16.gmra.mxu0 %v5255
        %v5361 = vpop.f32.mrf.mxu0
        %v5362 = vadd.f32 %v5277, %v5361
        %v5363 = vpop.f32.mrf.mxu0
        %v5364 = vpop.f32.mrf.mxu0
        %v5365 = vadd.f32 %v5277, %v5364
        %v5366 = vpop.f32.mrf.mxu0
        %5367 = vdwg.mxu0
        %5368 = vmax.xlane.f32.xlu0 %v5362
        %v5369 = vpop.xlane.xlu0 %5368
        %5370 = vmax.xlane.f32.xlu0 %v5365
        %v5371 = vpop.xlane.xlu0 %5370
        %v5372 = vsub.f32 %v5362, %v5369
        %v5373 = vsub.f32 %v5365, %v5371
        %v5374 = vmul.f32 %v5372, 1.442695
        %v5375 = vpow.pop %v5374
        %v5376 = vmul.f32 %v5373, 1.442695
        %v5377 = vpow.pop %v5376
        %5378 = vadd.xlane.f32.xlu0 %v5375
        %v5379 = vpop.xlane.xlu0 %5378
        %5380 = vadd.xlane.f32.xlu0 %v5377
        %v5381 = vpop.xlane.xlu0 %5380
        %v5382 = vlog2.pop %v5379
        %v5383 = vmul.f32 %v5382, 0.6931472
        %v5384 = vlog2.pop %v5381
        %v5385 = vmul.f32 %v5384, 0.6931472
        %v5386 = vsub.f32 %v5372, %v5383
        %v5387 = vsub.f32 %v5373, %v5385
        %5388 = vst [vmem:[%s435] sm:$0xff] %v5386
        %5389 = vst [vmem:[%s435 + $0x8] sm:$0xff] %v5387
        %s5390 = smul.u32 2, %s24
        %p5391 = scmp.lt.s32.totalorder %s5390, 3
        %s5392 = scalar_select %p5391, %s5390, 3
        %s5393 = smul.addr %s5392, 8
        %s5394 = scalar_lea.vmem %s11, %s5393
        // Predicated region
        $region77: #{forward.1} parent=63 // pred_check
          %p5395 = pneg %p278
        $region78: #{forward.1} parent=63 // pred_check_branch
          %5397 = sbr.rel (%p5395) target = $region80
        $region79: #{forward.1} parent=63 // pred_region
          %s5398 = smul.u32 2, %s24
        $region80: #{forward.1} parent=63 // pred_fallthru
          _
      $region64: #{forward.1} parent=5 // pred_fallthru
        _
      %p5399 = scmp.le.s32.totalorder 2, %s19
      // Predicated region
      $region81: #{forward.1} parent=5 // pred_check
        %p5400 = pneg %p5399
      $region82: #{forward.1} parent=5 // pred_check_branch
        %5402 = sbr.rel (%p5400) target = $region84
      $region83: #{forward.1} parent=5 // pred_region
        %s5403 = ssub.s32 %s19, 2
        // Predicated region
        $region85: #{forward.1} parent=83 // pred_check
          %p5404 = pneg %p284
        $region86: #{forward.1} parent=83 // pred_check_branch
          %5406 = sbr.rel (%p5404) target = $region88
        $region87: #{forward.1} parent=83 // pred_region
          %s5407 = smul.u32 2, %s25
          %p5408 = scmp.lt.s32.totalorder %s5407, 3
          %s5409 = scalar_select %p5408, %s5407, 3
          %s5410 = smul.addr %s5409, 8
          %s5411 = scalar_lea.vmem %s11, %s5410
        $region88: #{forward.1} parent=83 // pred_fallthru
          _
      $region84: #{forward.1} parent=5 // pred_fallthru
        _
    $region6: #{forward.1} parent=1 // loop_footer
      %s23 = sadd.s32 1, %s19
    $region7: #{forward.1} parent=1 // loop_footer_branch
      %18 = sbr.rel target = $region3
    $region8: #{forward.1} parent=1 // loop_exit
      _
    %5412 = vsyncpa [#allocation6], 1
    %s5413 = scalar_lea.sflag [#allocation6], 1
    %5414 = vsyncpa %s5413, 1
    %5415 = vsyncpa [#allocation8], 1

</llo_original>
